<compile_context>
chip_gen: v5e
topology: v5e:2x2
jax: 0.10.0
libtpu: 0.0.40
codegen_flags: <defaults>
</compile_context>

<pallas_src>
import functools
import math

import jax
import jax.numpy as jnp
from jax import lax
from jax.experimental import pallas as pl
from jax.experimental.pallas import tpu as pltpu

HIDDEN = 51          # logical hidden size (as in the torch module)
HP = 128             # hidden padded to a full vreg lane width
GP = 4 * HP          # padded gate width (lane-aligned gate boundaries)


# ---------------------------------------------------------------------------
# Kernel
# ---------------------------------------------------------------------------
def sequence_kernel(x_ref, wih1_ref, whh1_ref, b1_ref,
                    w1f_ref, bf_ref, w2_ref, b2_ref,
                    wlin_ref, blin_ref,
                    out_ref, xproj_ref, h2s_ref, *, n_obs, n_future):
    """Two stacked LSTM cells + linear head, fully unrolled over time.

    Padded hidden/cell lanes stay exactly 0 by induction: pad rows/cols of all
    packed weights and biases are zero -> pad-lane gate preact is 0 ->
    g = tanh(0) = 0, so c_pad = f*0 + i*0 = 0 and h_pad = o*tanh(0) = 0
    (holds for the tanh-form sigmoid too, since only i*g and tanh(c) matter).
    """
    B = x_ref.shape[0]
    T_total = n_obs + n_future
    T_out = out_ref.shape[1]

    # Weights loaded once; resident across all steps.
    wih1 = wih1_ref[...]      # (1, GP)    layer-1 input row (in_features == 1)
    whh1 = whh1_ref[...]      # (HP, GP)   layer-1 recurrent (observed phase)
    w1f = w1f_ref[...]        # (2HP, GP)  vstack([whh1, wfused]) (future phase)
    w2 = w2_ref[...]          # (2HP, GP)  vstack([wih2, whh2])
    wlin = wlin_ref[...]      # (1, HP)
    blin = blin_ref[...]      # (1, 1)

    # Only the two recurrence-resident biases are pre-broadcast (no CSE of
    # broadcast_in_dim; keeping the live set small otherwise).
    b2b = jnp.broadcast_to(b2_ref[...], (B, GP))
    bfb = jnp.broadcast_to(bf_ref[...], (B, GP))

    # ---- Pre-loop: observed-phase layer-1 input projection (bulk, off the
    # recurrence chain).  xproj[t] = x[:, t] * wih1 + b1, stashed in VMEM.
    x_all = x_ref[...]                                            # (B, n_obs)
    b1b = jnp.broadcast_to(b1_ref[...], (B, GP))
    for t in range(n_obs):
        xproj_ref[t] = x_all[:, t:t + 1] * wih1 + b1b

    def gates_to_hc(gates, c):
        # Lane-aligned gate extraction; sigmoid via tanh (single EUP push per
        # vreg instead of exp + reciprocal): sigmoid(x) = 0.5*tanh(0.5x)+0.5.
        sig = 0.5 * jnp.tanh(0.5 * gates[:, :3 * HP]) + 0.5
        i = sig[:, 0 * HP:1 * HP]
        f = sig[:, 1 * HP:2 * HP]
        o = sig[:, 2 * HP:3 * HP]
        g = jnp.tanh(gates[:, 3 * HP:4 * HP])
        c_new = f * c + i * g
        h_new = o * jnp.tanh(c_new)
        return h_new, c_new

    zeros = jnp.zeros((B, HP), jnp.float32)
    h1 = c1 = h2 = c2 = zeros

    # ---- Phase 1: observed timesteps (statically unrolled). ----------------
    for t in range(n_obs):
        gates1 = xproj_ref[t] + jnp.dot(h1, whh1,
                                        preferred_element_type=jnp.float32)
        h1, c1 = gates_to_hc(gates1, c1)
        # K-concat fusion: [h1_new | h2_old] @ vstack(wih2, whh2)  (K = 256).
        gates2 = jnp.dot(jnp.concatenate([h1, h2], axis=1), w2,
                         preferred_element_type=jnp.float32) + b2b
        h2, c2 = gates_to_hc(gates2, c2)
        h2s_ref[t] = h2            # full-vreg stash, off the serial chain

    # ---- Phase 2: autoregressive future steps. ------------------------------
    # Output head fused into the layer-1 input projection:
    #   gates1 = [h1_old | h2_old] @ vstack(whh1, wlin^T (x) wih1) + bfused
    for s in range(n_future):
        t = n_obs + s
        gates1 = jnp.dot(jnp.concatenate([h1, h2], axis=1), w1f,
                         preferred_element_type=jnp.float32) + bfb
        h1, c1 = gates_to_hc(gates1, c1)
        gates2 = jnp.dot(jnp.concatenate([h1, h2], axis=1), w2,
                         preferred_element_type=jnp.float32) + b2b
        h2, c2 = gates_to_hc(gates2, c2)
        h2s_ref[t] = h2

    # ---- Epilogue: bulk linear head + single lane-dense writeback. ----------
    # N=1 head as VPU multiply + lane reduction (not a degenerate N=1 matmul);
    # one-hot lane deposits build a lane-dense (B, T_out) block stored once.
    wlinb = jnp.broadcast_to(wlin, (B, HP))
    lane_ids = lax.broadcasted_iota(jnp.int32, (1, T_out), 1)
    out_acc = jnp.zeros((B, T_out), jnp.float32)
    for t in range(T_total):
        out_t = jnp.sum(h2s_ref[t] * wlinb, axis=1, keepdims=True) + blin
        out_acc = out_acc + out_t * (lane_ids == t).astype(jnp.float32)
    out_ref[...] = out_acc


# ---------------------------------------------------------------------------
# Wrapper
# ---------------------------------------------------------------------------
def sequence_forward(x, kernel_params, future=0):
    """x: [B, T] float32. Returns [B, T + future] float32."""
    B, T = x.shape
    assert T >= 1, "need at least one observed timestep"
    B_pad = max(8, -(-B // 8) * 8)                 # sublane alignment (f32)
    T_total = T + future
    T_out = max(128, -(-T_total // 128) * 128)     # lane-dense padded output

    x_p = jnp.zeros((B_pad, T), jnp.float32).at[:B, :].set(x.astype(jnp.float32))

    kernel = functools.partial(sequence_kernel, n_obs=T, n_future=future)
    n_in = 1 + len(kernel_params)
    out = pl.pallas_call(
        kernel,
        out_shape=jax.ShapeDtypeStruct((B_pad, T_out), jnp.float32),
        in_specs=[pl.BlockSpec(memory_space=pltpu.MemorySpace.VMEM)
                  for _ in range(n_in)],
        out_specs=pl.BlockSpec(memory_space=pltpu.MemorySpace.VMEM),
        scratch_shapes=[
            pltpu.VMEM((T, B_pad, GP), jnp.float32),        # xproj stash
            pltpu.VMEM((T_total, B_pad, HP), jnp.float32),  # h2 stash
        ],
        # TODO(synk): for large batches, tile B over a ("parallel",) grid so
        # v7x's second TensorCore is used; unnecessary at B=2.
    )(x_p, *kernel_params)
    return out[:B, :T_total]


# ---------------------------------------------------------------------------
# Parameter construction / packing
# ---------------------------------------------------------------------------
def init_torch_params(key):
    """Torch-layout params (gate order i,f,g,o), uniform(-1/sqrt(H), 1/sqrt(H))."""
    k = 1.0 / math.sqrt(HIDDEN)
    ks = jax.random.split(key, 10)

    def u(rk, shape):
        return jax.random.uniform(rk, shape, jnp.float32, minval=-k, maxval=k)

    return dict(
        w_ih1=u(ks[0], (4 * HIDDEN, 1)),
        w_hh1=u(ks[1], (4 * HIDDEN, HIDDEN)),
        b_ih1=u(ks[2], (4 * HIDDEN,)),
        b_hh1=u(ks[3], (4 * HIDDEN,)),
        w_ih2=u(ks[4], (4 * HIDDEN, HIDDEN)),
        w_hh2=u(ks[5], (4 * HIDDEN, HIDDEN)),
        b_ih2=u(ks[6], (4 * HIDDEN,)),
        b_hh2=u(ks[7], (4 * HIDDEN,)),
        w_lin=u(ks[8], (1, HIDDEN)),
        b_lin=u(ks[9], (1,)),
    )


def _reorder_pad_gate_cols(w_t):
    """(in, 4*HIDDEN) torch gate order [i,f,g,o] -> (in, GP) order [i,f,o,g],
    each gate block zero-padded from HIDDEN to HP columns."""
    i, f, g, o = (w_t[:, k * HIDDEN:(k + 1) * HIDDEN] for k in range(4))
    pad = lambda blk: jnp.pad(blk, ((0, 0), (0, HP - HIDDEN)))
    return jnp.concatenate([pad(i), pad(f), pad(o), pad(g)], axis=1)


def _pad_rows(w, rows):
    return jnp.pad(w, ((0, rows - w.shape[0]), (0, 0)))


def prepare_kernel_params(tp):
    """Pack torch-layout params into padded / reordered / K-concat-fused layout."""
    wih1 = _reorder_pad_gate_cols(tp["w_ih1"].T)                          # (1, GP)
    whh1 = _pad_rows(_reorder_pad_gate_cols(tp["w_hh1"].T), HP)           # (HP, GP)
    b1 = _reorder_pad_gate_cols((tp["b_ih1"] + tp["b_hh1"])[None, :])     # (1, GP)
    wih2 = _pad_rows(_reorder_pad_gate_cols(tp["w_ih2"].T), HP)           # (HP, GP)
    whh2 = _pad_rows(_reorder_pad_gate_cols(tp["w_hh2"].T), HP)           # (HP, GP)
    b2 = _reorder_pad_gate_cols((tp["b_ih2"] + tp["b_hh2"])[None, :])     # (1, GP)
    wlin = jnp.pad(tp["w_lin"], ((0, 0), (0, HP - HIDDEN)))               # (1, HP)
    blin = tp["b_lin"].reshape(1, 1)                                      # (1, 1)
    # Future-phase fusion of the linear head into the next step's layer-1
    # input projection: wfused[j, :] = wlin[0, j] * wih1[0, :].
    wfused = wlin.T * wih1                                                # (HP, GP)
    bfused = b1 + blin * wih1                                             # (1, GP)
    # K-concat fusions (host-side): one (B, 2HP) @ (2HP, GP) matmul per layer.
    w1f_cat = jnp.concatenate([whh1, wfused], axis=0)                     # (2HP, GP)
    w2_cat = jnp.concatenate([wih2, whh2], axis=0)                        # (2HP, GP)
    return (wih1, whh1, b1, w1f_cat, bfused, w2_cat, b2, wlin, blin)


# ---------------------------------------------------------------------------
# Plain-JAX reference (unpadded, torch gate order) for validation
# ---------------------------------------------------------------------------
def sequence_reference(x, tp, future=0):
    B, T = x.shape
    H = HIDDEN

    def cell(x_t, h, c, w_ih, w_hh, b_ih, b_hh):
        gates = x_t @ w_ih.T + h @ w_hh.T + b_ih + b_hh
        i = jax.nn.sigmoid(gates[:, 0 * H:1 * H])
        f = jax.nn.sigmoid(gates[:, 1 * H:2 * H])
        g = jnp.tanh(gates[:, 2 * H:3 * H])
        o = jax.nn.sigmoid(gates[:, 3 * H:4 * H])
        c_new = f * c + i * g
        h_new = o * jnp.tanh(c_new)
        return h_new, c_new

    h1 = c1 = h2 = c2 = jnp.zeros((B, H), jnp.float32)
    outs = []
    out = jnp.zeros((B, 1), jnp.float32)
    for t in range(T + future):
        x_t = x[:, t:t + 1] if t < T else out
        h1, c1 = cell(x_t, h1, c1, tp["w_ih1"], tp["w_hh1"], tp["b_ih1"], tp["b_hh1"])
        h2, c2 = cell(h1, h2, c2, tp["w_ih2"], tp["w_hh2"], tp["b_ih2"], tp["b_hh2"])
        out = h2 @ tp["w_lin"].T + tp["b_lin"]
        outs.append(out)
    return jnp.concatenate(outs, axis=1)


if __name__ == "__main__":
    key = jax.random.PRNGKey(0)
    k_params, k_x = jax.random.split(key)

    B, T, FUTURE = 2, 8, 4
    torch_params = init_torch_params(k_params)
    kernel_params = prepare_kernel_params(torch_params)
    x = jax.random.normal(k_x, (B, T), jnp.float32)

    out = sequence_forward(x, kernel_params, future=FUTURE)
    out = jax.block_until_ready(out)

    ref = sequence_reference(x, torch_params, future=FUTURE)
    assert out.shape == (B, T + FUTURE)
    err = float(jnp.max(jnp.abs(out - ref)))
    assert jnp.allclose(out, ref, atol=2e-4, rtol=2e-4), \
        f"mismatch vs reference (max abs err {err})"

    print("KERNEL_OK")
</pallas_src>

<mosaic_0001>
module attributes {stable_mosaic.version = 11 : i64} {
  func.func @sequence_kernel(%arg0: memref<8x8xf32, #tpu.memory_space<vmem>>, %arg1: memref<1x512xf32, #tpu.memory_space<vmem>>, %arg2: memref<128x512xf32, #tpu.memory_space<vmem>>, %arg3: memref<1x512xf32, #tpu.memory_space<vmem>>, %arg4: memref<256x512xf32, #tpu.memory_space<vmem>>, %arg5: memref<1x512xf32, #tpu.memory_space<vmem>>, %arg6: memref<256x512xf32, #tpu.memory_space<vmem>>, %arg7: memref<1x512xf32, #tpu.memory_space<vmem>>, %arg8: memref<1x128xf32, #tpu.memory_space<vmem>>, %arg9: memref<1x1xf32, #tpu.memory_space<vmem>>, %arg10: memref<8x128xf32, #tpu.memory_space<vmem>>, %arg11: memref<8x8x512xf32, #tpu.memory_space<vmem>>, %arg12: memref<12x8x128xf32, #tpu.memory_space<vmem>>) attributes {dimension_semantics = [], scalar_prefetch = 0 : i64, scratch_operands = 2 : i64, tpu.core_type = #tpu.core_type<tc>} {
    %c0 = arith.constant 0 : index
    %c0_0 = arith.constant 0 : index
    %0 = vector.load %arg1[%c0, %c0_0] : memref<1x512xf32, #tpu.memory_space<vmem>>, vector<1x512xf32>
    %c0_1 = arith.constant 0 : index
    %c0_2 = arith.constant 0 : index
    %1 = vector.load %arg2[%c0_1, %c0_2] : memref<128x512xf32, #tpu.memory_space<vmem>>, vector<128x512xf32>
    %c0_3 = arith.constant 0 : index
    %c0_4 = arith.constant 0 : index
    %2 = vector.load %arg4[%c0_3, %c0_4] : memref<256x512xf32, #tpu.memory_space<vmem>>, vector<256x512xf32>
    %c0_5 = arith.constant 0 : index
    %c0_6 = arith.constant 0 : index
    %3 = vector.load %arg6[%c0_5, %c0_6] : memref<256x512xf32, #tpu.memory_space<vmem>>, vector<256x512xf32>
    %c0_7 = arith.constant 0 : index
    %c0_8 = arith.constant 0 : index
    %4 = vector.load %arg8[%c0_7, %c0_8] : memref<1x128xf32, #tpu.memory_space<vmem>>, vector<1x128xf32>
    %c0_9 = arith.constant 0 : index
    %c0_10 = arith.constant 0 : index
    %5 = vector.load %arg9[%c0_9, %c0_10] : memref<1x1xf32, #tpu.memory_space<vmem>>, vector<1x1xf32>
    %c0_11 = arith.constant 0 : index
    %c0_12 = arith.constant 0 : index
    %6 = vector.load %arg7[%c0_11, %c0_12] : memref<1x512xf32, #tpu.memory_space<vmem>>, vector<1x512xf32>
    %7 = vector.shape_cast %6 : vector<1x512xf32> to vector<1x512xf32>
    %8 = vector.broadcast %7 : vector<1x512xf32> to vector<8x512xf32>
    %c0_13 = arith.constant 0 : index
    %c0_14 = arith.constant 0 : index
    %9 = vector.load %arg5[%c0_13, %c0_14] : memref<1x512xf32, #tpu.memory_space<vmem>>, vector<1x512xf32>
    %10 = vector.shape_cast %9 : vector<1x512xf32> to vector<1x512xf32>
    %11 = vector.broadcast %10 : vector<1x512xf32> to vector<8x512xf32>
    %c0_15 = arith.constant 0 : index
    %c0_16 = arith.constant 0 : index
    %12 = vector.load %arg0[%c0_15, %c0_16] : memref<8x8xf32, #tpu.memory_space<vmem>>, vector<8x8xf32>
    %c0_17 = arith.constant 0 : index
    %c0_18 = arith.constant 0 : index
    %13 = vector.load %arg3[%c0_17, %c0_18] : memref<1x512xf32, #tpu.memory_space<vmem>>, vector<1x512xf32>
    %14 = vector.shape_cast %13 : vector<1x512xf32> to vector<1x512xf32>
    %15 = vector.broadcast %14 : vector<1x512xf32> to vector<8x512xf32>
    %16 = vector.extract_strided_slice %12 {offsets = [0, 0], sizes = [8, 1], strides = [1, 1]} : vector<8x8xf32> to vector<8x1xf32>
    %17 = vector.broadcast %16 : vector<8x1xf32> to vector<8x512xf32>
    %18 = vector.broadcast %0 : vector<1x512xf32> to vector<8x512xf32>
    %19 = arith.mulf %17, %18 : vector<8x512xf32>
    %20 = arith.addf %19, %15 : vector<8x512xf32>
    %c0_19 = arith.constant 0 : index
    %c0_20 = arith.constant 0 : index
    %c0_21 = arith.constant 0 : index
    %21 = vector.load %arg11[%c0_19, %c0_20, %c0_21] : memref<8x8x512xf32, #tpu.memory_space<vmem>>, vector<1x8x512xf32>
    %22 = vector.shape_cast %21 : vector<1x8x512xf32> to vector<8x512xf32>
    %23 = vector.shape_cast %20 : vector<8x512xf32> to vector<1x8x512xf32>
    tpu.vector_store %arg11[%c0_19, %c0_20, %c0_21], %23 {strides = array<i32>} : memref<8x8x512xf32, #tpu.memory_space<vmem>>, vector<1x8x512xf32>,
    %24 = vector.extract_strided_slice %12 {offsets = [0, 1], sizes = [8, 1], strides = [1, 1]} : vector<8x8xf32> to vector<8x1xf32>
    %25 = vector.broadcast %24 : vector<8x1xf32> to vector<8x512xf32>
    %26 = vector.broadcast %0 : vector<1x512xf32> to vector<8x512xf32>
    %27 = arith.mulf %25, %26 : vector<8x512xf32>
    %28 = arith.addf %27, %15 : vector<8x512xf32>
    %c1 = arith.constant 1 : index
    %c0_22 = arith.constant 0 : index
    %c0_23 = arith.constant 0 : index
    %29 = vector.load %arg11[%c1, %c0_22, %c0_23] : memref<8x8x512xf32, #tpu.memory_space<vmem>>, vector<1x8x512xf32>
    %30 = vector.shape_cast %29 : vector<1x8x512xf32> to vector<8x512xf32>
    %31 = vector.shape_cast %28 : vector<8x512xf32> to vector<1x8x512xf32>
    tpu.vector_store %arg11[%c1, %c0_22, %c0_23], %31 {strides = array<i32>} : memref<8x8x512xf32, #tpu.memory_space<vmem>>, vector<1x8x512xf32>,
    %32 = vector.extract_strided_slice %12 {offsets = [0, 2], sizes = [8, 1], strides = [1, 1]} : vector<8x8xf32> to vector<8x1xf32>
    %33 = vector.broadcast %32 : vector<8x1xf32> to vector<8x512xf32>
    %34 = vector.broadcast %0 : vector<1x512xf32> to vector<8x512xf32>
    %35 = arith.mulf %33, %34 : vector<8x512xf32>
    %36 = arith.addf %35, %15 : vector<8x512xf32>
    %c2 = arith.constant 2 : index
    %c0_24 = arith.constant 0 : index
    %c0_25 = arith.constant 0 : index
    %37 = vector.load %arg11[%c2, %c0_24, %c0_25] : memref<8x8x512xf32, #tpu.memory_space<vmem>>, vector<1x8x512xf32>
    %38 = vector.shape_cast %37 : vector<1x8x512xf32> to vector<8x512xf32>
    %39 = vector.shape_cast %36 : vector<8x512xf32> to vector<1x8x512xf32>
    tpu.vector_store %arg11[%c2, %c0_24, %c0_25], %39 {strides = array<i32>} : memref<8x8x512xf32, #tpu.memory_space<vmem>>, vector<1x8x512xf32>,
    %40 = vector.extract_strided_slice %12 {offsets = [0, 3], sizes = [8, 1], strides = [1, 1]} : vector<8x8xf32> to vector<8x1xf32>
    %41 = vector.broadcast %40 : vector<8x1xf32> to vector<8x512xf32>
    %42 = vector.broadcast %0 : vector<1x512xf32> to vector<8x512xf32>
    %43 = arith.mulf %41, %42 : vector<8x512xf32>
    %44 = arith.addf %43, %15 : vector<8x512xf32>
    %c3 = arith.constant 3 : index
    %c0_26 = arith.constant 0 : index
    %c0_27 = arith.constant 0 : index
    %45 = vector.load %arg11[%c3, %c0_26, %c0_27] : memref<8x8x512xf32, #tpu.memory_space<vmem>>, vector<1x8x512xf32>
    %46 = vector.shape_cast %45 : vector<1x8x512xf32> to vector<8x512xf32>
    %47 = vector.shape_cast %44 : vector<8x512xf32> to vector<1x8x512xf32>
    tpu.vector_store %arg11[%c3, %c0_26, %c0_27], %47 {strides = array<i32>} : memref<8x8x512xf32, #tpu.memory_space<vmem>>, vector<1x8x512xf32>,
    %48 = vector.extract_strided_slice %12 {offsets = [0, 4], sizes = [8, 1], strides = [1, 1]} : vector<8x8xf32> to vector<8x1xf32>
    %49 = vector.broadcast %48 : vector<8x1xf32> to vector<8x512xf32>
    %50 = vector.broadcast %0 : vector<1x512xf32> to vector<8x512xf32>
    %51 = arith.mulf %49, %50 : vector<8x512xf32>
    %52 = arith.addf %51, %15 : vector<8x512xf32>
    %c4 = arith.constant 4 : index
    %c0_28 = arith.constant 0 : index
    %c0_29 = arith.constant 0 : index
    %53 = vector.load %arg11[%c4, %c0_28, %c0_29] : memref<8x8x512xf32, #tpu.memory_space<vmem>>, vector<1x8x512xf32>
    %54 = vector.shape_cast %53 : vector<1x8x512xf32> to vector<8x512xf32>
    %55 = vector.shape_cast %52 : vector<8x512xf32> to vector<1x8x512xf32>
    tpu.vector_store %arg11[%c4, %c0_28, %c0_29], %55 {strides = array<i32>} : memref<8x8x512xf32, #tpu.memory_space<vmem>>, vector<1x8x512xf32>,
    %56 = vector.extract_strided_slice %12 {offsets = [0, 5], sizes = [8, 1], strides = [1, 1]} : vector<8x8xf32> to vector<8x1xf32>
    %57 = vector.broadcast %56 : vector<8x1xf32> to vector<8x512xf32>
    %58 = vector.broadcast %0 : vector<1x512xf32> to vector<8x512xf32>
    %59 = arith.mulf %57, %58 : vector<8x512xf32>
    %60 = arith.addf %59, %15 : vector<8x512xf32>
    %c5 = arith.constant 5 : index
    %c0_30 = arith.constant 0 : index
    %c0_31 = arith.constant 0 : index
    %61 = vector.load %arg11[%c5, %c0_30, %c0_31] : memref<8x8x512xf32, #tpu.memory_space<vmem>>, vector<1x8x512xf32>
    %62 = vector.shape_cast %61 : vector<1x8x512xf32> to vector<8x512xf32>
    %63 = vector.shape_cast %60 : vector<8x512xf32> to vector<1x8x512xf32>
    tpu.vector_store %arg11[%c5, %c0_30, %c0_31], %63 {strides = array<i32>} : memref<8x8x512xf32, #tpu.memory_space<vmem>>, vector<1x8x512xf32>,
    %64 = vector.extract_strided_slice %12 {offsets = [0, 6], sizes = [8, 1], strides = [1, 1]} : vector<8x8xf32> to vector<8x1xf32>
    %65 = vector.broadcast %64 : vector<8x1xf32> to vector<8x512xf32>
    %66 = vector.broadcast %0 : vector<1x512xf32> to vector<8x512xf32>
    %67 = arith.mulf %65, %66 : vector<8x512xf32>
    %68 = arith.addf %67, %15 : vector<8x512xf32>
    %c6 = arith.constant 6 : index
    %c0_32 = arith.constant 0 : index
    %c0_33 = arith.constant 0 : index
    %69 = vector.load %arg11[%c6, %c0_32, %c0_33] : memref<8x8x512xf32, #tpu.memory_space<vmem>>, vector<1x8x512xf32>
    %70 = vector.shape_cast %69 : vector<1x8x512xf32> to vector<8x512xf32>
    %71 = vector.shape_cast %68 : vector<8x512xf32> to vector<1x8x512xf32>
    tpu.vector_store %arg11[%c6, %c0_32, %c0_33], %71 {strides = array<i32>} : memref<8x8x512xf32, #tpu.memory_space<vmem>>, vector<1x8x512xf32>,
    %72 = vector.extract_strided_slice %12 {offsets = [0, 7], sizes = [8, 1], strides = [1, 1]} : vector<8x8xf32> to vector<8x1xf32>
    %73 = vector.broadcast %72 : vector<8x1xf32> to vector<8x512xf32>
    %74 = vector.broadcast %0 : vector<1x512xf32> to vector<8x512xf32>
    %75 = arith.mulf %73, %74 : vector<8x512xf32>
    %76 = arith.addf %75, %15 : vector<8x512xf32>
    %c7 = arith.constant 7 : index
    %c0_34 = arith.constant 0 : index
    %c0_35 = arith.constant 0 : index
    %77 = vector.load %arg11[%c7, %c0_34, %c0_35] : memref<8x8x512xf32, #tpu.memory_space<vmem>>, vector<1x8x512xf32>
    %78 = vector.shape_cast %77 : vector<1x8x512xf32> to vector<8x512xf32>
    %79 = vector.shape_cast %76 : vector<8x512xf32> to vector<1x8x512xf32>
    tpu.vector_store %arg11[%c7, %c0_34, %c0_35], %79 {strides = array<i32>} : memref<8x8x512xf32, #tpu.memory_space<vmem>>, vector<1x8x512xf32>,
    %cst = arith.constant 0.000000e+00 : f32
    %80 = vector.broadcast %cst : f32 to vector<8x128xf32>
    %c0_36 = arith.constant 0 : index
    %c0_37 = arith.constant 0 : index
    %c0_38 = arith.constant 0 : index
    %81 = vector.load %arg11[%c0_36, %c0_37, %c0_38] : memref<8x8x512xf32, #tpu.memory_space<vmem>>, vector<1x8x512xf32>
    %82 = vector.shape_cast %81 : vector<1x8x512xf32> to vector<8x512xf32>
    %cst_39 = arith.constant dense<0.000000e+00> : vector<8x512xf32>
    %83 = tpu.matmul %80, %1, %cst_39 {dimension_numbers = #tpu.dot_dimension_numbers<[1], [0], [0], [1], [0, 0, 1, 1], [], []>} : vector<8x128xf32>, vector<128x512xf32>, vector<8x512xf32> -> vector<8x512xf32>
    %84 = arith.addf %82, %83 : vector<8x512xf32>
    %85 = vector.extract_strided_slice %84 {offsets = [0, 0], sizes = [8, 384], strides = [1, 1]} : vector<8x512xf32> to vector<8x384xf32>
    %cst_40 = arith.constant 5.000000e-01 : f32
    %86 = vector.broadcast %cst_40 : f32 to vector<8x384xf32>
    %87 = arith.mulf %86, %85 : vector<8x384xf32>
    %88 = math.tanh %87 : vector<8x384xf32>
    %cst_41 = arith.constant 5.000000e-01 : f32
    %89 = vector.broadcast %cst_41 : f32 to vector<8x384xf32>
    %90 = arith.mulf %89, %88 : vector<8x384xf32>
    %cst_42 = arith.constant 5.000000e-01 : f32
    %91 = vector.broadcast %cst_42 : f32 to vector<8x384xf32>
    %92 = arith.addf %90, %91 : vector<8x384xf32>
    %93 = vector.extract_strided_slice %92 {offsets = [0, 0], sizes = [8, 128], strides = [1, 1]} : vector<8x384xf32> to vector<8x128xf32>
    %94 = vector.extract_strided_slice %92 {offsets = [0, 128], sizes = [8, 128], strides = [1, 1]} : vector<8x384xf32> to vector<8x128xf32>
    %95 = vector.extract_strided_slice %92 {offsets = [0, 256], sizes = [8, 128], strides = [1, 1]} : vector<8x384xf32> to vector<8x128xf32>
    %96 = vector.extract_strided_slice %84 {offsets = [0, 384], sizes = [8, 128], strides = [1, 1]} : vector<8x512xf32> to vector<8x128xf32>
    %97 = math.tanh %96 : vector<8x128xf32>
    %98 = arith.mulf %94, %80 : vector<8x128xf32>
    %99 = arith.mulf %93, %97 : vector<8x128xf32>
    %100 = arith.addf %98, %99 : vector<8x128xf32>
    %101 = math.tanh %100 : vector<8x128xf32>
    %102 = arith.mulf %95, %101 : vector<8x128xf32>
    %103 = tpu.concatenate %102, %80 in 1 : vector<8x128xf32>, vector<8x128xf32> -> vector<8x256xf32>
    %cst_43 = arith.constant dense<0.000000e+00> : vector<8x512xf32>
    %104 = tpu.matmul %103, %3, %cst_43 {dimension_numbers = #tpu.dot_dimension_numbers<[1], [0], [0], [1], [0, 0, 1, 1], [], []>} : vector<8x256xf32>, vector<256x512xf32>, vector<8x512xf32> -> vector<8x512xf32>
    %105 = arith.addf %104, %8 : vector<8x512xf32>
    %106 = vector.extract_strided_slice %105 {offsets = [0, 0], sizes = [8, 384], strides = [1, 1]} : vector<8x512xf32> to vector<8x384xf32>
    %cst_44 = arith.constant 5.000000e-01 : f32
    %107 = vector.broadcast %cst_44 : f32 to vector<8x384xf32>
    %108 = arith.mulf %107, %106 : vector<8x384xf32>
    %109 = math.tanh %108 : vector<8x384xf32>
    %cst_45 = arith.constant 5.000000e-01 : f32
    %110 = vector.broadcast %cst_45 : f32 to vector<8x384xf32>
    %111 = arith.mulf %110, %109 : vector<8x384xf32>
    %cst_46 = arith.constant 5.000000e-01 : f32
    %112 = vector.broadcast %cst_46 : f32 to vector<8x384xf32>
    %113 = arith.addf %111, %112 : vector<8x384xf32>
    %114 = vector.extract_strided_slice %113 {offsets = [0, 0], sizes = [8, 128], strides = [1, 1]} : vector<8x384xf32> to vector<8x128xf32>
    %115 = vector.extract_strided_slice %113 {offsets = [0, 128], sizes = [8, 128], strides = [1, 1]} : vector<8x384xf32> to vector<8x128xf32>
    %116 = vector.extract_strided_slice %113 {offsets = [0, 256], sizes = [8, 128], strides = [1, 1]} : vector<8x384xf32> to vector<8x128xf32>
    %117 = vector.extract_strided_slice %105 {offsets = [0, 384], sizes = [8, 128], strides = [1, 1]} : vector<8x512xf32> to vector<8x128xf32>
    %118 = math.tanh %117 : vector<8x128xf32>
    %119 = arith.mulf %115, %80 : vector<8x128xf32>
    %120 = arith.mulf %114, %118 : vector<8x128xf32>
    %121 = arith.addf %119, %120 : vector<8x128xf32>
    %122 = math.tanh %121 : vector<8x128xf32>
    %123 = arith.mulf %116, %122 : vector<8x128xf32>
    %c0_47 = arith.constant 0 : index
    %c0_48 = arith.constant 0 : index
    %c0_49 = arith.constant 0 : index
    %124 = vector.load %arg12[%c0_47, %c0_48, %c0_49] : memref<12x8x128xf32, #tpu.memory_space<vmem>>, vector<1x8x128xf32>
    %125 = vector.shape_cast %124 : vector<1x8x128xf32> to vector<8x128xf32>
    %126 = vector.shape_cast %123 : vector<8x128xf32> to vector<1x8x128xf32>
    tpu.vector_store %arg12[%c0_47, %c0_48, %c0_49], %126 {strides = array<i32>} : memref<12x8x128xf32, #tpu.memory_space<vmem>>, vector<1x8x128xf32>,
    %c1_50 = arith.constant 1 : index
    %c0_51 = arith.constant 0 : index
    %c0_52 = arith.constant 0 : index
    %127 = vector.load %arg11[%c1_50, %c0_51, %c0_52] : memref<8x8x512xf32, #tpu.memory_space<vmem>>, vector<1x8x512xf32>
    %128 = vector.shape_cast %127 : vector<1x8x512xf32> to vector<8x512xf32>
    %cst_53 = arith.constant dense<0.000000e+00> : vector<8x512xf32>
    %129 = tpu.matmul %102, %1, %cst_53 {dimension_numbers = #tpu.dot_dimension_numbers<[1], [0], [0], [1], [0, 0, 1, 1], [], []>} : vector<8x128xf32>, vector<128x512xf32>, vector<8x512xf32> -> vector<8x512xf32>
    %130 = arith.addf %128, %129 : vector<8x512xf32>
    %131 = vector.extract_strided_slice %130 {offsets = [0, 0], sizes = [8, 384], strides = [1, 1]} : vector<8x512xf32> to vector<8x384xf32>
    %cst_54 = arith.constant 5.000000e-01 : f32
    %132 = vector.broadcast %cst_54 : f32 to vector<8x384xf32>
    %133 = arith.mulf %132, %131 : vector<8x384xf32>
    %134 = math.tanh %133 : vector<8x384xf32>
    %cst_55 = arith.constant 5.000000e-01 : f32
    %135 = vector.broadcast %cst_55 : f32 to vector<8x384xf32>
    %136 = arith.mulf %135, %134 : vector<8x384xf32>
    %cst_56 = arith.constant 5.000000e-01 : f32
    %137 = vector.broadcast %cst_56 : f32 to vector<8x384xf32>
    %138 = arith.addf %136, %137 : vector<8x384xf32>
    %139 = vector.extract_strided_slice %138 {offsets = [0, 0], sizes = [8, 128], strides = [1, 1]} : vector<8x384xf32> to vector<8x128xf32>
    %140 = vector.extract_strided_slice %138 {offsets = [0, 128], sizes = [8, 128], strides = [1, 1]} : vector<8x384xf32> to vector<8x128xf32>
    %141 = vector.extract_strided_slice %138 {offsets = [0, 256], sizes = [8, 128], strides = [1, 1]} : vector<8x384xf32> to vector<8x128xf32>
    %142 = vector.extract_strided_slice %130 {offsets = [0, 384], sizes = [8, 128], strides = [1, 1]} : vector<8x512xf32> to vector<8x128xf32>
    %143 = math.tanh %142 : vector<8x128xf32>
    %144 = arith.mulf %140, %100 : vector<8x128xf32>
    %145 = arith.mulf %139, %143 : vector<8x128xf32>
    %146 = arith.addf %144, %145 : vector<8x128xf32>
    %147 = math.tanh %146 : vector<8x128xf32>
    %148 = arith.mulf %141, %147 : vector<8x128xf32>
    %149 = tpu.concatenate %148, %123 in 1 : vector<8x128xf32>, vector<8x128xf32> -> vector<8x256xf32>
    %cst_57 = arith.constant dense<0.000000e+00> : vector<8x512xf32>
    %150 = tpu.matmul %149, %3, %cst_57 {dimension_numbers = #tpu.dot_dimension_numbers<[1], [0], [0], [1], [0, 0, 1, 1], [], []>} : vector<8x256xf32>, vector<256x512xf32>, vector<8x512xf32> -> vector<8x512xf32>
    %151 = arith.addf %150, %8 : vector<8x512xf32>
    %152 = vector.extract_strided_slice %151 {offsets = [0, 0], sizes = [8, 384], strides = [1, 1]} : vector<8x512xf32> to vector<8x384xf32>
    %cst_58 = arith.constant 5.000000e-01 : f32
    %153 = vector.broadcast %cst_58 : f32 to vector<8x384xf32>
    %154 = arith.mulf %153, %152 : vector<8x384xf32>
    %155 = math.tanh %154 : vector<8x384xf32>
    %cst_59 = arith.constant 5.000000e-01 : f32
    %156 = vector.broadcast %cst_59 : f32 to vector<8x384xf32>
    %157 = arith.mulf %156, %155 : vector<8x384xf32>
    %cst_60 = arith.constant 5.000000e-01 : f32
    %158 = vector.broadcast %cst_60 : f32 to vector<8x384xf32>
    %159 = arith.addf %157, %158 : vector<8x384xf32>
    %160 = vector.extract_strided_slice %159 {offsets = [0, 0], sizes = [8, 128], strides = [1, 1]} : vector<8x384xf32> to vector<8x128xf32>
    %161 = vector.extract_strided_slice %159 {offsets = [0, 128], sizes = [8, 128], strides = [1, 1]} : vector<8x384xf32> to vector<8x128xf32>
    %162 = vector.extract_strided_slice %159 {offsets = [0, 256], sizes = [8, 128], strides = [1, 1]} : vector<8x384xf32> to vector<8x128xf32>
    %163 = vector.extract_strided_slice %151 {offsets = [0, 384], sizes = [8, 128], strides = [1, 1]} : vector<8x512xf32> to vector<8x128xf32>
    %164 = math.tanh %163 : vector<8x128xf32>
    %165 = arith.mulf %161, %121 : vector<8x128xf32>
    %166 = arith.mulf %160, %164 : vector<8x128xf32>
    %167 = arith.addf %165, %166 : vector<8x128xf32>
    %168 = math.tanh %167 : vector<8x128xf32>
    %169 = arith.mulf %162, %168 : vector<8x128xf32>
    %c1_61 = arith.constant 1 : index
    %c0_62 = arith.constant 0 : index
    %c0_63 = arith.constant 0 : index
    %170 = vector.load %arg12[%c1_61, %c0_62, %c0_63] : memref<12x8x128xf32, #tpu.memory_space<vmem>>, vector<1x8x128xf32>
    %171 = vector.shape_cast %170 : vector<1x8x128xf32> to vector<8x128xf32>
    %172 = vector.shape_cast %169 : vector<8x128xf32> to vector<1x8x128xf32>
    tpu.vector_store %arg12[%c1_61, %c0_62, %c0_63], %172 {strides = array<i32>} : memref<12x8x128xf32, #tpu.memory_space<vmem>>, vector<1x8x128xf32>,
    %c2_64 = arith.constant 2 : index
    %c0_65 = arith.constant 0 : index
    %c0_66 = arith.constant 0 : index
    %173 = vector.load %arg11[%c2_64, %c0_65, %c0_66] : memref<8x8x512xf32, #tpu.memory_space<vmem>>, vector<1x8x512xf32>
    %174 = vector.shape_cast %173 : vector<1x8x512xf32> to vector<8x512xf32>
    %cst_67 = arith.constant dense<0.000000e+00> : vector<8x512xf32>
    %175 = tpu.matmul %148, %1, %cst_67 {dimension_numbers = #tpu.dot_dimension_numbers<[1], [0], [0], [1], [0, 0, 1, 1], [], []>} : vector<8x128xf32>, vector<128x512xf32>, vector<8x512xf32> -> vector<8x512xf32>
    %176 = arith.addf %174, %175 : vector<8x512xf32>
    %177 = vector.extract_strided_slice %176 {offsets = [0, 0], sizes = [8, 384], strides = [1, 1]} : vector<8x512xf32> to vector<8x384xf32>
    %cst_68 = arith.constant 5.000000e-01 : f32
    %178 = vector.broadcast %cst_68 : f32 to vector<8x384xf32>
    %179 = arith.mulf %178, %177 : vector<8x384xf32>
    %180 = math.tanh %179 : vector<8x384xf32>
    %cst_69 = arith.constant 5.000000e-01 : f32
    %181 = vector.broadcast %cst_69 : f32 to vector<8x384xf32>
    %182 = arith.mulf %181, %180 : vector<8x384xf32>
    %cst_70 = arith.constant 5.000000e-01 : f32
    %183 = vector.broadcast %cst_70 : f32 to vector<8x384xf32>
    %184 = arith.addf %182, %183 : vector<8x384xf32>
    %185 = vector.extract_strided_slice %184 {offsets = [0, 0], sizes = [8, 128], strides = [1, 1]} : vector<8x384xf32> to vector<8x128xf32>
    %186 = vector.extract_strided_slice %184 {offsets = [0, 128], sizes = [8, 128], strides = [1, 1]} : vector<8x384xf32> to vector<8x128xf32>
    %187 = vector.extract_strided_slice %184 {offsets = [0, 256], sizes = [8, 128], strides = [1, 1]} : vector<8x384xf32> to vector<8x128xf32>
    %188 = vector.extract_strided_slice %176 {offsets = [0, 384], sizes = [8, 128], strides = [1, 1]} : vector<8x512xf32> to vector<8x128xf32>
    %189 = math.tanh %188 : vector<8x128xf32>
    %190 = arith.mulf %186, %146 : vector<8x128xf32>
    %191 = arith.mulf %185, %189 : vector<8x128xf32>
    %192 = arith.addf %190, %191 : vector<8x128xf32>
    %193 = math.tanh %192 : vector<8x128xf32>
    %194 = arith.mulf %187, %193 : vector<8x128xf32>
    %195 = tpu.concatenate %194, %169 in 1 : vector<8x128xf32>, vector<8x128xf32> -> vector<8x256xf32>
    %cst_71 = arith.constant dense<0.000000e+00> : vector<8x512xf32>
    %196 = tpu.matmul %195, %3, %cst_71 {dimension_numbers = #tpu.dot_dimension_numbers<[1], [0], [0], [1], [0, 0, 1, 1], [], []>} : vector<8x256xf32>, vector<256x512xf32>, vector<8x512xf32> -> vector<8x512xf32>
    %197 = arith.addf %196, %8 : vector<8x512xf32>
    %198 = vector.extract_strided_slice %197 {offsets = [0, 0], sizes = [8, 384], strides = [1, 1]} : vector<8x512xf32> to vector<8x384xf32>
    %cst_72 = arith.constant 5.000000e-01 : f32
    %199 = vector.broadcast %cst_72 : f32 to vector<8x384xf32>
    %200 = arith.mulf %199, %198 : vector<8x384xf32>
    %201 = math.tanh %200 : vector<8x384xf32>
    %cst_73 = arith.constant 5.000000e-01 : f32
    %202 = vector.broadcast %cst_73 : f32 to vector<8x384xf32>
    %203 = arith.mulf %202, %201 : vector<8x384xf32>
    %cst_74 = arith.constant 5.000000e-01 : f32
    %204 = vector.broadcast %cst_74 : f32 to vector<8x384xf32>
    %205 = arith.addf %203, %204 : vector<8x384xf32>
    %206 = vector.extract_strided_slice %205 {offsets = [0, 0], sizes = [8, 128], strides = [1, 1]} : vector<8x384xf32> to vector<8x128xf32>
    %207 = vector.extract_strided_slice %205 {offsets = [0, 128], sizes = [8, 128], strides = [1, 1]} : vector<8x384xf32> to vector<8x128xf32>
    %208 = vector.extract_strided_slice %205 {offsets = [0, 256], sizes = [8, 128], strides = [1, 1]} : vector<8x384xf32> to vector<8x128xf32>
    %209 = vector.extract_strided_slice %197 {offsets = [0, 384], sizes = [8, 128], strides = [1, 1]} : vector<8x512xf32> to vector<8x128xf32>
    %210 = math.tanh %209 : vector<8x128xf32>
    %211 = arith.mulf %207, %167 : vector<8x128xf32>
    %212 = arith.mulf %206, %210 : vector<8x128xf32>
    %213 = arith.addf %211, %212 : vector<8x128xf32>
    %214 = math.tanh %213 : vector<8x128xf32>
    %215 = arith.mulf %208, %214 : vector<8x128xf32>
    %c2_75 = arith.constant 2 : index
    %c0_76 = arith.constant 0 : index
    %c0_77 = arith.constant 0 : index
    %216 = vector.load %arg12[%c2_75, %c0_76, %c0_77] : memref<12x8x128xf32, #tpu.memory_space<vmem>>, vector<1x8x128xf32>
    %217 = vector.shape_cast %216 : vector<1x8x128xf32> to vector<8x128xf32>
    %218 = vector.shape_cast %215 : vector<8x128xf32> to vector<1x8x128xf32>
    tpu.vector_store %arg12[%c2_75, %c0_76, %c0_77], %218 {strides = array<i32>} : memref<12x8x128xf32, #tpu.memory_space<vmem>>, vector<1x8x128xf32>,
    %c3_78 = arith.constant 3 : index
    %c0_79 = arith.constant 0 : index
    %c0_80 = arith.constant 0 : index
    %219 = vector.load %arg11[%c3_78, %c0_79, %c0_80] : memref<8x8x512xf32, #tpu.memory_space<vmem>>, vector<1x8x512xf32>
    %220 = vector.shape_cast %219 : vector<1x8x512xf32> to vector<8x512xf32>
    %cst_81 = arith.constant dense<0.000000e+00> : vector<8x512xf32>
    %221 = tpu.matmul %194, %1, %cst_81 {dimension_numbers = #tpu.dot_dimension_numbers<[1], [0], [0], [1], [0, 0, 1, 1], [], []>} : vector<8x128xf32>, vector<128x512xf32>, vector<8x512xf32> -> vector<8x512xf32>
    %222 = arith.addf %220, %221 : vector<8x512xf32>
    %223 = vector.extract_strided_slice %222 {offsets = [0, 0], sizes = [8, 384], strides = [1, 1]} : vector<8x512xf32> to vector<8x384xf32>
    %cst_82 = arith.constant 5.000000e-01 : f32
    %224 = vector.broadcast %cst_82 : f32 to vector<8x384xf32>
    %225 = arith.mulf %224, %223 : vector<8x384xf32>
    %226 = math.tanh %225 : vector<8x384xf32>
    %cst_83 = arith.constant 5.000000e-01 : f32
    %227 = vector.broadcast %cst_83 : f32 to vector<8x384xf32>
    %228 = arith.mulf %227, %226 : vector<8x384xf32>
    %cst_84 = arith.constant 5.000000e-01 : f32
    %229 = vector.broadcast %cst_84 : f32 to vector<8x384xf32>
    %230 = arith.addf %228, %229 : vector<8x384xf32>
    %231 = vector.extract_strided_slice %230 {offsets = [0, 0], sizes = [8, 128], strides = [1, 1]} : vector<8x384xf32> to vector<8x128xf32>
    %232 = vector.extract_strided_slice %230 {offsets = [0, 128], sizes = [8, 128], strides = [1, 1]} : vector<8x384xf32> to vector<8x128xf32>
    %233 = vector.extract_strided_slice %230 {offsets = [0, 256], sizes = [8, 128], strides = [1, 1]} : vector<8x384xf32> to vector<8x128xf32>
    %234 = vector.extract_strided_slice %222 {offsets = [0, 384], sizes = [8, 128], strides = [1, 1]} : vector<8x512xf32> to vector<8x128xf32>
    %235 = math.tanh %234 : vector<8x128xf32>
    %236 = arith.mulf %232, %192 : vector<8x128xf32>
    %237 = arith.mulf %231, %235 : vector<8x128xf32>
    %238 = arith.addf %236, %237 : vector<8x128xf32>
    %239 = math.tanh %238 : vector<8x128xf32>
    %240 = arith.mulf %233, %239 : vector<8x128xf32>
    %241 = tpu.concatenate %240, %215 in 1 : vector<8x128xf32>, vector<8x128xf32> -> vector<8x256xf32>
    %cst_85 = arith.constant dense<0.000000e+00> : vector<8x512xf32>
    %242 = tpu.matmul %241, %3, %cst_85 {dimension_numbers = #tpu.dot_dimension_numbers<[1], [0], [0], [1], [0, 0, 1, 1], [], []>} : vector<8x256xf32>, vector<256x512xf32>, vector<8x512xf32> -> vector<8x512xf32>
    %243 = arith.addf %242, %8 : vector<8x512xf32>
    %244 = vector.extract_strided_slice %243 {offsets = [0, 0], sizes = [8, 384], strides = [1, 1]} : vector<8x512xf32> to vector<8x384xf32>
    %cst_86 = arith.constant 5.000000e-01 : f32
    %245 = vector.broadcast %cst_86 : f32 to vector<8x384xf32>
    %246 = arith.mulf %245, %244 : vector<8x384xf32>
    %247 = math.tanh %246 : vector<8x384xf32>
    %cst_87 = arith.constant 5.000000e-01 : f32
    %248 = vector.broadcast %cst_87 : f32 to vector<8x384xf32>
    %249 = arith.mulf %248, %247 : vector<8x384xf32>
    %cst_88 = arith.constant 5.000000e-01 : f32
    %250 = vector.broadcast %cst_88 : f32 to vector<8x384xf32>
    %251 = arith.addf %249, %250 : vector<8x384xf32>
    %252 = vector.extract_strided_slice %251 {offsets = [0, 0], sizes = [8, 128], strides = [1, 1]} : vector<8x384xf32> to vector<8x128xf32>
    %253 = vector.extract_strided_slice %251 {offsets = [0, 128], sizes = [8, 128], strides = [1, 1]} : vector<8x384xf32> to vector<8x128xf32>
    %254 = vector.extract_strided_slice %251 {offsets = [0, 256], sizes = [8, 128], strides = [1, 1]} : vector<8x384xf32> to vector<8x128xf32>
    %255 = vector.extract_strided_slice %243 {offsets = [0, 384], sizes = [8, 128], strides = [1, 1]} : vector<8x512xf32> to vector<8x128xf32>
    %256 = math.tanh %255 : vector<8x128xf32>
    %257 = arith.mulf %253, %213 : vector<8x128xf32>
    %258 = arith.mulf %252, %256 : vector<8x128xf32>
    %259 = arith.addf %257, %258 : vector<8x128xf32>
    %260 = math.tanh %259 : vector<8x128xf32>
    %261 = arith.mulf %254, %260 : vector<8x128xf32>
    %c3_89 = arith.constant 3 : index
    %c0_90 = arith.constant 0 : index
    %c0_91 = arith.constant 0 : index
    %262 = vector.load %arg12[%c3_89, %c0_90, %c0_91] : memref<12x8x128xf32, #tpu.memory_space<vmem>>, vector<1x8x128xf32>
    %263 = vector.shape_cast %262 : vector<1x8x128xf32> to vector<8x128xf32>
    %264 = vector.shape_cast %261 : vector<8x128xf32> to vector<1x8x128xf32>
    tpu.vector_store %arg12[%c3_89, %c0_90, %c0_91], %264 {strides = array<i32>} : memref<12x8x128xf32, #tpu.memory_space<vmem>>, vector<1x8x128xf32>,
    %c4_92 = arith.constant 4 : index
    %c0_93 = arith.constant 0 : index
    %c0_94 = arith.constant 0 : index
    %265 = vector.load %arg11[%c4_92, %c0_93, %c0_94] : memref<8x8x512xf32, #tpu.memory_space<vmem>>, vector<1x8x512xf32>
    %266 = vector.shape_cast %265 : vector<1x8x512xf32> to vector<8x512xf32>
    %cst_95 = arith.constant dense<0.000000e+00> : vector<8x512xf32>
    %267 = tpu.matmul %240, %1, %cst_95 {dimension_numbers = #tpu.dot_dimension_numbers<[1], [0], [0], [1], [0, 0, 1, 1], [], []>} : vector<8x128xf32>, vector<128x512xf32>, vector<8x512xf32> -> vector<8x512xf32>
    %268 = arith.addf %266, %267 : vector<8x512xf32>
    %269 = vector.extract_strided_slice %268 {offsets = [0, 0], sizes = [8, 384], strides = [1, 1]} : vector<8x512xf32> to vector<8x384xf32>
    %cst_96 = arith.constant 5.000000e-01 : f32
    %270 = vector.broadcast %cst_96 : f32 to vector<8x384xf32>
    %271 = arith.mulf %270, %269 : vector<8x384xf32>
    %272 = math.tanh %271 : vector<8x384xf32>
    %cst_97 = arith.constant 5.000000e-01 : f32
    %273 = vector.broadcast %cst_97 : f32 to vector<8x384xf32>
    %274 = arith.mulf %273, %272 : vector<8x384xf32>
    %cst_98 = arith.constant 5.000000e-01 : f32
    %275 = vector.broadcast %cst_98 : f32 to vector<8x384xf32>
    %276 = arith.addf %274, %275 : vector<8x384xf32>
    %277 = vector.extract_strided_slice %276 {offsets = [0, 0], sizes = [8, 128], strides = [1, 1]} : vector<8x384xf32> to vector<8x128xf32>
    %278 = vector.extract_strided_slice %276 {offsets = [0, 128], sizes = [8, 128], strides = [1, 1]} : vector<8x384xf32> to vector<8x128xf32>
    %279 = vector.extract_strided_slice %276 {offsets = [0, 256], sizes = [8, 128], strides = [1, 1]} : vector<8x384xf32> to vector<8x128xf32>
    %280 = vector.extract_strided_slice %268 {offsets = [0, 384], sizes = [8, 128], strides = [1, 1]} : vector<8x512xf32> to vector<8x128xf32>
    %281 = math.tanh %280 : vector<8x128xf32>
    %282 = arith.mulf %278, %238 : vector<8x128xf32>
    %283 = arith.mulf %277, %281 : vector<8x128xf32>
    %284 = arith.addf %282, %283 : vector<8x128xf32>
    %285 = math.tanh %284 : vector<8x128xf32>
    %286 = arith.mulf %279, %285 : vector<8x128xf32>
    %287 = tpu.concatenate %286, %261 in 1 : vector<8x128xf32>, vector<8x128xf32> -> vector<8x256xf32>
    %cst_99 = arith.constant dense<0.000000e+00> : vector<8x512xf32>
    %288 = tpu.matmul %287, %3, %cst_99 {dimension_numbers = #tpu.dot_dimension_numbers<[1], [0], [0], [1], [0, 0, 1, 1], [], []>} : vector<8x256xf32>, vector<256x512xf32>, vector<8x512xf32> -> vector<8x512xf32>
    %289 = arith.addf %288, %8 : vector<8x512xf32>
    %290 = vector.extract_strided_slice %289 {offsets = [0, 0], sizes = [8, 384], strides = [1, 1]} : vector<8x512xf32> to vector<8x384xf32>
    %cst_100 = arith.constant 5.000000e-01 : f32
    %291 = vector.broadcast %cst_100 : f32 to vector<8x384xf32>
    %292 = arith.mulf %291, %290 : vector<8x384xf32>
    %293 = math.tanh %292 : vector<8x384xf32>
    %cst_101 = arith.constant 5.000000e-01 : f32
    %294 = vector.broadcast %cst_101 : f32 to vector<8x384xf32>
    %295 = arith.mulf %294, %293 : vector<8x384xf32>
    %cst_102 = arith.constant 5.000000e-01 : f32
    %296 = vector.broadcast %cst_102 : f32 to vector<8x384xf32>
    %297 = arith.addf %295, %296 : vector<8x384xf32>
    %298 = vector.extract_strided_slice %297 {offsets = [0, 0], sizes = [8, 128], strides = [1, 1]} : vector<8x384xf32> to vector<8x128xf32>
    %299 = vector.extract_strided_slice %297 {offsets = [0, 128], sizes = [8, 128], strides = [1, 1]} : vector<8x384xf32> to vector<8x128xf32>
    %300 = vector.extract_strided_slice %297 {offsets = [0, 256], sizes = [8, 128], strides = [1, 1]} : vector<8x384xf32> to vector<8x128xf32>
    %301 = vector.extract_strided_slice %289 {offsets = [0, 384], sizes = [8, 128], strides = [1, 1]} : vector<8x512xf32> to vector<8x128xf32>
    %302 = math.tanh %301 : vector<8x128xf32>
    %303 = arith.mulf %299, %259 : vector<8x128xf32>
    %304 = arith.mulf %298, %302 : vector<8x128xf32>
    %305 = arith.addf %303, %304 : vector<8x128xf32>
    %306 = math.tanh %305 : vector<8x128xf32>
    %307 = arith.mulf %300, %306 : vector<8x128xf32>
    %c4_103 = arith.constant 4 : index
    %c0_104 = arith.constant 0 : index
    %c0_105 = arith.constant 0 : index
    %308 = vector.load %arg12[%c4_103, %c0_104, %c0_105] : memref<12x8x128xf32, #tpu.memory_space<vmem>>, vector<1x8x128xf32>
    %309 = vector.shape_cast %308 : vector<1x8x128xf32> to vector<8x128xf32>
    %310 = vector.shape_cast %307 : vector<8x128xf32> to vector<1x8x128xf32>
    tpu.vector_store %arg12[%c4_103, %c0_104, %c0_105], %310 {strides = array<i32>} : memref<12x8x128xf32, #tpu.memory_space<vmem>>, vector<1x8x128xf32>,
    %c5_106 = arith.constant 5 : index
    %c0_107 = arith.constant 0 : index
    %c0_108 = arith.constant 0 : index
    %311 = vector.load %arg11[%c5_106, %c0_107, %c0_108] : memref<8x8x512xf32, #tpu.memory_space<vmem>>, vector<1x8x512xf32>
    %312 = vector.shape_cast %311 : vector<1x8x512xf32> to vector<8x512xf32>
    %cst_109 = arith.constant dense<0.000000e+00> : vector<8x512xf32>
    %313 = tpu.matmul %286, %1, %cst_109 {dimension_numbers = #tpu.dot_dimension_numbers<[1], [0], [0], [1], [0, 0, 1, 1], [], []>} : vector<8x128xf32>, vector<128x512xf32>, vector<8x512xf32> -> vector<8x512xf32>
    %314 = arith.addf %312, %313 : vector<8x512xf32>
    %315 = vector.extract_strided_slice %314 {offsets = [0, 0], sizes = [8, 384], strides = [1, 1]} : vector<8x512xf32> to vector<8x384xf32>
    %cst_110 = arith.constant 5.000000e-01 : f32
    %316 = vector.broadcast %cst_110 : f32 to vector<8x384xf32>
    %317 = arith.mulf %316, %315 : vector<8x384xf32>
    %318 = math.tanh %317 : vector<8x384xf32>
    %cst_111 = arith.constant 5.000000e-01 : f32
    %319 = vector.broadcast %cst_111 : f32 to vector<8x384xf32>
    %320 = arith.mulf %319, %318 : vector<8x384xf32>
    %cst_112 = arith.constant 5.000000e-01 : f32
    %321 = vector.broadcast %cst_112 : f32 to vector<8x384xf32>
    %322 = arith.addf %320, %321 : vector<8x384xf32>
    %323 = vector.extract_strided_slice %322 {offsets = [0, 0], sizes = [8, 128], strides = [1, 1]} : vector<8x384xf32> to vector<8x128xf32>
    %324 = vector.extract_strided_slice %322 {offsets = [0, 128], sizes = [8, 128], strides = [1, 1]} : vector<8x384xf32> to vector<8x128xf32>
    %325 = vector.extract_strided_slice %322 {offsets = [0, 256], sizes = [8, 128], strides = [1, 1]} : vector<8x384xf32> to vector<8x128xf32>
    %326 = vector.extract_strided_slice %314 {offsets = [0, 384], sizes = [8, 128], strides = [1, 1]} : vector<8x512xf32> to vector<8x128xf32>
    %327 = math.tanh %326 : vector<8x128xf32>
    %328 = arith.mulf %324, %284 : vector<8x128xf32>
    %329 = arith.mulf %323, %327 : vector<8x128xf32>
    %330 = arith.addf %328, %329 : vector<8x128xf32>
    %331 = math.tanh %330 : vector<8x128xf32>
    %332 = arith.mulf %325, %331 : vector<8x128xf32>
    %333 = tpu.concatenate %332, %307 in 1 : vector<8x128xf32>, vector<8x128xf32> -> vector<8x256xf32>
    %cst_113 = arith.constant dense<0.000000e+00> : vector<8x512xf32>
    %334 = tpu.matmul %333, %3, %cst_113 {dimension_numbers = #tpu.dot_dimension_numbers<[1], [0], [0], [1], [0, 0, 1, 1], [], []>} : vector<8x256xf32>, vector<256x512xf32>, vector<8x512xf32> -> vector<8x512xf32>
    %335 = arith.addf %334, %8 : vector<8x512xf32>
    %336 = vector.extract_strided_slice %335 {offsets = [0, 0], sizes = [8, 384], strides = [1, 1]} : vector<8x512xf32> to vector<8x384xf32>
    %cst_114 = arith.constant 5.000000e-01 : f32
    %337 = vector.broadcast %cst_114 : f32 to vector<8x384xf32>
    %338 = arith.mulf %337, %336 : vector<8x384xf32>
    %339 = math.tanh %338 : vector<8x384xf32>
    %cst_115 = arith.constant 5.000000e-01 : f32
    %340 = vector.broadcast %cst_115 : f32 to vector<8x384xf32>
    %341 = arith.mulf %340, %339 : vector<8x384xf32>
    %cst_116 = arith.constant 5.000000e-01 : f32
    %342 = vector.broadcast %cst_116 : f32 to vector<8x384xf32>
    %343 = arith.addf %341, %342 : vector<8x384xf32>
    %344 = vector.extract_strided_slice %343 {offsets = [0, 0], sizes = [8, 128], strides = [1, 1]} : vector<8x384xf32> to vector<8x128xf32>
    %345 = vector.extract_strided_slice %343 {offsets = [0, 128], sizes = [8, 128], strides = [1, 1]} : vector<8x384xf32> to vector<8x128xf32>
    %346 = vector.extract_strided_slice %343 {offsets = [0, 256], sizes = [8, 128], strides = [1, 1]} : vector<8x384xf32> to vector<8x128xf32>
    %347 = vector.extract_strided_slice %335 {offsets = [0, 384], sizes = [8, 128], strides = [1, 1]} : vector<8x512xf32> to vector<8x128xf32>
    %348 = math.tanh %347 : vector<8x128xf32>
    %349 = arith.mulf %345, %305 : vector<8x128xf32>
    %350 = arith.mulf %344, %348 : vector<8x128xf32>
    %351 = arith.addf %349, %350 : vector<8x128xf32>
    %352 = math.tanh %351 : vector<8x128xf32>
    %353 = arith.mulf %346, %352 : vector<8x128xf32>
    %c5_117 = arith.constant 5 : index
    %c0_118 = arith.constant 0 : index
    %c0_119 = arith.constant 0 : index
    %354 = vector.load %arg12[%c5_117, %c0_118, %c0_119] : memref<12x8x128xf32, #tpu.memory_space<vmem>>, vector<1x8x128xf32>
    %355 = vector.shape_cast %354 : vector<1x8x128xf32> to vector<8x128xf32>
    %356 = vector.shape_cast %353 : vector<8x128xf32> to vector<1x8x128xf32>
    tpu.vector_store %arg12[%c5_117, %c0_118, %c0_119], %356 {strides = array<i32>} : memref<12x8x128xf32, #tpu.memory_space<vmem>>, vector<1x8x128xf32>,
    %c6_120 = arith.constant 6 : index
    %c0_121 = arith.constant 0 : index
    %c0_122 = arith.constant 0 : index
    %357 = vector.load %arg11[%c6_120, %c0_121, %c0_122] : memref<8x8x512xf32, #tpu.memory_space<vmem>>, vector<1x8x512xf32>
    %358 = vector.shape_cast %357 : vector<1x8x512xf32> to vector<8x512xf32>
    %cst_123 = arith.constant dense<0.000000e+00> : vector<8x512xf32>
    %359 = tpu.matmul %332, %1, %cst_123 {dimension_numbers = #tpu.dot_dimension_numbers<[1], [0], [0], [1], [0, 0, 1, 1], [], []>} : vector<8x128xf32>, vector<128x512xf32>, vector<8x512xf32> -> vector<8x512xf32>
    %360 = arith.addf %358, %359 : vector<8x512xf32>
    %361 = vector.extract_strided_slice %360 {offsets = [0, 0], sizes = [8, 384], strides = [1, 1]} : vector<8x512xf32> to vector<8x384xf32>
    %cst_124 = arith.constant 5.000000e-01 : f32
    %362 = vector.broadcast %cst_124 : f32 to vector<8x384xf32>
    %363 = arith.mulf %362, %361 : vector<8x384xf32>
    %364 = math.tanh %363 : vector<8x384xf32>
    %cst_125 = arith.constant 5.000000e-01 : f32
    %365 = vector.broadcast %cst_125 : f32 to vector<8x384xf32>
    %366 = arith.mulf %365, %364 : vector<8x384xf32>
    %cst_126 = arith.constant 5.000000e-01 : f32
    %367 = vector.broadcast %cst_126 : f32 to vector<8x384xf32>
    %368 = arith.addf %366, %367 : vector<8x384xf32>
    %369 = vector.extract_strided_slice %368 {offsets = [0, 0], sizes = [8, 128], strides = [1, 1]} : vector<8x384xf32> to vector<8x128xf32>
    %370 = vector.extract_strided_slice %368 {offsets = [0, 128], sizes = [8, 128], strides = [1, 1]} : vector<8x384xf32> to vector<8x128xf32>
    %371 = vector.extract_strided_slice %368 {offsets = [0, 256], sizes = [8, 128], strides = [1, 1]} : vector<8x384xf32> to vector<8x128xf32>
    %372 = vector.extract_strided_slice %360 {offsets = [0, 384], sizes = [8, 128], strides = [1, 1]} : vector<8x512xf32> to vector<8x128xf32>
    %373 = math.tanh %372 : vector<8x128xf32>
    %374 = arith.mulf %370, %330 : vector<8x128xf32>
    %375 = arith.mulf %369, %373 : vector<8x128xf32>
    %376 = arith.addf %374, %375 : vector<8x128xf32>
    %377 = math.tanh %376 : vector<8x128xf32>
    %378 = arith.mulf %371, %377 : vector<8x128xf32>
    %379 = tpu.concatenate %378, %353 in 1 : vector<8x128xf32>, vector<8x128xf32> -> vector<8x256xf32>
    %cst_127 = arith.constant dense<0.000000e+00> : vector<8x512xf32>
    %380 = tpu.matmul %379, %3, %cst_127 {dimension_numbers = #tpu.dot_dimension_numbers<[1], [0], [0], [1], [0, 0, 1, 1], [], []>} : vector<8x256xf32>, vector<256x512xf32>, vector<8x512xf32> -> vector<8x512xf32>
    %381 = arith.addf %380, %8 : vector<8x512xf32>
    %382 = vector.extract_strided_slice %381 {offsets = [0, 0], sizes = [8, 384], strides = [1, 1]} : vector<8x512xf32> to vector<8x384xf32>
    %cst_128 = arith.constant 5.000000e-01 : f32
    %383 = vector.broadcast %cst_128 : f32 to vector<8x384xf32>
    %384 = arith.mulf %383, %382 : vector<8x384xf32>
    %385 = math.tanh %384 : vector<8x384xf32>
    %cst_129 = arith.constant 5.000000e-01 : f32
    %386 = vector.broadcast %cst_129 : f32 to vector<8x384xf32>
    %387 = arith.mulf %386, %385 : vector<8x384xf32>
    %cst_130 = arith.constant 5.000000e-01 : f32
    %388 = vector.broadcast %cst_130 : f32 to vector<8x384xf32>
    %389 = arith.addf %387, %388 : vector<8x384xf32>
    %390 = vector.extract_strided_slice %389 {offsets = [0, 0], sizes = [8, 128], strides = [1, 1]} : vector<8x384xf32> to vector<8x128xf32>
    %391 = vector.extract_strided_slice %389 {offsets = [0, 128], sizes = [8, 128], strides = [1, 1]} : vector<8x384xf32> to vector<8x128xf32>
    %392 = vector.extract_strided_slice %389 {offsets = [0, 256], sizes = [8, 128], strides = [1, 1]} : vector<8x384xf32> to vector<8x128xf32>
    %393 = vector.extract_strided_slice %381 {offsets = [0, 384], sizes = [8, 128], strides = [1, 1]} : vector<8x512xf32> to vector<8x128xf32>
    %394 = math.tanh %393 : vector<8x128xf32>
    %395 = arith.mulf %391, %351 : vector<8x128xf32>
    %396 = arith.mulf %390, %394 : vector<8x128xf32>
    %397 = arith.addf %395, %396 : vector<8x128xf32>
    %398 = math.tanh %397 : vector<8x128xf32>
    %399 = arith.mulf %392, %398 : vector<8x128xf32>
    %c6_131 = arith.constant 6 : index
    %c0_132 = arith.constant 0 : index
    %c0_133 = arith.constant 0 : index
    %400 = vector.load %arg12[%c6_131, %c0_132, %c0_133] : memref<12x8x128xf32, #tpu.memory_space<vmem>>, vector<1x8x128xf32>
    %401 = vector.shape_cast %400 : vector<1x8x128xf32> to vector<8x128xf32>
    %402 = vector.shape_cast %399 : vector<8x128xf32> to vector<1x8x128xf32>
    tpu.vector_store %arg12[%c6_131, %c0_132, %c0_133], %402 {strides = array<i32>} : memref<12x8x128xf32, #tpu.memory_space<vmem>>, vector<1x8x128xf32>,
    %c7_134 = arith.constant 7 : index
    %c0_135 = arith.constant 0 : index
    %c0_136 = arith.constant 0 : index
    %403 = vector.load %arg11[%c7_134, %c0_135, %c0_136] : memref<8x8x512xf32, #tpu.memory_space<vmem>>, vector<1x8x512xf32>
    %404 = vector.shape_cast %403 : vector<1x8x512xf32> to vector<8x512xf32>
    %cst_137 = arith.constant dense<0.000000e+00> : vector<8x512xf32>
    %405 = tpu.matmul %378, %1, %cst_137 {dimension_numbers = #tpu.dot_dimension_numbers<[1], [0], [0], [1], [0, 0, 1, 1], [], []>} : vector<8x128xf32>, vector<128x512xf32>, vector<8x512xf32> -> vector<8x512xf32>
    %406 = arith.addf %404, %405 : vector<8x512xf32>
    %407 = vector.extract_strided_slice %406 {offsets = [0, 0], sizes = [8, 384], strides = [1, 1]} : vector<8x512xf32> to vector<8x384xf32>
    %cst_138 = arith.constant 5.000000e-01 : f32
    %408 = vector.broadcast %cst_138 : f32 to vector<8x384xf32>
    %409 = arith.mulf %408, %407 : vector<8x384xf32>
    %410 = math.tanh %409 : vector<8x384xf32>
    %cst_139 = arith.constant 5.000000e-01 : f32
    %411 = vector.broadcast %cst_139 : f32 to vector<8x384xf32>
    %412 = arith.mulf %411, %410 : vector<8x384xf32>
    %cst_140 = arith.constant 5.000000e-01 : f32
    %413 = vector.broadcast %cst_140 : f32 to vector<8x384xf32>
    %414 = arith.addf %412, %413 : vector<8x384xf32>
    %415 = vector.extract_strided_slice %414 {offsets = [0, 0], sizes = [8, 128], strides = [1, 1]} : vector<8x384xf32> to vector<8x128xf32>
    %416 = vector.extract_strided_slice %414 {offsets = [0, 128], sizes = [8, 128], strides = [1, 1]} : vector<8x384xf32> to vector<8x128xf32>
    %417 = vector.extract_strided_slice %414 {offsets = [0, 256], sizes = [8, 128], strides = [1, 1]} : vector<8x384xf32> to vector<8x128xf32>
    %418 = vector.extract_strided_slice %406 {offsets = [0, 384], sizes = [8, 128], strides = [1, 1]} : vector<8x512xf32> to vector<8x128xf32>
    %419 = math.tanh %418 : vector<8x128xf32>
    %420 = arith.mulf %416, %376 : vector<8x128xf32>
    %421 = arith.mulf %415, %419 : vector<8x128xf32>
    %422 = arith.addf %420, %421 : vector<8x128xf32>
    %423 = math.tanh %422 : vector<8x128xf32>
    %424 = arith.mulf %417, %423 : vector<8x128xf32>
    %425 = tpu.concatenate %424, %399 in 1 : vector<8x128xf32>, vector<8x128xf32> -> vector<8x256xf32>
    %cst_141 = arith.constant dense<0.000000e+00> : vector<8x512xf32>
    %426 = tpu.matmul %425, %3, %cst_141 {dimension_numbers = #tpu.dot_dimension_numbers<[1], [0], [0], [1], [0, 0, 1, 1], [], []>} : vector<8x256xf32>, vector<256x512xf32>, vector<8x512xf32> -> vector<8x512xf32>
    %427 = arith.addf %426, %8 : vector<8x512xf32>
    %428 = vector.extract_strided_slice %427 {offsets = [0, 0], sizes = [8, 384], strides = [1, 1]} : vector<8x512xf32> to vector<8x384xf32>
    %cst_142 = arith.constant 5.000000e-01 : f32
    %429 = vector.broadcast %cst_142 : f32 to vector<8x384xf32>
    %430 = arith.mulf %429, %428 : vector<8x384xf32>
    %431 = math.tanh %430 : vector<8x384xf32>
    %cst_143 = arith.constant 5.000000e-01 : f32
    %432 = vector.broadcast %cst_143 : f32 to vector<8x384xf32>
    %433 = arith.mulf %432, %431 : vector<8x384xf32>
    %cst_144 = arith.constant 5.000000e-01 : f32
    %434 = vector.broadcast %cst_144 : f32 to vector<8x384xf32>
    %435 = arith.addf %433, %434 : vector<8x384xf32>
    %436 = vector.extract_strided_slice %435 {offsets = [0, 0], sizes = [8, 128], strides = [1, 1]} : vector<8x384xf32> to vector<8x128xf32>
    %437 = vector.extract_strided_slice %435 {offsets = [0, 128], sizes = [8, 128], strides = [1, 1]} : vector<8x384xf32> to vector<8x128xf32>
    %438 = vector.extract_strided_slice %435 {offsets = [0, 256], sizes = [8, 128], strides = [1, 1]} : vector<8x384xf32> to vector<8x128xf32>
    %439 = vector.extract_strided_slice %427 {offsets = [0, 384], sizes = [8, 128], strides = [1, 1]} : vector<8x512xf32> to vector<8x128xf32>
    %440 = math.tanh %439 : vector<8x128xf32>
    %441 = arith.mulf %437, %397 : vector<8x128xf32>
    %442 = arith.mulf %436, %440 : vector<8x128xf32>
    %443 = arith.addf %441, %442 : vector<8x128xf32>
    %444 = math.tanh %443 : vector<8x128xf32>
    %445 = arith.mulf %438, %444 : vector<8x128xf32>
    %c7_145 = arith.constant 7 : index
    %c0_146 = arith.constant 0 : index
    %c0_147 = arith.constant 0 : index
    %446 = vector.load %arg12[%c7_145, %c0_146, %c0_147] : memref<12x8x128xf32, #tpu.memory_space<vmem>>, vector<1x8x128xf32>
    %447 = vector.shape_cast %446 : vector<1x8x128xf32> to vector<8x128xf32>
    %448 = vector.shape_cast %445 : vector<8x128xf32> to vector<1x8x128xf32>
    tpu.vector_store %arg12[%c7_145, %c0_146, %c0_147], %448 {strides = array<i32>} : memref<12x8x128xf32, #tpu.memory_space<vmem>>, vector<1x8x128xf32>,
    %449 = tpu.concatenate %424, %445 in 1 : vector<8x128xf32>, vector<8x128xf32> -> vector<8x256xf32>
    %cst_148 = arith.constant dense<0.000000e+00> : vector<8x512xf32>
    %450 = tpu.matmul %449, %2, %cst_148 {dimension_numbers = #tpu.dot_dimension_numbers<[1], [0], [0], [1], [0, 0, 1, 1], [], []>} : vector<8x256xf32>, vector<256x512xf32>, vector<8x512xf32> -> vector<8x512xf32>
    %451 = arith.addf %450, %11 : vector<8x512xf32>
    %452 = vector.extract_strided_slice %451 {offsets = [0, 0], sizes = [8, 384], strides = [1, 1]} : vector<8x512xf32> to vector<8x384xf32>
    %cst_149 = arith.constant 5.000000e-01 : f32
    %453 = vector.broadcast %cst_149 : f32 to vector<8x384xf32>
    %454 = arith.mulf %453, %452 : vector<8x384xf32>
    %455 = math.tanh %454 : vector<8x384xf32>
    %cst_150 = arith.constant 5.000000e-01 : f32
    %456 = vector.broadcast %cst_150 : f32 to vector<8x384xf32>
    %457 = arith.mulf %456, %455 : vector<8x384xf32>
    %cst_151 = arith.constant 5.000000e-01 : f32
    %458 = vector.broadcast %cst_151 : f32 to vector<8x384xf32>
    %459 = arith.addf %457, %458 : vector<8x384xf32>
    %460 = vector.extract_strided_slice %459 {offsets = [0, 0], sizes = [8, 128], strides = [1, 1]} : vector<8x384xf32> to vector<8x128xf32>
    %461 = vector.extract_strided_slice %459 {offsets = [0, 128], sizes = [8, 128], strides = [1, 1]} : vector<8x384xf32> to vector<8x128xf32>
    %462 = vector.extract_strided_slice %459 {offsets = [0, 256], sizes = [8, 128], strides = [1, 1]} : vector<8x384xf32> to vector<8x128xf32>
    %463 = vector.extract_strided_slice %451 {offsets = [0, 384], sizes = [8, 128], strides = [1, 1]} : vector<8x512xf32> to vector<8x128xf32>
    %464 = math.tanh %463 : vector<8x128xf32>
    %465 = arith.mulf %461, %422 : vector<8x128xf32>
    %466 = arith.mulf %460, %464 : vector<8x128xf32>
    %467 = arith.addf %465, %466 : vector<8x128xf32>
    %468 = math.tanh %467 : vector<8x128xf32>
    %469 = arith.mulf %462, %468 : vector<8x128xf32>
    %470 = tpu.concatenate %469, %445 in 1 : vector<8x128xf32>, vector<8x128xf32> -> vector<8x256xf32>
    %cst_152 = arith.constant dense<0.000000e+00> : vector<8x512xf32>
    %471 = tpu.matmul %470, %3, %cst_152 {dimension_numbers = #tpu.dot_dimension_numbers<[1], [0], [0], [1], [0, 0, 1, 1], [], []>} : vector<8x256xf32>, vector<256x512xf32>, vector<8x512xf32> -> vector<8x512xf32>
    %472 = arith.addf %471, %8 : vector<8x512xf32>
    %473 = vector.extract_strided_slice %472 {offsets = [0, 0], sizes = [8, 384], strides = [1, 1]} : vector<8x512xf32> to vector<8x384xf32>
    %cst_153 = arith.constant 5.000000e-01 : f32
    %474 = vector.broadcast %cst_153 : f32 to vector<8x384xf32>
    %475 = arith.mulf %474, %473 : vector<8x384xf32>
    %476 = math.tanh %475 : vector<8x384xf32>
    %cst_154 = arith.constant 5.000000e-01 : f32
    %477 = vector.broadcast %cst_154 : f32 to vector<8x384xf32>
    %478 = arith.mulf %477, %476 : vector<8x384xf32>
    %cst_155 = arith.constant 5.000000e-01 : f32
    %479 = vector.broadcast %cst_155 : f32 to vector<8x384xf32>
    %480 = arith.addf %478, %479 : vector<8x384xf32>
    %481 = vector.extract_strided_slice %480 {offsets = [0, 0], sizes = [8, 128], strides = [1, 1]} : vector<8x384xf32> to vector<8x128xf32>
    %482 = vector.extract_strided_slice %480 {offsets = [0, 128], sizes = [8, 128], strides = [1, 1]} : vector<8x384xf32> to vector<8x128xf32>
    %483 = vector.extract_strided_slice %480 {offsets = [0, 256], sizes = [8, 128], strides = [1, 1]} : vector<8x384xf32> to vector<8x128xf32>
    %484 = vector.extract_strided_slice %472 {offsets = [0, 384], sizes = [8, 128], strides = [1, 1]} : vector<8x512xf32> to vector<8x128xf32>
    %485 = math.tanh %484 : vector<8x128xf32>
    %486 = arith.mulf %482, %443 : vector<8x128xf32>
    %487 = arith.mulf %481, %485 : vector<8x128xf32>
    %488 = arith.addf %486, %487 : vector<8x128xf32>
    %489 = math.tanh %488 : vector<8x128xf32>
    %490 = arith.mulf %483, %489 : vector<8x128xf32>
    %c8 = arith.constant 8 : index
    %c0_156 = arith.constant 0 : index
    %c0_157 = arith.constant 0 : index
    %491 = vector.load %arg12[%c8, %c0_156, %c0_157] : memref<12x8x128xf32, #tpu.memory_space<vmem>>, vector<1x8x128xf32>
    %492 = vector.shape_cast %491 : vector<1x8x128xf32> to vector<8x128xf32>
    %493 = vector.shape_cast %490 : vector<8x128xf32> to vector<1x8x128xf32>
    tpu.vector_store %arg12[%c8, %c0_156, %c0_157], %493 {strides = array<i32>} : memref<12x8x128xf32, #tpu.memory_space<vmem>>, vector<1x8x128xf32>,
    %494 = tpu.concatenate %469, %490 in 1 : vector<8x128xf32>, vector<8x128xf32> -> vector<8x256xf32>
    %cst_158 = arith.constant dense<0.000000e+00> : vector<8x512xf32>
    %495 = tpu.matmul %494, %2, %cst_158 {dimension_numbers = #tpu.dot_dimension_numbers<[1], [0], [0], [1], [0, 0, 1, 1], [], []>} : vector<8x256xf32>, vector<256x512xf32>, vector<8x512xf32> -> vector<8x512xf32>
    %496 = arith.addf %495, %11 : vector<8x512xf32>
    %497 = vector.extract_strided_slice %496 {offsets = [0, 0], sizes = [8, 384], strides = [1, 1]} : vector<8x512xf32> to vector<8x384xf32>
    %cst_159 = arith.constant 5.000000e-01 : f32
    %498 = vector.broadcast %cst_159 : f32 to vector<8x384xf32>
    %499 = arith.mulf %498, %497 : vector<8x384xf32>
    %500 = math.tanh %499 : vector<8x384xf32>
    %cst_160 = arith.constant 5.000000e-01 : f32
    %501 = vector.broadcast %cst_160 : f32 to vector<8x384xf32>
    %502 = arith.mulf %501, %500 : vector<8x384xf32>
    %cst_161 = arith.constant 5.000000e-01 : f32
    %503 = vector.broadcast %cst_161 : f32 to vector<8x384xf32>
    %504 = arith.addf %502, %503 : vector<8x384xf32>
    %505 = vector.extract_strided_slice %504 {offsets = [0, 0], sizes = [8, 128], strides = [1, 1]} : vector<8x384xf32> to vector<8x128xf32>
    %506 = vector.extract_strided_slice %504 {offsets = [0, 128], sizes = [8, 128], strides = [1, 1]} : vector<8x384xf32> to vector<8x128xf32>
    %507 = vector.extract_strided_slice %504 {offsets = [0, 256], sizes = [8, 128], strides = [1, 1]} : vector<8x384xf32> to vector<8x128xf32>
    %508 = vector.extract_strided_slice %496 {offsets = [0, 384], sizes = [8, 128], strides = [1, 1]} : vector<8x512xf32> to vector<8x128xf32>
    %509 = math.tanh %508 : vector<8x128xf32>
    %510 = arith.mulf %506, %467 : vector<8x128xf32>
    %511 = arith.mulf %505, %509 : vector<8x128xf32>
    %512 = arith.addf %510, %511 : vector<8x128xf32>
    %513 = math.tanh %512 : vector<8x128xf32>
    %514 = arith.mulf %507, %513 : vector<8x128xf32>
    %515 = tpu.concatenate %514, %490 in 1 : vector<8x128xf32>, vector<8x128xf32> -> vector<8x256xf32>
    %cst_162 = arith.constant dense<0.000000e+00> : vector<8x512xf32>
    %516 = tpu.matmul %515, %3, %cst_162 {dimension_numbers = #tpu.dot_dimension_numbers<[1], [0], [0], [1], [0, 0, 1, 1], [], []>} : vector<8x256xf32>, vector<256x512xf32>, vector<8x512xf32> -> vector<8x512xf32>
    %517 = arith.addf %516, %8 : vector<8x512xf32>
    %518 = vector.extract_strided_slice %517 {offsets = [0, 0], sizes = [8, 384], strides = [1, 1]} : vector<8x512xf32> to vector<8x384xf32>
    %cst_163 = arith.constant 5.000000e-01 : f32
    %519 = vector.broadcast %cst_163 : f32 to vector<8x384xf32>
    %520 = arith.mulf %519, %518 : vector<8x384xf32>
    %521 = math.tanh %520 : vector<8x384xf32>
    %cst_164 = arith.constant 5.000000e-01 : f32
    %522 = vector.broadcast %cst_164 : f32 to vector<8x384xf32>
    %523 = arith.mulf %522, %521 : vector<8x384xf32>
    %cst_165 = arith.constant 5.000000e-01 : f32
    %524 = vector.broadcast %cst_165 : f32 to vector<8x384xf32>
    %525 = arith.addf %523, %524 : vector<8x384xf32>
    %526 = vector.extract_strided_slice %525 {offsets = [0, 0], sizes = [8, 128], strides = [1, 1]} : vector<8x384xf32> to vector<8x128xf32>
    %527 = vector.extract_strided_slice %525 {offsets = [0, 128], sizes = [8, 128], strides = [1, 1]} : vector<8x384xf32> to vector<8x128xf32>
    %528 = vector.extract_strided_slice %525 {offsets = [0, 256], sizes = [8, 128], strides = [1, 1]} : vector<8x384xf32> to vector<8x128xf32>
    %529 = vector.extract_strided_slice %517 {offsets = [0, 384], sizes = [8, 128], strides = [1, 1]} : vector<8x512xf32> to vector<8x128xf32>
    %530 = math.tanh %529 : vector<8x128xf32>
    %531 = arith.mulf %527, %488 : vector<8x128xf32>
    %532 = arith.mulf %526, %530 : vector<8x128xf32>
    %533 = arith.addf %531, %532 : vector<8x128xf32>
    %534 = math.tanh %533 : vector<8x128xf32>
    %535 = arith.mulf %528, %534 : vector<8x128xf32>
    %c9 = arith.constant 9 : index
    %c0_166 = arith.constant 0 : index
    %c0_167 = arith.constant 0 : index
    %536 = vector.load %arg12[%c9, %c0_166, %c0_167] : memref<12x8x128xf32, #tpu.memory_space<vmem>>, vector<1x8x128xf32>
    %537 = vector.shape_cast %536 : vector<1x8x128xf32> to vector<8x128xf32>
    %538 = vector.shape_cast %535 : vector<8x128xf32> to vector<1x8x128xf32>
    tpu.vector_store %arg12[%c9, %c0_166, %c0_167], %538 {strides = array<i32>} : memref<12x8x128xf32, #tpu.memory_space<vmem>>, vector<1x8x128xf32>,
    %539 = tpu.concatenate %514, %535 in 1 : vector<8x128xf32>, vector<8x128xf32> -> vector<8x256xf32>
    %cst_168 = arith.constant dense<0.000000e+00> : vector<8x512xf32>
    %540 = tpu.matmul %539, %2, %cst_168 {dimension_numbers = #tpu.dot_dimension_numbers<[1], [0], [0], [1], [0, 0, 1, 1], [], []>} : vector<8x256xf32>, vector<256x512xf32>, vector<8x512xf32> -> vector<8x512xf32>
    %541 = arith.addf %540, %11 : vector<8x512xf32>
    %542 = vector.extract_strided_slice %541 {offsets = [0, 0], sizes = [8, 384], strides = [1, 1]} : vector<8x512xf32> to vector<8x384xf32>
    %cst_169 = arith.constant 5.000000e-01 : f32
    %543 = vector.broadcast %cst_169 : f32 to vector<8x384xf32>
    %544 = arith.mulf %543, %542 : vector<8x384xf32>
    %545 = math.tanh %544 : vector<8x384xf32>
    %cst_170 = arith.constant 5.000000e-01 : f32
    %546 = vector.broadcast %cst_170 : f32 to vector<8x384xf32>
    %547 = arith.mulf %546, %545 : vector<8x384xf32>
    %cst_171 = arith.constant 5.000000e-01 : f32
    %548 = vector.broadcast %cst_171 : f32 to vector<8x384xf32>
    %549 = arith.addf %547, %548 : vector<8x384xf32>
    %550 = vector.extract_strided_slice %549 {offsets = [0, 0], sizes = [8, 128], strides = [1, 1]} : vector<8x384xf32> to vector<8x128xf32>
    %551 = vector.extract_strided_slice %549 {offsets = [0, 128], sizes = [8, 128], strides = [1, 1]} : vector<8x384xf32> to vector<8x128xf32>
    %552 = vector.extract_strided_slice %549 {offsets = [0, 256], sizes = [8, 128], strides = [1, 1]} : vector<8x384xf32> to vector<8x128xf32>
    %553 = vector.extract_strided_slice %541 {offsets = [0, 384], sizes = [8, 128], strides = [1, 1]} : vector<8x512xf32> to vector<8x128xf32>
    %554 = math.tanh %553 : vector<8x128xf32>
    %555 = arith.mulf %551, %512 : vector<8x128xf32>
    %556 = arith.mulf %550, %554 : vector<8x128xf32>
    %557 = arith.addf %555, %556 : vector<8x128xf32>
    %558 = math.tanh %557 : vector<8x128xf32>
    %559 = arith.mulf %552, %558 : vector<8x128xf32>
    %560 = tpu.concatenate %559, %535 in 1 : vector<8x128xf32>, vector<8x128xf32> -> vector<8x256xf32>
    %cst_172 = arith.constant dense<0.000000e+00> : vector<8x512xf32>
    %561 = tpu.matmul %560, %3, %cst_172 {dimension_numbers = #tpu.dot_dimension_numbers<[1], [0], [0], [1], [0, 0, 1, 1], [], []>} : vector<8x256xf32>, vector<256x512xf32>, vector<8x512xf32> -> vector<8x512xf32>
    %562 = arith.addf %561, %8 : vector<8x512xf32>
    %563 = vector.extract_strided_slice %562 {offsets = [0, 0], sizes = [8, 384], strides = [1, 1]} : vector<8x512xf32> to vector<8x384xf32>
    %cst_173 = arith.constant 5.000000e-01 : f32
    %564 = vector.broadcast %cst_173 : f32 to vector<8x384xf32>
    %565 = arith.mulf %564, %563 : vector<8x384xf32>
    %566 = math.tanh %565 : vector<8x384xf32>
    %cst_174 = arith.constant 5.000000e-01 : f32
    %567 = vector.broadcast %cst_174 : f32 to vector<8x384xf32>
    %568 = arith.mulf %567, %566 : vector<8x384xf32>
    %cst_175 = arith.constant 5.000000e-01 : f32
    %569 = vector.broadcast %cst_175 : f32 to vector<8x384xf32>
    %570 = arith.addf %568, %569 : vector<8x384xf32>
    %571 = vector.extract_strided_slice %570 {offsets = [0, 0], sizes = [8, 128], strides = [1, 1]} : vector<8x384xf32> to vector<8x128xf32>
    %572 = vector.extract_strided_slice %570 {offsets = [0, 128], sizes = [8, 128], strides = [1, 1]} : vector<8x384xf32> to vector<8x128xf32>
    %573 = vector.extract_strided_slice %570 {offsets = [0, 256], sizes = [8, 128], strides = [1, 1]} : vector<8x384xf32> to vector<8x128xf32>
    %574 = vector.extract_strided_slice %562 {offsets = [0, 384], sizes = [8, 128], strides = [1, 1]} : vector<8x512xf32> to vector<8x128xf32>
    %575 = math.tanh %574 : vector<8x128xf32>
    %576 = arith.mulf %572, %533 : vector<8x128xf32>
    %577 = arith.mulf %571, %575 : vector<8x128xf32>
    %578 = arith.addf %576, %577 : vector<8x128xf32>
    %579 = math.tanh %578 : vector<8x128xf32>
    %580 = arith.mulf %573, %579 : vector<8x128xf32>
    %c10 = arith.constant 10 : index
    %c0_176 = arith.constant 0 : index
    %c0_177 = arith.constant 0 : index
    %581 = vector.load %arg12[%c10, %c0_176, %c0_177] : memref<12x8x128xf32, #tpu.memory_space<vmem>>, vector<1x8x128xf32>
    %582 = vector.shape_cast %581 : vector<1x8x128xf32> to vector<8x128xf32>
    %583 = vector.shape_cast %580 : vector<8x128xf32> to vector<1x8x128xf32>
    tpu.vector_store %arg12[%c10, %c0_176, %c0_177], %583 {strides = array<i32>} : memref<12x8x128xf32, #tpu.memory_space<vmem>>, vector<1x8x128xf32>,
    %584 = tpu.concatenate %559, %580 in 1 : vector<8x128xf32>, vector<8x128xf32> -> vector<8x256xf32>
    %cst_178 = arith.constant dense<0.000000e+00> : vector<8x512xf32>
    %585 = tpu.matmul %584, %2, %cst_178 {dimension_numbers = #tpu.dot_dimension_numbers<[1], [0], [0], [1], [0, 0, 1, 1], [], []>} : vector<8x256xf32>, vector<256x512xf32>, vector<8x512xf32> -> vector<8x512xf32>
    %586 = arith.addf %585, %11 : vector<8x512xf32>
    %587 = vector.extract_strided_slice %586 {offsets = [0, 0], sizes = [8, 384], strides = [1, 1]} : vector<8x512xf32> to vector<8x384xf32>
    %cst_179 = arith.constant 5.000000e-01 : f32
    %588 = vector.broadcast %cst_179 : f32 to vector<8x384xf32>
    %589 = arith.mulf %588, %587 : vector<8x384xf32>
    %590 = math.tanh %589 : vector<8x384xf32>
    %cst_180 = arith.constant 5.000000e-01 : f32
    %591 = vector.broadcast %cst_180 : f32 to vector<8x384xf32>
    %592 = arith.mulf %591, %590 : vector<8x384xf32>
    %cst_181 = arith.constant 5.000000e-01 : f32
    %593 = vector.broadcast %cst_181 : f32 to vector<8x384xf32>
    %594 = arith.addf %592, %593 : vector<8x384xf32>
    %595 = vector.extract_strided_slice %594 {offsets = [0, 0], sizes = [8, 128], strides = [1, 1]} : vector<8x384xf32> to vector<8x128xf32>
    %596 = vector.extract_strided_slice %594 {offsets = [0, 128], sizes = [8, 128], strides = [1, 1]} : vector<8x384xf32> to vector<8x128xf32>
    %597 = vector.extract_strided_slice %594 {offsets = [0, 256], sizes = [8, 128], strides = [1, 1]} : vector<8x384xf32> to vector<8x128xf32>
    %598 = vector.extract_strided_slice %586 {offsets = [0, 384], sizes = [8, 128], strides = [1, 1]} : vector<8x512xf32> to vector<8x128xf32>
    %599 = math.tanh %598 : vector<8x128xf32>
    %600 = arith.mulf %596, %557 : vector<8x128xf32>
    %601 = arith.mulf %595, %599 : vector<8x128xf32>
    %602 = arith.addf %600, %601 : vector<8x128xf32>
    %603 = math.tanh %602 : vector<8x128xf32>
    %604 = arith.mulf %597, %603 : vector<8x128xf32>
    %605 = tpu.concatenate %604, %580 in 1 : vector<8x128xf32>, vector<8x128xf32> -> vector<8x256xf32>
    %cst_182 = arith.constant dense<0.000000e+00> : vector<8x512xf32>
    %606 = tpu.matmul %605, %3, %cst_182 {dimension_numbers = #tpu.dot_dimension_numbers<[1], [0], [0], [1], [0, 0, 1, 1], [], []>} : vector<8x256xf32>, vector<256x512xf32>, vector<8x512xf32> -> vector<8x512xf32>
    %607 = arith.addf %606, %8 : vector<8x512xf32>
    %608 = vector.extract_strided_slice %607 {offsets = [0, 0], sizes = [8, 384], strides = [1, 1]} : vector<8x512xf32> to vector<8x384xf32>
    %cst_183 = arith.constant 5.000000e-01 : f32
    %609 = vector.broadcast %cst_183 : f32 to vector<8x384xf32>
    %610 = arith.mulf %609, %608 : vector<8x384xf32>
    %611 = math.tanh %610 : vector<8x384xf32>
    %cst_184 = arith.constant 5.000000e-01 : f32
    %612 = vector.broadcast %cst_184 : f32 to vector<8x384xf32>
    %613 = arith.mulf %612, %611 : vector<8x384xf32>
    %cst_185 = arith.constant 5.000000e-01 : f32
    %614 = vector.broadcast %cst_185 : f32 to vector<8x384xf32>
    %615 = arith.addf %613, %614 : vector<8x384xf32>
    %616 = vector.extract_strided_slice %615 {offsets = [0, 0], sizes = [8, 128], strides = [1, 1]} : vector<8x384xf32> to vector<8x128xf32>
    %617 = vector.extract_strided_slice %615 {offsets = [0, 128], sizes = [8, 128], strides = [1, 1]} : vector<8x384xf32> to vector<8x128xf32>
    %618 = vector.extract_strided_slice %615 {offsets = [0, 256], sizes = [8, 128], strides = [1, 1]} : vector<8x384xf32> to vector<8x128xf32>
    %619 = vector.extract_strided_slice %607 {offsets = [0, 384], sizes = [8, 128], strides = [1, 1]} : vector<8x512xf32> to vector<8x128xf32>
    %620 = math.tanh %619 : vector<8x128xf32>
    %621 = arith.mulf %617, %578 : vector<8x128xf32>
    %622 = arith.mulf %616, %620 : vector<8x128xf32>
    %623 = arith.addf %621, %622 : vector<8x128xf32>
    %624 = math.tanh %623 : vector<8x128xf32>
    %625 = arith.mulf %618, %624 : vector<8x128xf32>
    %c11 = arith.constant 11 : index
    %c0_186 = arith.constant 0 : index
    %c0_187 = arith.constant 0 : index
    %626 = vector.load %arg12[%c11, %c0_186, %c0_187] : memref<12x8x128xf32, #tpu.memory_space<vmem>>, vector<1x8x128xf32>
    %627 = vector.shape_cast %626 : vector<1x8x128xf32> to vector<8x128xf32>
    %628 = vector.shape_cast %625 : vector<8x128xf32> to vector<1x8x128xf32>
    tpu.vector_store %arg12[%c11, %c0_186, %c0_187], %628 {strides = array<i32>} : memref<12x8x128xf32, #tpu.memory_space<vmem>>, vector<1x8x128xf32>,
    %629 = vector.shape_cast %4 : vector<1x128xf32> to vector<1x128xf32>
    %630 = vector.broadcast %629 : vector<1x128xf32> to vector<8x128xf32>
    %631 = tpu.iota {dimensions = array<i32: 1>} : vector<1x128xi32>
    %cst_188 = arith.constant 0.000000e+00 : f32
    %632 = vector.broadcast %cst_188 : f32 to vector<8x128xf32>
    %c0_189 = arith.constant 0 : index
    %c0_190 = arith.constant 0 : index
    %c0_191 = arith.constant 0 : index
    %633 = vector.load %arg12[%c0_189, %c0_190, %c0_191] : memref<12x8x128xf32, #tpu.memory_space<vmem>>, vector<1x8x128xf32>
    %634 = vector.shape_cast %633 : vector<1x8x128xf32> to vector<8x128xf32>
    %635 = arith.mulf %634, %630 : vector<8x128xf32>
    %cst_192 = arith.constant dense<0.000000e+00> : vector<8xf32>
    %636 = vector.multi_reduction <add>, %635, %cst_192 [1] : vector<8x128xf32> to vector<8xf32>
    %637 = vector.shape_cast %636 : vector<8xf32> to vector<8x1xf32>
    %638 = vector.broadcast %5 : vector<1x1xf32> to vector<8x1xf32>
    %639 = arith.addf %637, %638 : vector<8x1xf32>
    %c0_i32 = arith.constant 0 : i32
    %640 = vector.broadcast %c0_i32 : i32 to vector<1x128xi32>
    %641 = arith.cmpi eq, %631, %640 : vector<1x128xi32>
    %642 = arith.extui %641 : vector<1x128xi1> to vector<1x128xi32>
    %643 = arith.sitofp %642 : vector<1x128xi32> to vector<1x128xf32>
    %644 = vector.broadcast %639 : vector<8x1xf32> to vector<8x128xf32>
    %645 = vector.broadcast %643 : vector<1x128xf32> to vector<8x128xf32>
    %646 = arith.mulf %644, %645 : vector<8x128xf32>
    %647 = arith.addf %632, %646 : vector<8x128xf32>
    %c1_193 = arith.constant 1 : index
    %c0_194 = arith.constant 0 : index
    %c0_195 = arith.constant 0 : index
    %648 = vector.load %arg12[%c1_193, %c0_194, %c0_195] : memref<12x8x128xf32, #tpu.memory_space<vmem>>, vector<1x8x128xf32>
    %649 = vector.shape_cast %648 : vector<1x8x128xf32> to vector<8x128xf32>
    %650 = arith.mulf %649, %630 : vector<8x128xf32>
    %cst_196 = arith.constant dense<0.000000e+00> : vector<8xf32>
    %651 = vector.multi_reduction <add>, %650, %cst_196 [1] : vector<8x128xf32> to vector<8xf32>
    %652 = vector.shape_cast %651 : vector<8xf32> to vector<8x1xf32>
    %653 = vector.broadcast %5 : vector<1x1xf32> to vector<8x1xf32>
    %654 = arith.addf %652, %653 : vector<8x1xf32>
    %c1_i32 = arith.constant 1 : i32
    %655 = vector.broadcast %c1_i32 : i32 to vector<1x128xi32>
    %656 = arith.cmpi eq, %631, %655 : vector<1x128xi32>
    %657 = arith.extui %656 : vector<1x128xi1> to vector<1x128xi32>
    %658 = arith.sitofp %657 : vector<1x128xi32> to vector<1x128xf32>
    %659 = vector.broadcast %654 : vector<8x1xf32> to vector<8x128xf32>
    %660 = vector.broadcast %658 : vector<1x128xf32> to vector<8x128xf32>
    %661 = arith.mulf %659, %660 : vector<8x128xf32>
    %662 = arith.addf %647, %661 : vector<8x128xf32>
    %c2_197 = arith.constant 2 : index
    %c0_198 = arith.constant 0 : index
    %c0_199 = arith.constant 0 : index
    %663 = vector.load %arg12[%c2_197, %c0_198, %c0_199] : memref<12x8x128xf32, #tpu.memory_space<vmem>>, vector<1x8x128xf32>
    %664 = vector.shape_cast %663 : vector<1x8x128xf32> to vector<8x128xf32>
    %665 = arith.mulf %664, %630 : vector<8x128xf32>
    %cst_200 = arith.constant dense<0.000000e+00> : vector<8xf32>
    %666 = vector.multi_reduction <add>, %665, %cst_200 [1] : vector<8x128xf32> to vector<8xf32>
    %667 = vector.shape_cast %666 : vector<8xf32> to vector<8x1xf32>
    %668 = vector.broadcast %5 : vector<1x1xf32> to vector<8x1xf32>
    %669 = arith.addf %667, %668 : vector<8x1xf32>
    %c2_i32 = arith.constant 2 : i32
    %670 = vector.broadcast %c2_i32 : i32 to vector<1x128xi32>
    %671 = arith.cmpi eq, %631, %670 : vector<1x128xi32>
    %672 = arith.extui %671 : vector<1x128xi1> to vector<1x128xi32>
    %673 = arith.sitofp %672 : vector<1x128xi32> to vector<1x128xf32>
    %674 = vector.broadcast %669 : vector<8x1xf32> to vector<8x128xf32>
    %675 = vector.broadcast %673 : vector<1x128xf32> to vector<8x128xf32>
    %676 = arith.mulf %674, %675 : vector<8x128xf32>
    %677 = arith.addf %662, %676 : vector<8x128xf32>
    %c3_201 = arith.constant 3 : index
    %c0_202 = arith.constant 0 : index
    %c0_203 = arith.constant 0 : index
    %678 = vector.load %arg12[%c3_201, %c0_202, %c0_203] : memref<12x8x128xf32, #tpu.memory_space<vmem>>, vector<1x8x128xf32>
    %679 = vector.shape_cast %678 : vector<1x8x128xf32> to vector<8x128xf32>
    %680 = arith.mulf %679, %630 : vector<8x128xf32>
    %cst_204 = arith.constant dense<0.000000e+00> : vector<8xf32>
    %681 = vector.multi_reduction <add>, %680, %cst_204 [1] : vector<8x128xf32> to vector<8xf32>
    %682 = vector.shape_cast %681 : vector<8xf32> to vector<8x1xf32>
    %683 = vector.broadcast %5 : vector<1x1xf32> to vector<8x1xf32>
    %684 = arith.addf %682, %683 : vector<8x1xf32>
    %c3_i32 = arith.constant 3 : i32
    %685 = vector.broadcast %c3_i32 : i32 to vector<1x128xi32>
    %686 = arith.cmpi eq, %631, %685 : vector<1x128xi32>
    %687 = arith.extui %686 : vector<1x128xi1> to vector<1x128xi32>
    %688 = arith.sitofp %687 : vector<1x128xi32> to vector<1x128xf32>
    %689 = vector.broadcast %684 : vector<8x1xf32> to vector<8x128xf32>
    %690 = vector.broadcast %688 : vector<1x128xf32> to vector<8x128xf32>
    %691 = arith.mulf %689, %690 : vector<8x128xf32>
    %692 = arith.addf %677, %691 : vector<8x128xf32>
    %c4_205 = arith.constant 4 : index
    %c0_206 = arith.constant 0 : index
    %c0_207 = arith.constant 0 : index
    %693 = vector.load %arg12[%c4_205, %c0_206, %c0_207] : memref<12x8x128xf32, #tpu.memory_space<vmem>>, vector<1x8x128xf32>
    %694 = vector.shape_cast %693 : vector<1x8x128xf32> to vector<8x128xf32>
    %695 = arith.mulf %694, %630 : vector<8x128xf32>
    %cst_208 = arith.constant dense<0.000000e+00> : vector<8xf32>
    %696 = vector.multi_reduction <add>, %695, %cst_208 [1] : vector<8x128xf32> to vector<8xf32>
    %697 = vector.shape_cast %696 : vector<8xf32> to vector<8x1xf32>
    %698 = vector.broadcast %5 : vector<1x1xf32> to vector<8x1xf32>
    %699 = arith.addf %697, %698 : vector<8x1xf32>
    %c4_i32 = arith.constant 4 : i32
    %700 = vector.broadcast %c4_i32 : i32 to vector<1x128xi32>
    %701 = arith.cmpi eq, %631, %700 : vector<1x128xi32>
    %702 = arith.extui %701 : vector<1x128xi1> to vector<1x128xi32>
    %703 = arith.sitofp %702 : vector<1x128xi32> to vector<1x128xf32>
    %704 = vector.broadcast %699 : vector<8x1xf32> to vector<8x128xf32>
    %705 = vector.broadcast %703 : vector<1x128xf32> to vector<8x128xf32>
    %706 = arith.mulf %704, %705 : vector<8x128xf32>
    %707 = arith.addf %692, %706 : vector<8x128xf32>
    %c5_209 = arith.constant 5 : index
    %c0_210 = arith.constant 0 : index
    %c0_211 = arith.constant 0 : index
    %708 = vector.load %arg12[%c5_209, %c0_210, %c0_211] : memref<12x8x128xf32, #tpu.memory_space<vmem>>, vector<1x8x128xf32>
    %709 = vector.shape_cast %708 : vector<1x8x128xf32> to vector<8x128xf32>
    %710 = arith.mulf %709, %630 : vector<8x128xf32>
    %cst_212 = arith.constant dense<0.000000e+00> : vector<8xf32>
    %711 = vector.multi_reduction <add>, %710, %cst_212 [1] : vector<8x128xf32> to vector<8xf32>
    %712 = vector.shape_cast %711 : vector<8xf32> to vector<8x1xf32>
    %713 = vector.broadcast %5 : vector<1x1xf32> to vector<8x1xf32>
    %714 = arith.addf %712, %713 : vector<8x1xf32>
    %c5_i32 = arith.constant 5 : i32
    %715 = vector.broadcast %c5_i32 : i32 to vector<1x128xi32>
    %716 = arith.cmpi eq, %631, %715 : vector<1x128xi32>
    %717 = arith.extui %716 : vector<1x128xi1> to vector<1x128xi32>
    %718 = arith.sitofp %717 : vector<1x128xi32> to vector<1x128xf32>
    %719 = vector.broadcast %714 : vector<8x1xf32> to vector<8x128xf32>
    %720 = vector.broadcast %718 : vector<1x128xf32> to vector<8x128xf32>
    %721 = arith.mulf %719, %720 : vector<8x128xf32>
    %722 = arith.addf %707, %721 : vector<8x128xf32>
    %c6_213 = arith.constant 6 : index
    %c0_214 = arith.constant 0 : index
    %c0_215 = arith.constant 0 : index
    %723 = vector.load %arg12[%c6_213, %c0_214, %c0_215] : memref<12x8x128xf32, #tpu.memory_space<vmem>>, vector<1x8x128xf32>
    %724 = vector.shape_cast %723 : vector<1x8x128xf32> to vector<8x128xf32>
    %725 = arith.mulf %724, %630 : vector<8x128xf32>
    %cst_216 = arith.constant dense<0.000000e+00> : vector<8xf32>
    %726 = vector.multi_reduction <add>, %725, %cst_216 [1] : vector<8x128xf32> to vector<8xf32>
    %727 = vector.shape_cast %726 : vector<8xf32> to vector<8x1xf32>
    %728 = vector.broadcast %5 : vector<1x1xf32> to vector<8x1xf32>
    %729 = arith.addf %727, %728 : vector<8x1xf32>
    %c6_i32 = arith.constant 6 : i32
    %730 = vector.broadcast %c6_i32 : i32 to vector<1x128xi32>
    %731 = arith.cmpi eq, %631, %730 : vector<1x128xi32>
    %732 = arith.extui %731 : vector<1x128xi1> to vector<1x128xi32>
    %733 = arith.sitofp %732 : vector<1x128xi32> to vector<1x128xf32>
    %734 = vector.broadcast %729 : vector<8x1xf32> to vector<8x128xf32>
    %735 = vector.broadcast %733 : vector<1x128xf32> to vector<8x128xf32>
    %736 = arith.mulf %734, %735 : vector<8x128xf32>
    %737 = arith.addf %722, %736 : vector<8x128xf32>
    %c7_217 = arith.constant 7 : index
    %c0_218 = arith.constant 0 : index
    %c0_219 = arith.constant 0 : index
    %738 = vector.load %arg12[%c7_217, %c0_218, %c0_219] : memref<12x8x128xf32, #tpu.memory_space<vmem>>, vector<1x8x128xf32>
    %739 = vector.shape_cast %738 : vector<1x8x128xf32> to vector<8x128xf32>
    %740 = arith.mulf %739, %630 : vector<8x128xf32>
    %cst_220 = arith.constant dense<0.000000e+00> : vector<8xf32>
    %741 = vector.multi_reduction <add>, %740, %cst_220 [1] : vector<8x128xf32> to vector<8xf32>
    %742 = vector.shape_cast %741 : vector<8xf32> to vector<8x1xf32>
    %743 = vector.broadcast %5 : vector<1x1xf32> to vector<8x1xf32>
    %744 = arith.addf %742, %743 : vector<8x1xf32>
    %c7_i32 = arith.constant 7 : i32
    %745 = vector.broadcast %c7_i32 : i32 to vector<1x128xi32>
    %746 = arith.cmpi eq, %631, %745 : vector<1x128xi32>
    %747 = arith.extui %746 : vector<1x128xi1> to vector<1x128xi32>
    %748 = arith.sitofp %747 : vector<1x128xi32> to vector<1x128xf32>
    %749 = vector.broadcast %744 : vector<8x1xf32> to vector<8x128xf32>
    %750 = vector.broadcast %748 : vector<1x128xf32> to vector<8x128xf32>
    %751 = arith.mulf %749, %750 : vector<8x128xf32>
    %752 = arith.addf %737, %751 : vector<8x128xf32>
    %c8_221 = arith.constant 8 : index
    %c0_222 = arith.constant 0 : index
    %c0_223 = arith.constant 0 : index
    %753 = vector.load %arg12[%c8_221, %c0_222, %c0_223] : memref<12x8x128xf32, #tpu.memory_space<vmem>>, vector<1x8x128xf32>
    %754 = vector.shape_cast %753 : vector<1x8x128xf32> to vector<8x128xf32>
    %755 = arith.mulf %754, %630 : vector<8x128xf32>
    %cst_224 = arith.constant dense<0.000000e+00> : vector<8xf32>
    %756 = vector.multi_reduction <add>, %755, %cst_224 [1] : vector<8x128xf32> to vector<8xf32>
    %757 = vector.shape_cast %756 : vector<8xf32> to vector<8x1xf32>
    %758 = vector.broadcast %5 : vector<1x1xf32> to vector<8x1xf32>
    %759 = arith.addf %757, %758 : vector<8x1xf32>
    %c8_i32 = arith.constant 8 : i32
    %760 = vector.broadcast %c8_i32 : i32 to vector<1x128xi32>
    %761 = arith.cmpi eq, %631, %760 : vector<1x128xi32>
    %762 = arith.extui %761 : vector<1x128xi1> to vector<1x128xi32>
    %763 = arith.sitofp %762 : vector<1x128xi32> to vector<1x128xf32>
    %764 = vector.broadcast %759 : vector<8x1xf32> to vector<8x128xf32>
    %765 = vector.broadcast %763 : vector<1x128xf32> to vector<8x128xf32>
    %766 = arith.mulf %764, %765 : vector<8x128xf32>
    %767 = arith.addf %752, %766 : vector<8x128xf32>
    %c9_225 = arith.constant 9 : index
    %c0_226 = arith.constant 0 : index
    %c0_227 = arith.constant 0 : index
    %768 = vector.load %arg12[%c9_225, %c0_226, %c0_227] : memref<12x8x128xf32, #tpu.memory_space<vmem>>, vector<1x8x128xf32>
    %769 = vector.shape_cast %768 : vector<1x8x128xf32> to vector<8x128xf32>
    %770 = arith.mulf %769, %630 : vector<8x128xf32>
    %cst_228 = arith.constant dense<0.000000e+00> : vector<8xf32>
    %771 = vector.multi_reduction <add>, %770, %cst_228 [1] : vector<8x128xf32> to vector<8xf32>
    %772 = vector.shape_cast %771 : vector<8xf32> to vector<8x1xf32>
    %773 = vector.broadcast %5 : vector<1x1xf32> to vector<8x1xf32>
    %774 = arith.addf %772, %773 : vector<8x1xf32>
    %c9_i32 = arith.constant 9 : i32
    %775 = vector.broadcast %c9_i32 : i32 to vector<1x128xi32>
    %776 = arith.cmpi eq, %631, %775 : vector<1x128xi32>
    %777 = arith.extui %776 : vector<1x128xi1> to vector<1x128xi32>
    %778 = arith.sitofp %777 : vector<1x128xi32> to vector<1x128xf32>
    %779 = vector.broadcast %774 : vector<8x1xf32> to vector<8x128xf32>
    %780 = vector.broadcast %778 : vector<1x128xf32> to vector<8x128xf32>
    %781 = arith.mulf %779, %780 : vector<8x128xf32>
    %782 = arith.addf %767, %781 : vector<8x128xf32>
    %c10_229 = arith.constant 10 : index
    %c0_230 = arith.constant 0 : index
    %c0_231 = arith.constant 0 : index
    %783 = vector.load %arg12[%c10_229, %c0_230, %c0_231] : memref<12x8x128xf32, #tpu.memory_space<vmem>>, vector<1x8x128xf32>
    %784 = vector.shape_cast %783 : vector<1x8x128xf32> to vector<8x128xf32>
    %785 = arith.mulf %784, %630 : vector<8x128xf32>
    %cst_232 = arith.constant dense<0.000000e+00> : vector<8xf32>
    %786 = vector.multi_reduction <add>, %785, %cst_232 [1] : vector<8x128xf32> to vector<8xf32>
    %787 = vector.shape_cast %786 : vector<8xf32> to vector<8x1xf32>
    %788 = vector.broadcast %5 : vector<1x1xf32> to vector<8x1xf32>
    %789 = arith.addf %787, %788 : vector<8x1xf32>
    %c10_i32 = arith.constant 10 : i32
    %790 = vector.broadcast %c10_i32 : i32 to vector<1x128xi32>
    %791 = arith.cmpi eq, %631, %790 : vector<1x128xi32>
    %792 = arith.extui %791 : vector<1x128xi1> to vector<1x128xi32>
    %793 = arith.sitofp %792 : vector<1x128xi32> to vector<1x128xf32>
    %794 = vector.broadcast %789 : vector<8x1xf32> to vector<8x128xf32>
    %795 = vector.broadcast %793 : vector<1x128xf32> to vector<8x128xf32>
    %796 = arith.mulf %794, %795 : vector<8x128xf32>
    %797 = arith.addf %782, %796 : vector<8x128xf32>
    %c11_233 = arith.constant 11 : index
    %c0_234 = arith.constant 0 : index
    %c0_235 = arith.constant 0 : index
    %798 = vector.load %arg12[%c11_233, %c0_234, %c0_235] : memref<12x8x128xf32, #tpu.memory_space<vmem>>, vector<1x8x128xf32>
    %799 = vector.shape_cast %798 : vector<1x8x128xf32> to vector<8x128xf32>
    %800 = arith.mulf %799, %630 : vector<8x128xf32>
    %cst_236 = arith.constant dense<0.000000e+00> : vector<8xf32>
    %801 = vector.multi_reduction <add>, %800, %cst_236 [1] : vector<8x128xf32> to vector<8xf32>
    %802 = vector.shape_cast %801 : vector<8xf32> to vector<8x1xf32>
    %803 = vector.broadcast %5 : vector<1x1xf32> to vector<8x1xf32>
    %804 = arith.addf %802, %803 : vector<8x1xf32>
    %c11_i32 = arith.constant 11 : i32
    %805 = vector.broadcast %c11_i32 : i32 to vector<1x128xi32>
    %806 = arith.cmpi eq, %631, %805 : vector<1x128xi32>
    %807 = arith.extui %806 : vector<1x128xi1> to vector<1x128xi32>
    %808 = arith.sitofp %807 : vector<1x128xi32> to vector<1x128xf32>
    %809 = vector.broadcast %804 : vector<8x1xf32> to vector<8x128xf32>
    %810 = vector.broadcast %808 : vector<1x128xf32> to vector<8x128xf32>
    %811 = arith.mulf %809, %810 : vector<8x128xf32>
    %812 = arith.addf %797, %811 : vector<8x128xf32>
    %c0_237 = arith.constant 0 : index
    %c0_238 = arith.constant 0 : index
    %813 = vector.load %arg10[%c0_237, %c0_238] : memref<8x128xf32, #tpu.memory_space<vmem>>, vector<8x128xf32>
    tpu.vector_store %arg10[%c0_237, %c0_238], %812 {strides = array<i32>} : memref<8x128xf32, #tpu.memory_space<vmem>>, vector<8x128xf32>,
    return
  }
}

</mosaic_0001>

<llo_original>
// kernel: tpu_custom_call.1
$region0: #{tpu_custom_call.1}
  #allocation0 [shape = 'u32[]', space=smem, size = 0x4, offset = 0x4, fixed_abs, tag = 'smem constant byte address 0x4 - core index']
  #allocation1 [shape = 'u32[72,128]{1,0:T(1,128)}', space=vmem, size = 0x9000, scoped, tag = 'internal scratch']
  #allocation2 [shape = 'f32[8,8,512]{2,1,0:T(8,128)}', space=vmem, size = 0x20000, scoped, tag = 'scratch operand']
  #allocation3 [shape = 'f32[12,8,128]{2,1,0:T(8,128)}', space=vmem, size = 0xc000, scoped, tag = 'scratch operand']
  #allocation4 [shape = 'f32[1,1]{1,0:T(1,128)S(1)}', space=vmem, size = 0x200, scoped, tag = 'scoped memory for tpu_custom_call.1']
  %s0 = inlined_call_operand.hbm [shape: f32[8,8], index: 0, kind: input, shape index: {}]
  %s1 = inlined_call_operand.hbm [shape: f32[1,512], index: 1, kind: input, shape index: {}]
  %s2 = inlined_call_operand.hbm [shape: f32[128,512], index: 2, kind: input, shape index: {}]
  %s3 = inlined_call_operand.vmem [shape: f32[1,512], index: 3, kind: input, shape index: {}]
  %s4 = inlined_call_operand.hbm [shape: f32[256,512], index: 4, kind: input, shape index: {}]
  %s5 = inlined_call_operand.hbm [shape: f32[1,512], index: 5, kind: input, shape index: {}]
  %s6 = inlined_call_operand.hbm [shape: f32[256,512], index: 6, kind: input, shape index: {}]
  %s7 = inlined_call_operand.vmem [shape: f32[1,512], index: 7, kind: input, shape index: {}]
  %s8 = inlined_call_operand.vmem [shape: f32[1,128], index: 8, kind: input, shape index: {}]
  %s9 = inlined_call_operand.<no memory space> [shape: f32[1,1], index: 9, kind: input, shape index: {}]
  %s10 = inlined_call_operand.hbm [shape: f32[8,128], index: 10, kind: output, shape index: {}]
  %s11 = sld [smem:[#allocation0]]
  $region74: #{tpu_custom_call.1} parent=0
    _
  %s13 = ssub.s32 1, %s11
  %s14 = scalar_select 0, %s13, %s11
  %v15 = vstv %s9
  %16 = vst [vmem:[#allocation4] sm:$0x1] %v15
  $region1: #{tpu_custom_call.1} parent=0
    #allocation5 [shape = 'u8[4096]{0}', space=vmem, size = 0x1000, scoped, tag = 'input window, operand 0, single buffered']
    #allocation6 [shape = 's32[1]{0}', space=sflag, size = 0x4, scoped, tag = 'scoped memory for tpu_custom_call.1']
    #allocation7 [shape = 's32[1]{0}', space=sflag, size = 0x4, scoped, tag = 'scoped memory for tpu_custom_call.1']
    #allocation8 [shape = 'u8[2048]{0}', space=vmem, size = 0x800, scoped, tag = 'input window, operand 1, single buffered']
    #allocation9 [shape = 's32[1]{0}', space=sflag, size = 0x4, scoped, tag = 'scoped memory for tpu_custom_call.1']
    #allocation10 [shape = 'u8[262144]{0}', space=vmem, size = 0x40000, scoped, tag = 'input window, operand 2, single buffered']
    #allocation11 [shape = 'u8[524288]{0}', space=vmem, size = 0x80000, scoped, tag = 'input window, operand 4, single buffered']
    #allocation12 [shape = 's32[1]{0}', space=sflag, size = 0x4, scoped, tag = 'scoped memory for tpu_custom_call.1']
    #allocation13 [shape = 'u8[2048]{0}', space=vmem, size = 0x800, scoped, tag = 'input window, operand 5, single buffered']
    #allocation14 [shape = 'u8[524288]{0}', space=vmem, size = 0x80000, scoped, tag = 'input window, operand 6, single buffered']
    #allocation15 [shape = 's32[1]{0}', space=sflag, size = 0x4, scoped, tag = 'scoped memory for tpu_custom_call.1']
    #allocation16 [shape = 'u8[4096]{0}', space=vmem, size = 0x1000, scoped, tag = 'output window, operand 0, single buffered']
    %17 = vsyncpa [#allocation6], 0
    %18 = vsyncpa [#allocation9], 0
    %19 = vsyncpa [#allocation12], 0
    %20 = vsyncpa [#allocation15], 0
    %21 = vsyncpa [#allocation7], 0
    // Predicated region
    $region2: #{tpu_custom_call.1} parent=1 // pred_check
      _
    $region3: #{tpu_custom_call.1} parent=1 // pred_check_branch
      %23 = sbr.rel (0) target = $region5
    $region4: #{tpu_custom_call.1} parent=1 // pred_region
      %25 = vsyncadd [#allocation6], 0
      %s27 = sshll.u32 %s0, 4
      %s28 = int_to_ptr.hbm [resolvable:$true] %s27
      %s29 = sshll.u32 [#allocation5], 4
      %s30 = int_to_ptr.vmem [resolvable:$true] %s29
      %32 = dma.hbm_to_vmem [thread:$0]  %s28, 128, %s30, [#allocation6]
    $region5: #{tpu_custom_call.1} parent=1 // pred_fallthru
      _
    // Predicated region
    $region6: #{tpu_custom_call.1} parent=1 // pred_check
      _
    $region7: #{tpu_custom_call.1} parent=1 // pred_check_branch
      %34 = sbr.rel (0) target = $region9
    $region8: #{tpu_custom_call.1} parent=1 // pred_region
      %36 = vsyncadd [#allocation9], 0
      %s38 = sshll.u32 %s1, 4
      %s39 = int_to_ptr.hbm [resolvable:$true] %s38
      %s40 = sshll.u32 [#allocation8], 4
      %s41 = int_to_ptr.vmem [resolvable:$true] %s40
      %43 = dma.hbm_to_vmem [thread:$0]  %s39, 64, %s41, [#allocation9]
    $region9: #{tpu_custom_call.1} parent=1 // pred_fallthru
      _
    // Predicated region
    $region10: #{tpu_custom_call.1} parent=1 // pred_check
      _
    $region11: #{tpu_custom_call.1} parent=1 // pred_check_branch
      %45 = sbr.rel (0) target = $region13
    $region12: #{tpu_custom_call.1} parent=1 // pred_region
      %47 = vsyncadd [#allocation9], 0
      %s48 = sshll.u32 %s2, 4
      %s49 = int_to_ptr.hbm [resolvable:$true] %s48
      %s50 = sshll.u32 [#allocation10], 4
      %s51 = int_to_ptr.vmem [resolvable:$true] %s50
      %56 = dma.hbm_to_vmem [thread:$0]  %s49, 8192, %s51, [#allocation9], 512, 512, 32
    $region13: #{tpu_custom_call.1} parent=1 // pred_fallthru
      _
    // Predicated region
    $region14: #{tpu_custom_call.1} parent=1 // pred_check
      _
    $region15: #{tpu_custom_call.1} parent=1 // pred_check_branch
      %58 = sbr.rel (0) target = $region17
    $region16: #{tpu_custom_call.1} parent=1 // pred_region
      _
    $region17: #{tpu_custom_call.1} parent=1 // pred_fallthru
      _
    // Predicated region
    $region18: #{tpu_custom_call.1} parent=1 // pred_check
      _
    $region19: #{tpu_custom_call.1} parent=1 // pred_check_branch
      %60 = sbr.rel (0) target = $region21
    $region20: #{tpu_custom_call.1} parent=1 // pred_region
      %62 = vsyncadd [#allocation12], 0
      %s63 = sshll.u32 %s4, 4
      %s64 = int_to_ptr.hbm [resolvable:$true] %s63
      %s65 = sshll.u32 [#allocation11], 4
      %s66 = int_to_ptr.vmem [resolvable:$true] %s65
      %71 = dma.hbm_to_vmem [thread:$0]  %s64, 16384, %s66, [#allocation12], 512, 512, 32
    $region21: #{tpu_custom_call.1} parent=1 // pred_fallthru
      _
    // Predicated region
    $region22: #{tpu_custom_call.1} parent=1 // pred_check
      _
    $region23: #{tpu_custom_call.1} parent=1 // pred_check_branch
      %73 = sbr.rel (0) target = $region25
    $region24: #{tpu_custom_call.1} parent=1 // pred_region
      %75 = vsyncadd [#allocation12], 0
      %s77 = sshll.u32 %s5, 4
      %s78 = int_to_ptr.hbm [resolvable:$true] %s77
      %s79 = sshll.u32 [#allocation13], 4
      %s80 = int_to_ptr.vmem [resolvable:$true] %s79
      %82 = dma.hbm_to_vmem [thread:$0]  %s78, 64, %s80, [#allocation12]
    $region25: #{tpu_custom_call.1} parent=1 // pred_fallthru
      _
    // Predicated region
    $region26: #{tpu_custom_call.1} parent=1 // pred_check
      _
    $region27: #{tpu_custom_call.1} parent=1 // pred_check_branch
      %84 = sbr.rel (0) target = $region29
    $region28: #{tpu_custom_call.1} parent=1 // pred_region
      %86 = vsyncadd [#allocation15], 0
      %s87 = sshll.u32 %s6, 4
      %s88 = int_to_ptr.hbm [resolvable:$true] %s87
      %s89 = sshll.u32 [#allocation14], 4
      %s90 = int_to_ptr.vmem [resolvable:$true] %s89
      %95 = dma.hbm_to_vmem [thread:$0]  %s88, 16384, %s90, [#allocation15], 512, 512, 32
    $region29: #{tpu_custom_call.1} parent=1 // pred_fallthru
      _
    // Predicated region
    $region30: #{tpu_custom_call.1} parent=1 // pred_check
      _
    $region31: #{tpu_custom_call.1} parent=1 // pred_check_branch
      %97 = sbr.rel (0) target = $region33
    $region32: #{tpu_custom_call.1} parent=1 // pred_region
      _
    $region33: #{tpu_custom_call.1} parent=1 // pred_fallthru
      _
    // Predicated region
    $region34: #{tpu_custom_call.1} parent=1 // pred_check
      _
    $region35: #{tpu_custom_call.1} parent=1 // pred_check_branch
      %99 = sbr.rel (0) target = $region37
    $region36: #{tpu_custom_call.1} parent=1 // pred_region
      _
    $region37: #{tpu_custom_call.1} parent=1 // pred_fallthru
      _
    // Predicated region
    $region38: #{tpu_custom_call.1} parent=1 // pred_check
      _
    $region39: #{tpu_custom_call.1} parent=1 // pred_check_branch
      %101 = sbr.rel (0) target = $region41
    $region40: #{tpu_custom_call.1} parent=1 // pred_region
      _
    $region41: #{tpu_custom_call.1} parent=1 // pred_fallthru
      _
    // Predicated region
    $region42: #{tpu_custom_call.1} parent=1 // pred_check
      _
    $region43: #{tpu_custom_call.1} parent=1 // pred_check_branch
      %103 = sbr.rel (0) target = $region45
    $region44: #{tpu_custom_call.1} parent=1 // pred_region
      %105 = dma.done [#allocation6], 128
    $region45: #{tpu_custom_call.1} parent=1 // pred_fallthru
      _
    // Predicated region
    $region46: #{tpu_custom_call.1} parent=1 // pred_check
      _
    $region47: #{tpu_custom_call.1} parent=1 // pred_check_branch
      %107 = sbr.rel (0) target = $region49
    $region48: #{tpu_custom_call.1} parent=1 // pred_region
      %109 = dma.done [#allocation9], 64
    $region49: #{tpu_custom_call.1} parent=1 // pred_fallthru
      _
    // Predicated region
    $region50: #{tpu_custom_call.1} parent=1 // pred_check
      _
    $region51: #{tpu_custom_call.1} parent=1 // pred_check_branch
      %111 = sbr.rel (0) target = $region53
    $region52: #{tpu_custom_call.1} parent=1 // pred_region
      %113 = dma.done [#allocation9], 8192
    $region53: #{tpu_custom_call.1} parent=1 // pred_fallthru
      _
    // Predicated region
    $region54: #{tpu_custom_call.1} parent=1 // pred_check
      _
    $region55: #{tpu_custom_call.1} parent=1 // pred_check_branch
      %115 = sbr.rel (0) target = $region57
    $region56: #{tpu_custom_call.1} parent=1 // pred_region
      %117 = dma.done [#allocation12], 16384
    $region57: #{tpu_custom_call.1} parent=1 // pred_fallthru
      _
    // Predicated region
    $region58: #{tpu_custom_call.1} parent=1 // pred_check
      _
    $region59: #{tpu_custom_call.1} parent=1 // pred_check_branch
      %119 = sbr.rel (0) target = $region61
    $region60: #{tpu_custom_call.1} parent=1 // pred_region
      %121 = dma.done [#allocation12], 64
    $region61: #{tpu_custom_call.1} parent=1 // pred_fallthru
      _
    // Predicated region
    $region62: #{tpu_custom_call.1} parent=1 // pred_check
      _
    $region63: #{tpu_custom_call.1} parent=1 // pred_check_branch
      %123 = sbr.rel (0) target = $region65
    $region64: #{tpu_custom_call.1} parent=1 // pred_region
      %125 = dma.done [#allocation15], 16384
    $region65: #{tpu_custom_call.1} parent=1 // pred_fallthru
      _
    %v126 = vld [vmem:[#allocation8] sm:$0xf]
    %v127 = vld [vmem:[#allocation10] sm:$0xff]
    %v128 = vld [vmem:[#allocation10 + $0x8] sm:$0xff]
    %v129 = vld [vmem:[#allocation10 + $0x10] sm:$0xff]
    %v130 = vld [vmem:[#allocation10 + $0x18] sm:$0xff]
    %v131 = vld [vmem:[#allocation10 + $0x20] sm:$0xff]
    %v132 = vld [vmem:[#allocation10 + $0x28] sm:$0xff]
    %v133 = vld [vmem:[#allocation10 + $0x30] sm:$0xff]
    %v134 = vld [vmem:[#allocation10 + $0x38] sm:$0xff]
    %v135 = vld [vmem:[#allocation10 + $0x40] sm:$0xff]
    %v136 = vld [vmem:[#allocation10 + $0x48] sm:$0xff]
    %v137 = vld [vmem:[#allocation10 + $0x50] sm:$0xff]
    %v138 = vld [vmem:[#allocation10 + $0x58] sm:$0xff]
    %v139 = vld [vmem:[#allocation10 + $0x60] sm:$0xff]
    %v140 = vld [vmem:[#allocation10 + $0x68] sm:$0xff]
    %v141 = vld [vmem:[#allocation10 + $0x70] sm:$0xff]
    %v142 = vld [vmem:[#allocation10 + $0x78] sm:$0xff]
    %v143 = vld [vmem:[#allocation10 + $0x80] sm:$0xff]
    %v144 = vld [vmem:[#allocation10 + $0x88] sm:$0xff]
    %v145 = vld [vmem:[#allocation10 + $0x90] sm:$0xff]
    %v146 = vld [vmem:[#allocation10 + $0x98] sm:$0xff]
    %v147 = vld [vmem:[#allocation10 + $0xa0] sm:$0xff]
    %v148 = vld [vmem:[#allocation10 + $0xa8] sm:$0xff]
    %v149 = vld [vmem:[#allocation10 + $0xb0] sm:$0xff]
    %v150 = vld [vmem:[#allocation10 + $0xb8] sm:$0xff]
    %v151 = vld [vmem:[#allocation10 + $0xc0] sm:$0xff]
    %v152 = vld [vmem:[#allocation10 + $0xc8] sm:$0xff]
    %v153 = vld [vmem:[#allocation10 + $0xd0] sm:$0xff]
    %v154 = vld [vmem:[#allocation10 + $0xd8] sm:$0xff]
    %v155 = vld [vmem:[#allocation10 + $0xe0] sm:$0xff]
    %v156 = vld [vmem:[#allocation10 + $0xe8] sm:$0xff]
    %v157 = vld [vmem:[#allocation10 + $0xf0] sm:$0xff]
    %v158 = vld [vmem:[#allocation10 + $0xf8] sm:$0xff]
    %v159 = vld [vmem:[#allocation10 + $0x100] sm:$0xff]
    %v160 = vld [vmem:[#allocation10 + $0x108] sm:$0xff]
    %v161 = vld [vmem:[#allocation10 + $0x110] sm:$0xff]
    %v162 = vld [vmem:[#allocation10 + $0x118] sm:$0xff]
    %v163 = vld [vmem:[#allocation10 + $0x120] sm:$0xff]
    %v164 = vld [vmem:[#allocation10 + $0x128] sm:$0xff]
    %v165 = vld [vmem:[#allocation10 + $0x130] sm:$0xff]
    %v166 = vld [vmem:[#allocation10 + $0x138] sm:$0xff]
    %v167 = vld [vmem:[#allocation10 + $0x140] sm:$0xff]
    %v168 = vld [vmem:[#allocation10 + $0x148] sm:$0xff]
    %v169 = vld [vmem:[#allocation10 + $0x150] sm:$0xff]
    %v170 = vld [vmem:[#allocation10 + $0x158] sm:$0xff]
    %v171 = vld [vmem:[#allocation10 + $0x160] sm:$0xff]
    %v172 = vld [vmem:[#allocation10 + $0x168] sm:$0xff]
    %v173 = vld [vmem:[#allocation10 + $0x170] sm:$0xff]
    %v174 = vld [vmem:[#allocation10 + $0x178] sm:$0xff]
    %v175 = vld [vmem:[#allocation10 + $0x180] sm:$0xff]
    %v176 = vld [vmem:[#allocation10 + $0x188] sm:$0xff]
    %v177 = vld [vmem:[#allocation10 + $0x190] sm:$0xff]
    %v178 = vld [vmem:[#allocation10 + $0x198] sm:$0xff]
    %v179 = vld [vmem:[#allocation10 + $0x1a0] sm:$0xff]
    %v180 = vld [vmem:[#allocation10 + $0x1a8] sm:$0xff]
    %v181 = vld [vmem:[#allocation10 + $0x1b0] sm:$0xff]
    %v182 = vld [vmem:[#allocation10 + $0x1b8] sm:$0xff]
    %v183 = vld [vmem:[#allocation10 + $0x1c0] sm:$0xff]
    %v184 = vld [vmem:[#allocation10 + $0x1c8] sm:$0xff]
    %v185 = vld [vmem:[#allocation10 + $0x1d0] sm:$0xff]
    %v186 = vld [vmem:[#allocation10 + $0x1d8] sm:$0xff]
    %v187 = vld [vmem:[#allocation10 + $0x1e0] sm:$0xff]
    %v188 = vld [vmem:[#allocation10 + $0x1e8] sm:$0xff]
    %v189 = vld [vmem:[#allocation10 + $0x1f0] sm:$0xff]
    %v190 = vld [vmem:[#allocation10 + $0x1f8] sm:$0xff]
    %v191 = vld [vmem:[#allocation11] sm:$0xff]
    %v192 = vld [vmem:[#allocation11 + $0x8] sm:$0xff]
    %v193 = vld [vmem:[#allocation11 + $0x10] sm:$0xff]
    %v194 = vld [vmem:[#allocation11 + $0x18] sm:$0xff]
    %v195 = vld [vmem:[#allocation11 + $0x20] sm:$0xff]
    %v196 = vld [vmem:[#allocation11 + $0x28] sm:$0xff]
    %v197 = vld [vmem:[#allocation11 + $0x30] sm:$0xff]
    %v198 = vld [vmem:[#allocation11 + $0x38] sm:$0xff]
    %v199 = vld [vmem:[#allocation11 + $0x40] sm:$0xff]
    %v200 = vld [vmem:[#allocation11 + $0x48] sm:$0xff]
    %v201 = vld [vmem:[#allocation11 + $0x50] sm:$0xff]
    %v202 = vld [vmem:[#allocation11 + $0x58] sm:$0xff]
    %v203 = vld [vmem:[#allocation11 + $0x60] sm:$0xff]
    %v204 = vld [vmem:[#allocation11 + $0x68] sm:$0xff]
    %v205 = vld [vmem:[#allocation11 + $0x70] sm:$0xff]
    %v206 = vld [vmem:[#allocation11 + $0x78] sm:$0xff]
    %v207 = vld [vmem:[#allocation11 + $0x80] sm:$0xff]
    %v208 = vld [vmem:[#allocation11 + $0x88] sm:$0xff]
    %v209 = vld [vmem:[#allocation11 + $0x90] sm:$0xff]
    %v210 = vld [vmem:[#allocation11 + $0x98] sm:$0xff]
    %v211 = vld [vmem:[#allocation11 + $0xa0] sm:$0xff]
    %v212 = vld [vmem:[#allocation11 + $0xa8] sm:$0xff]
    %v213 = vld [vmem:[#allocation11 + $0xb0] sm:$0xff]
    %v214 = vld [vmem:[#allocation11 + $0xb8] sm:$0xff]
    %v215 = vld [vmem:[#allocation11 + $0xc0] sm:$0xff]
    %v216 = vld [vmem:[#allocation11 + $0xc8] sm:$0xff]
    %v217 = vld [vmem:[#allocation11 + $0xd0] sm:$0xff]
    %v218 = vld [vmem:[#allocation11 + $0xd8] sm:$0xff]
    %v219 = vld [vmem:[#allocation11 + $0xe0] sm:$0xff]
    %v220 = vld [vmem:[#allocation11 + $0xe8] sm:$0xff]
    %v221 = vld [vmem:[#allocation11 + $0xf0] sm:$0xff]
    %v222 = vld [vmem:[#allocation11 + $0xf8] sm:$0xff]
    %v223 = vld [vmem:[#allocation11 + $0x100] sm:$0xff]
    %v224 = vld [vmem:[#allocation11 + $0x108] sm:$0xff]
    %v225 = vld [vmem:[#allocation11 + $0x110] sm:$0xff]
    %v226 = vld [vmem:[#allocation11 + $0x118] sm:$0xff]
    %v227 = vld [vmem:[#allocation11 + $0x120] sm:$0xff]
    %v228 = vld [vmem:[#allocation11 + $0x128] sm:$0xff]
    %v229 = vld [vmem:[#allocation11 + $0x130] sm:$0xff]
    %v230 = vld [vmem:[#allocation11 + $0x138] sm:$0xff]
    %v231 = vld [vmem:[#allocation11 + $0x140] sm:$0xff]
    %v232 = vld [vmem:[#allocation11 + $0x148] sm:$0xff]
    %v233 = vld [vmem:[#allocation11 + $0x150] sm:$0xff]
    %v234 = vld [vmem:[#allocation11 + $0x158] sm:$0xff]
    %v235 = vld [vmem:[#allocation11 + $0x160] sm:$0xff]
    %v236 = vld [vmem:[#allocation11 + $0x168] sm:$0xff]
    %v237 = vld [vmem:[#allocation11 + $0x170] sm:$0xff]
    %v238 = vld [vmem:[#allocation11 + $0x178] sm:$0xff]
    %v239 = vld [vmem:[#allocation11 + $0x180] sm:$0xff]
    %v240 = vld [vmem:[#allocation11 + $0x188] sm:$0xff]
    %v241 = vld [vmem:[#allocation11 + $0x190] sm:$0xff]
    %v242 = vld [vmem:[#allocation11 + $0x198] sm:$0xff]
    %v243 = vld [vmem:[#allocation11 + $0x1a0] sm:$0xff]
    %v244 = vld [vmem:[#allocation11 + $0x1a8] sm:$0xff]
    %v245 = vld [vmem:[#allocation11 + $0x1b0] sm:$0xff]
    %v246 = vld [vmem:[#allocation11 + $0x1b8] sm:$0xff]
    %v247 = vld [vmem:[#allocation11 + $0x1c0] sm:$0xff]
    %v248 = vld [vmem:[#allocation11 + $0x1c8] sm:$0xff]
    %v249 = vld [vmem:[#allocation11 + $0x1d0] sm:$0xff]
    %v250 = vld [vmem:[#allocation11 + $0x1d8] sm:$0xff]
    %v251 = vld [vmem:[#allocation11 + $0x1e0] sm:$0xff]
    %v252 = vld [vmem:[#allocation11 + $0x1e8] sm:$0xff]
    %v253 = vld [vmem:[#allocation11 + $0x1f0] sm:$0xff]
    %v254 = vld [vmem:[#allocation11 + $0x1f8] sm:$0xff]
    %v255 = vld [vmem:[#allocation11 + $0x200] sm:$0xff]
    %v256 = vld [vmem:[#allocation11 + $0x208] sm:$0xff]
    %v257 = vld [vmem:[#allocation11 + $0x210] sm:$0xff]
    %v258 = vld [vmem:[#allocation11 + $0x218] sm:$0xff]
    %v259 = vld [vmem:[#allocation11 + $0x220] sm:$0xff]
    %v260 = vld [vmem:[#allocation11 + $0x228] sm:$0xff]
    %v261 = vld [vmem:[#allocation11 + $0x230] sm:$0xff]
    %v262 = vld [vmem:[#allocation11 + $0x238] sm:$0xff]
    %v263 = vld [vmem:[#allocation11 + $0x240] sm:$0xff]
    %v264 = vld [vmem:[#allocation11 + $0x248] sm:$0xff]
    %v265 = vld [vmem:[#allocation11 + $0x250] sm:$0xff]
    %v266 = vld [vmem:[#allocation11 + $0x258] sm:$0xff]
    %v267 = vld [vmem:[#allocation11 + $0x260] sm:$0xff]
    %v268 = vld [vmem:[#allocation11 + $0x268] sm:$0xff]
    %v269 = vld [vmem:[#allocation11 + $0x270] sm:$0xff]
    %v270 = vld [vmem:[#allocation11 + $0x278] sm:$0xff]
    %v271 = vld [vmem:[#allocation11 + $0x280] sm:$0xff]
    %v272 = vld [vmem:[#allocation11 + $0x288] sm:$0xff]
    %v273 = vld [vmem:[#allocation11 + $0x290] sm:$0xff]
    %v274 = vld [vmem:[#allocation11 + $0x298] sm:$0xff]
    %v275 = vld [vmem:[#allocation11 + $0x2a0] sm:$0xff]
    %v276 = vld [vmem:[#allocation11 + $0x2a8] sm:$0xff]
    %v277 = vld [vmem:[#allocation11 + $0x2b0] sm:$0xff]
    %v278 = vld [vmem:[#allocation11 + $0x2b8] sm:$0xff]
    %v279 = vld [vmem:[#allocation11 + $0x2c0] sm:$0xff]
    %v280 = vld [vmem:[#allocation11 + $0x2c8] sm:$0xff]
    %v281 = vld [vmem:[#allocation11 + $0x2d0] sm:$0xff]
    %v282 = vld [vmem:[#allocation11 + $0x2d8] sm:$0xff]
    %v283 = vld [vmem:[#allocation11 + $0x2e0] sm:$0xff]
    %v284 = vld [vmem:[#allocation11 + $0x2e8] sm:$0xff]
    %v285 = vld [vmem:[#allocation11 + $0x2f0] sm:$0xff]
    %v286 = vld [vmem:[#allocation11 + $0x2f8] sm:$0xff]
    %v287 = vld [vmem:[#allocation11 + $0x300] sm:$0xff]
    %v288 = vld [vmem:[#allocation11 + $0x308] sm:$0xff]
    %v289 = vld [vmem:[#allocation11 + $0x310] sm:$0xff]
    %v290 = vld [vmem:[#allocation11 + $0x318] sm:$0xff]
    %v291 = vld [vmem:[#allocation11 + $0x320] sm:$0xff]
    %v292 = vld [vmem:[#allocation11 + $0x328] sm:$0xff]
    %v293 = vld [vmem:[#allocation11 + $0x330] sm:$0xff]
    %v294 = vld [vmem:[#allocation11 + $0x338] sm:$0xff]
    %v295 = vld [vmem:[#allocation11 + $0x340] sm:$0xff]
    %v296 = vld [vmem:[#allocation11 + $0x348] sm:$0xff]
    %v297 = vld [vmem:[#allocation11 + $0x350] sm:$0xff]
    %v298 = vld [vmem:[#allocation11 + $0x358] sm:$0xff]
    %v299 = vld [vmem:[#allocation11 + $0x360] sm:$0xff]
    %v300 = vld [vmem:[#allocation11 + $0x368] sm:$0xff]
    %v301 = vld [vmem:[#allocation11 + $0x370] sm:$0xff]
    %v302 = vld [vmem:[#allocation11 + $0x378] sm:$0xff]
    %v303 = vld [vmem:[#allocation11 + $0x380] sm:$0xff]
    %v304 = vld [vmem:[#allocation11 + $0x388] sm:$0xff]
    %v305 = vld [vmem:[#allocation11 + $0x390] sm:$0xff]
    %v306 = vld [vmem:[#allocation11 + $0x398] sm:$0xff]
    %v307 = vld [vmem:[#allocation11 + $0x3a0] sm:$0xff]
    %v308 = vld [vmem:[#allocation11 + $0x3a8] sm:$0xff]
    %v309 = vld [vmem:[#allocation11 + $0x3b0] sm:$0xff]
    %v310 = vld [vmem:[#allocation11 + $0x3b8] sm:$0xff]
    %v311 = vld [vmem:[#allocation11 + $0x3c0] sm:$0xff]
    %v312 = vld [vmem:[#allocation11 + $0x3c8] sm:$0xff]
    %v313 = vld [vmem:[#allocation11 + $0x3d0] sm:$0xff]
    %v314 = vld [vmem:[#allocation11 + $0x3d8] sm:$0xff]
    %v315 = vld [vmem:[#allocation11 + $0x3e0] sm:$0xff]
    %v316 = vld [vmem:[#allocation11 + $0x3e8] sm:$0xff]
    %v317 = vld [vmem:[#allocation11 + $0x3f0] sm:$0xff]
    %v318 = vld [vmem:[#allocation11 + $0x3f8] sm:$0xff]
    %v319 = vld [vmem:[#allocation14] sm:$0xff]
    %v320 = vld [vmem:[#allocation14 + $0x8] sm:$0xff]
    %v321 = vld [vmem:[#allocation14 + $0x10] sm:$0xff]
    %v322 = vld [vmem:[#allocation14 + $0x18] sm:$0xff]
    %v323 = vld [vmem:[#allocation14 + $0x20] sm:$0xff]
    %v324 = vld [vmem:[#allocation14 + $0x28] sm:$0xff]
    %v325 = vld [vmem:[#allocation14 + $0x30] sm:$0xff]
    %v326 = vld [vmem:[#allocation14 + $0x38] sm:$0xff]
    %v327 = vld [vmem:[#allocation14 + $0x40] sm:$0xff]
    %v328 = vld [vmem:[#allocation14 + $0x48] sm:$0xff]
    %v329 = vld [vmem:[#allocation14 + $0x50] sm:$0xff]
    %v330 = vld [vmem:[#allocation14 + $0x58] sm:$0xff]
    %v331 = vld [vmem:[#allocation14 + $0x60] sm:$0xff]
    %v332 = vld [vmem:[#allocation14 + $0x68] sm:$0xff]
    %v333 = vld [vmem:[#allocation14 + $0x70] sm:$0xff]
    %v334 = vld [vmem:[#allocation14 + $0x78] sm:$0xff]
    %v335 = vld [vmem:[#allocation14 + $0x80] sm:$0xff]
    %v336 = vld [vmem:[#allocation14 + $0x88] sm:$0xff]
    %v337 = vld [vmem:[#allocation14 + $0x90] sm:$0xff]
    %v338 = vld [vmem:[#allocation14 + $0x98] sm:$0xff]
    %v339 = vld [vmem:[#allocation14 + $0xa0] sm:$0xff]
    %v340 = vld [vmem:[#allocation14 + $0xa8] sm:$0xff]
    %v341 = vld [vmem:[#allocation14 + $0xb0] sm:$0xff]
    %v342 = vld [vmem:[#allocation14 + $0xb8] sm:$0xff]
    %v343 = vld [vmem:[#allocation14 + $0xc0] sm:$0xff]
    %v344 = vld [vmem:[#allocation14 + $0xc8] sm:$0xff]
    %v345 = vld [vmem:[#allocation14 + $0xd0] sm:$0xff]
    %v346 = vld [vmem:[#allocation14 + $0xd8] sm:$0xff]
    %v347 = vld [vmem:[#allocation14 + $0xe0] sm:$0xff]
    %v348 = vld [vmem:[#allocation14 + $0xe8] sm:$0xff]
    %v349 = vld [vmem:[#allocation14 + $0xf0] sm:$0xff]
    %v350 = vld [vmem:[#allocation14 + $0xf8] sm:$0xff]
    %v351 = vld [vmem:[#allocation14 + $0x100] sm:$0xff]
    %v352 = vld [vmem:[#allocation14 + $0x108] sm:$0xff]
    %v353 = vld [vmem:[#allocation14 + $0x110] sm:$0xff]
    %v354 = vld [vmem:[#allocation14 + $0x118] sm:$0xff]
    %v355 = vld [vmem:[#allocation14 + $0x120] sm:$0xff]
    %v356 = vld [vmem:[#allocation14 + $0x128] sm:$0xff]
    %v357 = vld [vmem:[#allocation14 + $0x130] sm:$0xff]
    %v358 = vld [vmem:[#allocation14 + $0x138] sm:$0xff]
    %v359 = vld [vmem:[#allocation14 + $0x140] sm:$0xff]
    %v360 = vld [vmem:[#allocation14 + $0x148] sm:$0xff]
    %v361 = vld [vmem:[#allocation14 + $0x150] sm:$0xff]
    %v362 = vld [vmem:[#allocation14 + $0x158] sm:$0xff]
    %v363 = vld [vmem:[#allocation14 + $0x160] sm:$0xff]
    %v364 = vld [vmem:[#allocation14 + $0x168] sm:$0xff]
    %v365 = vld [vmem:[#allocation14 + $0x170] sm:$0xff]
    %v366 = vld [vmem:[#allocation14 + $0x178] sm:$0xff]
    %v367 = vld [vmem:[#allocation14 + $0x180] sm:$0xff]
    %v368 = vld [vmem:[#allocation14 + $0x188] sm:$0xff]
    %v369 = vld [vmem:[#allocation14 + $0x190] sm:$0xff]
    %v370 = vld [vmem:[#allocation14 + $0x198] sm:$0xff]
    %v371 = vld [vmem:[#allocation14 + $0x1a0] sm:$0xff]
    %v372 = vld [vmem:[#allocation14 + $0x1a8] sm:$0xff]
    %v373 = vld [vmem:[#allocation14 + $0x1b0] sm:$0xff]
    %v374 = vld [vmem:[#allocation14 + $0x1b8] sm:$0xff]
    %v375 = vld [vmem:[#allocation14 + $0x1c0] sm:$0xff]
    %v376 = vld [vmem:[#allocation14 + $0x1c8] sm:$0xff]
    %v377 = vld [vmem:[#allocation14 + $0x1d0] sm:$0xff]
    %v378 = vld [vmem:[#allocation14 + $0x1d8] sm:$0xff]
    %v379 = vld [vmem:[#allocation14 + $0x1e0] sm:$0xff]
    %v380 = vld [vmem:[#allocation14 + $0x1e8] sm:$0xff]
    %v381 = vld [vmem:[#allocation14 + $0x1f0] sm:$0xff]
    %v382 = vld [vmem:[#allocation14 + $0x1f8] sm:$0xff]
    %v383 = vld [vmem:[#allocation14 + $0x200] sm:$0xff]
    %v384 = vld [vmem:[#allocation14 + $0x208] sm:$0xff]
    %v385 = vld [vmem:[#allocation14 + $0x210] sm:$0xff]
    %v386 = vld [vmem:[#allocation14 + $0x218] sm:$0xff]
    %v387 = vld [vmem:[#allocation14 + $0x220] sm:$0xff]
    %v388 = vld [vmem:[#allocation14 + $0x228] sm:$0xff]
    %v389 = vld [vmem:[#allocation14 + $0x230] sm:$0xff]
    %v390 = vld [vmem:[#allocation14 + $0x238] sm:$0xff]
    %v391 = vld [vmem:[#allocation14 + $0x240] sm:$0xff]
    %v392 = vld [vmem:[#allocation14 + $0x248] sm:$0xff]
    %v393 = vld [vmem:[#allocation14 + $0x250] sm:$0xff]
    %v394 = vld [vmem:[#allocation14 + $0x258] sm:$0xff]
    %v395 = vld [vmem:[#allocation14 + $0x260] sm:$0xff]
    %v396 = vld [vmem:[#allocation14 + $0x268] sm:$0xff]
    %v397 = vld [vmem:[#allocation14 + $0x270] sm:$0xff]
    %v398 = vld [vmem:[#allocation14 + $0x278] sm:$0xff]
    %v399 = vld [vmem:[#allocation14 + $0x280] sm:$0xff]
    %v400 = vld [vmem:[#allocation14 + $0x288] sm:$0xff]
    %v401 = vld [vmem:[#allocation14 + $0x290] sm:$0xff]
    %v402 = vld [vmem:[#allocation14 + $0x298] sm:$0xff]
    %v403 = vld [vmem:[#allocation14 + $0x2a0] sm:$0xff]
    %v404 = vld [vmem:[#allocation14 + $0x2a8] sm:$0xff]
    %v405 = vld [vmem:[#allocation14 + $0x2b0] sm:$0xff]
    %v406 = vld [vmem:[#allocation14 + $0x2b8] sm:$0xff]
    %v407 = vld [vmem:[#allocation14 + $0x2c0] sm:$0xff]
    %v408 = vld [vmem:[#allocation14 + $0x2c8] sm:$0xff]
    %v409 = vld [vmem:[#allocation14 + $0x2d0] sm:$0xff]
    %v410 = vld [vmem:[#allocation14 + $0x2d8] sm:$0xff]
    %v411 = vld [vmem:[#allocation14 + $0x2e0] sm:$0xff]
    %v412 = vld [vmem:[#allocation14 + $0x2e8] sm:$0xff]
    %v413 = vld [vmem:[#allocation14 + $0x2f0] sm:$0xff]
    %v414 = vld [vmem:[#allocation14 + $0x2f8] sm:$0xff]
    %v415 = vld [vmem:[#allocation14 + $0x300] sm:$0xff]
    %v416 = vld [vmem:[#allocation14 + $0x308] sm:$0xff]
    %v417 = vld [vmem:[#allocation14 + $0x310] sm:$0xff]
    %v418 = vld [vmem:[#allocation14 + $0x318] sm:$0xff]
    %v419 = vld [vmem:[#allocation14 + $0x320] sm:$0xff]
    %v420 = vld [vmem:[#allocation14 + $0x328] sm:$0xff]
    %v421 = vld [vmem:[#allocation14 + $0x330] sm:$0xff]
    %v422 = vld [vmem:[#allocation14 + $0x338] sm:$0xff]
    %v423 = vld [vmem:[#allocation14 + $0x340] sm:$0xff]
    %v424 = vld [vmem:[#allocation14 + $0x348] sm:$0xff]
    %v425 = vld [vmem:[#allocation14 + $0x350] sm:$0xff]
    %v426 = vld [vmem:[#allocation14 + $0x358] sm:$0xff]
    %v427 = vld [vmem:[#allocation14 + $0x360] sm:$0xff]
    %v428 = vld [vmem:[#allocation14 + $0x368] sm:$0xff]
    %v429 = vld [vmem:[#allocation14 + $0x370] sm:$0xff]
    %v430 = vld [vmem:[#allocation14 + $0x378] sm:$0xff]
    %v431 = vld [vmem:[#allocation14 + $0x380] sm:$0xff]
    %v432 = vld [vmem:[#allocation14 + $0x388] sm:$0xff]
    %v433 = vld [vmem:[#allocation14 + $0x390] sm:$0xff]
    %v434 = vld [vmem:[#allocation14 + $0x398] sm:$0xff]
    %v435 = vld [vmem:[#allocation14 + $0x3a0] sm:$0xff]
    %v436 = vld [vmem:[#allocation14 + $0x3a8] sm:$0xff]
    %v437 = vld [vmem:[#allocation14 + $0x3b0] sm:$0xff]
    %v438 = vld [vmem:[#allocation14 + $0x3b8] sm:$0xff]
    %v439 = vld [vmem:[#allocation14 + $0x3c0] sm:$0xff]
    %v440 = vld [vmem:[#allocation14 + $0x3c8] sm:$0xff]
    %v441 = vld [vmem:[#allocation14 + $0x3d0] sm:$0xff]
    %v442 = vld [vmem:[#allocation14 + $0x3d8] sm:$0xff]
    %v443 = vld [vmem:[#allocation14 + $0x3e0] sm:$0xff]
    %v444 = vld [vmem:[#allocation14 + $0x3e8] sm:$0xff]
    %v445 = vld [vmem:[#allocation14 + $0x3f0] sm:$0xff]
    %v446 = vld [vmem:[#allocation14 + $0x3f8] sm:$0xff]
    %v447 = vld [vmem:[%s8] sm:$0x1]
    %v448 = vld [vmem:[#allocation4] sm:$0x1]
    %v449 = vld [vmem:[%s7] sm:$0xf]
    %v451 = vperm.slane %v449, 0
    %v452 = vperm.slane %v449, 1
    %v453 = vperm.slane %v449, 2
    %v454 = vperm.slane %v449, 3
    %v459 = vld [vmem:[#allocation13] sm:$0xf]
    %v461 = vperm.slane %v459, 0
    %v462 = vperm.slane %v459, 1
    %v463 = vperm.slane %v459, 2
    %v464 = vperm.slane %v459, 3
    %v469 = vld [vmem:[#allocation5] sm:$0xff]
    %v470 = vld [vmem:[%s3] sm:$0xf]
    %v472 = vperm.slane %v470, 0
    %v473 = vperm.slane %v470, 1
    %v474 = vperm.slane %v470, 2
    %v475 = vperm.slane %v470, 3
    %481 = vset.pattern.permute.xlu0 0
    %482 = vperm.xlu0 %481, %v469
    %v483 = vpop.permute.xlu0 %482
    %v486 = vperm.slane %v126, 0
    %v487 = vperm.slane %v126, 1
    %v488 = vperm.slane %v126, 2
    %v489 = vperm.slane %v126, 3
    %v494 = vmul.f32 %v483, %v486
    %v495 = vmul.f32 %v483, %v487
    %v496 = vmul.f32 %v483, %v488
    %v497 = vmul.f32 %v483, %v489
    %v498 = vadd.f32 %v494, %v472
    %v499 = vadd.f32 %v495, %v473
    %v500 = vadd.f32 %v496, %v474
    %v501 = vadd.f32 %v497, %v475
    %502 = vst [vmem:[#allocation2] sm:$0xff] %v498
    %503 = vst [vmem:[#allocation2 + $0x8] sm:$0xff] %v499
    %504 = vst [vmem:[#allocation2 + $0x10] sm:$0xff] %v500
    %505 = vst [vmem:[#allocation2 + $0x18] sm:$0xff] %v501
    %506 = vset.pattern.permute.xlu0 1
    %507 = vperm.xlu0 %506, %v469
    %v508 = vpop.permute.xlu0 %507
    %v510 = vmul.f32 %v508, %v486
    %v511 = vmul.f32 %v508, %v487
    %v512 = vmul.f32 %v508, %v488
    %v513 = vmul.f32 %v508, %v489
    %v514 = vadd.f32 %v510, %v472
    %v515 = vadd.f32 %v511, %v473
    %v516 = vadd.f32 %v512, %v474
    %v517 = vadd.f32 %v513, %v475
    %s518 = scalar_lea.vmem [#allocation2], 32
    %519 = vst [vmem:[%s518] sm:$0xff] %v514
    %520 = vst [vmem:[%s518 + $0x8] sm:$0xff] %v515
    %521 = vst [vmem:[%s518 + $0x10] sm:$0xff] %v516
    %522 = vst [vmem:[%s518 + $0x18] sm:$0xff] %v517
    %523 = vset.pattern.permute.xlu0 2
    %524 = vperm.xlu0 %523, %v469
    %v525 = vpop.permute.xlu0 %524
    %v527 = vmul.f32 %v525, %v486
    %v528 = vmul.f32 %v525, %v487
    %v529 = vmul.f32 %v525, %v488
    %v530 = vmul.f32 %v525, %v489
    %v531 = vadd.f32 %v527, %v472
    %v532 = vadd.f32 %v528, %v473
    %v533 = vadd.f32 %v529, %v474
    %v534 = vadd.f32 %v530, %v475
    %s535 = scalar_lea.vmem [#allocation2], 64
    %536 = vst [vmem:[%s535] sm:$0xff] %v531
    %537 = vst [vmem:[%s535 + $0x8] sm:$0xff] %v532
    %538 = vst [vmem:[%s535 + $0x10] sm:$0xff] %v533
    %539 = vst [vmem:[%s535 + $0x18] sm:$0xff] %v534
    %540 = vset.pattern.permute.xlu0 3
    %541 = vperm.xlu0 %540, %v469
    %v542 = vpop.permute.xlu0 %541
    %v544 = vmul.f32 %v542, %v486
    %v545 = vmul.f32 %v542, %v487
    %v546 = vmul.f32 %v542, %v488
    %v547 = vmul.f32 %v542, %v489
    %v548 = vadd.f32 %v544, %v472
    %v549 = vadd.f32 %v545, %v473
    %v550 = vadd.f32 %v546, %v474
    %v551 = vadd.f32 %v547, %v475
    %s552 = scalar_lea.vmem [#allocation2], 96
    %553 = vst [vmem:[%s552] sm:$0xff] %v548
    %554 = vst [vmem:[%s552 + $0x8] sm:$0xff] %v549
    %555 = vst [vmem:[%s552 + $0x10] sm:$0xff] %v550
    %556 = vst [vmem:[%s552 + $0x18] sm:$0xff] %v551
    %557 = vset.pattern.permute.xlu0 4
    %558 = vperm.xlu0 %557, %v469
    %v559 = vpop.permute.xlu0 %558
    %v561 = vmul.f32 %v559, %v486
    %v562 = vmul.f32 %v559, %v487
    %v563 = vmul.f32 %v559, %v488
    %v564 = vmul.f32 %v559, %v489
    %v565 = vadd.f32 %v561, %v472
    %v566 = vadd.f32 %v562, %v473
    %v567 = vadd.f32 %v563, %v474
    %v568 = vadd.f32 %v564, %v475
    %s569 = scalar_lea.vmem [#allocation2], 128
    %570 = vst [vmem:[%s569] sm:$0xff] %v565
    %571 = vst [vmem:[%s569 + $0x8] sm:$0xff] %v566
    %572 = vst [vmem:[%s569 + $0x10] sm:$0xff] %v567
    %573 = vst [vmem:[%s569 + $0x18] sm:$0xff] %v568
    %574 = vset.pattern.permute.xlu0 5
    %575 = vperm.xlu0 %574, %v469
    %v576 = vpop.permute.xlu0 %575
    %v578 = vmul.f32 %v576, %v486
    %v579 = vmul.f32 %v576, %v487
    %v580 = vmul.f32 %v576, %v488
    %v581 = vmul.f32 %v576, %v489
    %v582 = vadd.f32 %v578, %v472
    %v583 = vadd.f32 %v579, %v473
    %v584 = vadd.f32 %v580, %v474
    %v585 = vadd.f32 %v581, %v475
    %s586 = scalar_lea.vmem [#allocation2], 160
    %587 = vst [vmem:[%s586] sm:$0xff] %v582
    %588 = vst [vmem:[%s586 + $0x8] sm:$0xff] %v583
    %589 = vst [vmem:[%s586 + $0x10] sm:$0xff] %v584
    %590 = vst [vmem:[%s586 + $0x18] sm:$0xff] %v585
    %591 = vset.pattern.permute.xlu0 6
    %592 = vperm.xlu0 %591, %v469
    %v593 = vpop.permute.xlu0 %592
    %v595 = vmul.f32 %v593, %v486
    %v596 = vmul.f32 %v593, %v487
    %v597 = vmul.f32 %v593, %v488
    %v598 = vmul.f32 %v593, %v489
    %v599 = vadd.f32 %v595, %v472
    %v600 = vadd.f32 %v596, %v473
    %v601 = vadd.f32 %v597, %v474
    %v602 = vadd.f32 %v598, %v475
    %s603 = scalar_lea.vmem [#allocation2], 192
    %604 = vst [vmem:[%s603] sm:$0xff] %v599
    %605 = vst [vmem:[%s603 + $0x8] sm:$0xff] %v600
    %606 = vst [vmem:[%s603 + $0x10] sm:$0xff] %v601
    %607 = vst [vmem:[%s603 + $0x18] sm:$0xff] %v602
    %608 = vset.pattern.permute.xlu0 7
    %609 = vperm.xlu0 %608, %v469
    %v610 = vpop.permute.xlu0 %609
    %v612 = vmul.f32 %v610, %v486
    %v613 = vmul.f32 %v610, %v487
    %v614 = vmul.f32 %v610, %v488
    %v615 = vmul.f32 %v610, %v489
    %v616 = vadd.f32 %v612, %v472
    %v617 = vadd.f32 %v613, %v473
    %v618 = vadd.f32 %v614, %v474
    %v619 = vadd.f32 %v615, %v475
    %s620 = scalar_lea.vmem [#allocation2], 224
    %621 = vst [vmem:[%s620] sm:$0xff] %v616
    %622 = vst [vmem:[%s620 + $0x8] sm:$0xff] %v617
    %623 = vst [vmem:[%s620 + $0x10] sm:$0xff] %v618
    %624 = vst [vmem:[%s620 + $0x18] sm:$0xff] %v619
    %v625 = vld [vmem:[#allocation2] sm:$0xff]
    %v626 = vld [vmem:[#allocation2 + $0x8] sm:$0xff]
    %v627 = vld [vmem:[#allocation2 + $0x10] sm:$0xff]
    %v628 = vld [vmem:[#allocation2 + $0x18] sm:$0xff]
    %629 = vmatpush.msra.mxu0 %v187
    %630 = vmatpush.msra.mxu0 %v183
    %631 = vmatpush.msra.mxu0 %v179
    %632 = vmatpush.msra.mxu0 %v175
    %633 = vmatpush.msra.mxu0 %v171
    %634 = vmatpush.msra.mxu0 %v167
    %635 = vmatpush.msra.mxu0 %v163
    %636 = vmatpush.msra.mxu0 %v159
    %637 = vmatpush.msra.mxu0 %v155
    %638 = vmatpush.msra.mxu0 %v151
    %639 = vmatpush.msra.mxu0 %v147
    %640 = vmatpush.msra.mxu0 %v143
    %641 = vmatpush.msra.mxu0 %v139
    %642 = vmatpush.msra.mxu0 %v135
    %643 = vmatpush.msra.mxu0 %v131
    %644 = vmatpush.msra.mxu0 %v127
    %645 = vmatmul.f32.gmra.mxu0 0.0
    %v646 = vpop.f32.mrf.mxu0
    %v647 = vadd.f32 0.0, %v646
    %648 = vdwg.mxu0
    %649 = vmatpush.msra.mxu0 %v188
    %650 = vmatpush.msra.mxu0 %v184
    %651 = vmatpush.msra.mxu0 %v180
    %652 = vmatpush.msra.mxu0 %v176
    %653 = vmatpush.msra.mxu0 %v172
    %654 = vmatpush.msra.mxu0 %v168
    %655 = vmatpush.msra.mxu0 %v164
    %656 = vmatpush.msra.mxu0 %v160
    %657 = vmatpush.msra.mxu0 %v156
    %658 = vmatpush.msra.mxu0 %v152
    %659 = vmatpush.msra.mxu0 %v148
    %660 = vmatpush.msra.mxu0 %v144
    %661 = vmatpush.msra.mxu0 %v140
    %662 = vmatpush.msra.mxu0 %v136
    %663 = vmatpush.msra.mxu0 %v132
    %664 = vmatpush.msra.mxu0 %v128
    %665 = vmatmul.f32.gmra.mxu0 0.0
    %v666 = vpop.f32.mrf.mxu0
    %v667 = vadd.f32 0.0, %v666
    %668 = vdwg.mxu0
    %669 = vmatpush.msra.mxu0 %v189
    %670 = vmatpush.msra.mxu0 %v185
    %671 = vmatpush.msra.mxu0 %v181
    %672 = vmatpush.msra.mxu0 %v177
    %673 = vmatpush.msra.mxu0 %v173
    %674 = vmatpush.msra.mxu0 %v169
    %675 = vmatpush.msra.mxu0 %v165
    %676 = vmatpush.msra.mxu0 %v161
    %677 = vmatpush.msra.mxu0 %v157
    %678 = vmatpush.msra.mxu0 %v153
    %679 = vmatpush.msra.mxu0 %v149
    %680 = vmatpush.msra.mxu0 %v145
    %681 = vmatpush.msra.mxu0 %v141
    %682 = vmatpush.msra.mxu0 %v137
    %683 = vmatpush.msra.mxu0 %v133
    %684 = vmatpush.msra.mxu0 %v129
    %685 = vmatmul.f32.gmra.mxu0 0.0
    %v686 = vpop.f32.mrf.mxu0
    %v687 = vadd.f32 0.0, %v686
    %688 = vdwg.mxu0
    %689 = vmatpush.msra.mxu0 %v190
    %690 = vmatpush.msra.mxu0 %v186
    %691 = vmatpush.msra.mxu0 %v182
    %692 = vmatpush.msra.mxu0 %v178
    %693 = vmatpush.msra.mxu0 %v174
    %694 = vmatpush.msra.mxu0 %v170
    %695 = vmatpush.msra.mxu0 %v166
    %696 = vmatpush.msra.mxu0 %v162
    %697 = vmatpush.msra.mxu0 %v158
    %698 = vmatpush.msra.mxu0 %v154
    %699 = vmatpush.msra.mxu0 %v150
    %700 = vmatpush.msra.mxu0 %v146
    %701 = vmatpush.msra.mxu0 %v142
    %702 = vmatpush.msra.mxu0 %v138
    %703 = vmatpush.msra.mxu0 %v134
    %704 = vmatpush.msra.mxu0 %v130
    %705 = vmatmul.f32.gmra.mxu0 0.0
    %v706 = vpop.f32.mrf.mxu0
    %v707 = vadd.f32 0.0, %v706
    %708 = vdwg.mxu0
    %v709 = vadd.f32 %v625, %v647
    %v710 = vadd.f32 %v626, %v667
    %v711 = vadd.f32 %v627, %v687
    %v712 = vadd.f32 %v628, %v707
    %v713 = vmul.f32 %v709, 0.5
    %v714 = vmul.f32 %v710, 0.5
    %v715 = vmul.f32 %v711, 0.5
    %v716 = vtanh.pop %v713
    %v717 = vtanh.pop %v714
    %v718 = vtanh.pop %v715
    %v719 = vmul.f32 %v716, 0.5
    %v720 = vmul.f32 %v717, 0.5
    %v721 = vmul.f32 %v718, 0.5
    %v722 = vadd.f32 %v719, 0.5
    %v723 = vadd.f32 %v720, 0.5
    %v724 = vadd.f32 %v721, 0.5
    %v725 = vtanh.pop %v712
    %v726 = vmul.f32 %v723, 0.0
    %v727 = vmul.f32 %v722, %v725
    %v728 = vadd.f32 %v726, %v727
    %v729 = vtanh.pop %v728
    %v730 = vmul.f32 %v724, %v729
    %731 = vmatpush.msra.mxu0 %v379
    %732 = vmatpush.msra.mxu0 %v375
    %733 = vmatpush.msra.mxu0 %v371
    %734 = vmatpush.msra.mxu0 %v367
    %735 = vmatpush.msra.mxu0 %v363
    %736 = vmatpush.msra.mxu0 %v359
    %737 = vmatpush.msra.mxu0 %v355
    %738 = vmatpush.msra.mxu0 %v351
    %739 = vmatpush.msra.mxu0 %v347
    %740 = vmatpush.msra.mxu0 %v343
    %741 = vmatpush.msra.mxu0 %v339
    %742 = vmatpush.msra.mxu0 %v335
    %743 = vmatpush.msra.mxu0 %v331
    %744 = vmatpush.msra.mxu0 %v327
    %745 = vmatpush.msra.mxu0 %v323
    %746 = vmatpush.msra.mxu0 %v319
    %747 = vmatmul.f32.gmra.mxu0 %v730
    %v748 = vpop.f32.mrf.mxu0
    %v749 = vadd.f32 %v451, %v748
    %750 = vdwg.mxu0
    %751 = vmatpush.msra.mxu0 %v443
    %752 = vmatpush.msra.mxu0 %v439
    %753 = vmatpush.msra.mxu0 %v435
    %754 = vmatpush.msra.mxu0 %v431
    %755 = vmatpush.msra.mxu0 %v427
    %756 = vmatpush.msra.mxu0 %v423
    %757 = vmatpush.msra.mxu0 %v419
    %758 = vmatpush.msra.mxu0 %v415
    %759 = vmatpush.msra.mxu0 %v411
    %760 = vmatpush.msra.mxu0 %v407
    %761 = vmatpush.msra.mxu0 %v403
    %762 = vmatpush.msra.mxu0 %v399
    %763 = vmatpush.msra.mxu0 %v395
    %764 = vmatpush.msra.mxu0 %v391
    %765 = vmatpush.msra.mxu0 %v387
    %766 = vmatpush.msra.mxu0 %v383
    %767 = vmatmul.f32.gmra.mxu0 0.0
    %v768 = vpop.f32.mrf.mxu0
    %v769 = vadd.f32 %v749, %v768
    %770 = vdwg.mxu0
    %771 = vmatpush.msra.mxu0 %v380
    %772 = vmatpush.msra.mxu0 %v376
    %773 = vmatpush.msra.mxu0 %v372
    %774 = vmatpush.msra.mxu0 %v368
    %775 = vmatpush.msra.mxu0 %v364
    %776 = vmatpush.msra.mxu0 %v360
    %777 = vmatpush.msra.mxu0 %v356
    %778 = vmatpush.msra.mxu0 %v352
    %779 = vmatpush.msra.mxu0 %v348
    %780 = vmatpush.msra.mxu0 %v344
    %781 = vmatpush.msra.mxu0 %v340
    %782 = vmatpush.msra.mxu0 %v336
    %783 = vmatpush.msra.mxu0 %v332
    %784 = vmatpush.msra.mxu0 %v328
    %785 = vmatpush.msra.mxu0 %v324
    %786 = vmatpush.msra.mxu0 %v320
    %787 = vmatmul.f32.gmra.mxu0 %v730
    %v788 = vpop.f32.mrf.mxu0
    %v789 = vadd.f32 %v452, %v788
    %790 = vdwg.mxu0
    %791 = vmatpush.msra.mxu0 %v444
    %792 = vmatpush.msra.mxu0 %v440
    %793 = vmatpush.msra.mxu0 %v436
    %794 = vmatpush.msra.mxu0 %v432
    %795 = vmatpush.msra.mxu0 %v428
    %796 = vmatpush.msra.mxu0 %v424
    %797 = vmatpush.msra.mxu0 %v420
    %798 = vmatpush.msra.mxu0 %v416
    %799 = vmatpush.msra.mxu0 %v412
    %800 = vmatpush.msra.mxu0 %v408
    %801 = vmatpush.msra.mxu0 %v404
    %802 = vmatpush.msra.mxu0 %v400
    %803 = vmatpush.msra.mxu0 %v396
    %804 = vmatpush.msra.mxu0 %v392
    %805 = vmatpush.msra.mxu0 %v388
    %806 = vmatpush.msra.mxu0 %v384
    %807 = vmatmul.f32.gmra.mxu0 0.0
    %v808 = vpop.f32.mrf.mxu0
    %v809 = vadd.f32 %v789, %v808
    %810 = vdwg.mxu0
    %811 = vmatpush.msra.mxu0 %v381
    %812 = vmatpush.msra.mxu0 %v377
    %813 = vmatpush.msra.mxu0 %v373
    %814 = vmatpush.msra.mxu0 %v369
    %815 = vmatpush.msra.mxu0 %v365
    %816 = vmatpush.msra.mxu0 %v361
    %817 = vmatpush.msra.mxu0 %v357
    %818 = vmatpush.msra.mxu0 %v353
    %819 = vmatpush.msra.mxu0 %v349
    %820 = vmatpush.msra.mxu0 %v345
    %821 = vmatpush.msra.mxu0 %v341
    %822 = vmatpush.msra.mxu0 %v337
    %823 = vmatpush.msra.mxu0 %v333
    %824 = vmatpush.msra.mxu0 %v329
    %825 = vmatpush.msra.mxu0 %v325
    %826 = vmatpush.msra.mxu0 %v321
    %827 = vmatmul.f32.gmra.mxu0 %v730
    %v828 = vpop.f32.mrf.mxu0
    %v829 = vadd.f32 %v453, %v828
    %830 = vdwg.mxu0
    %831 = vmatpush.msra.mxu0 %v445
    %832 = vmatpush.msra.mxu0 %v441
    %833 = vmatpush.msra.mxu0 %v437
    %834 = vmatpush.msra.mxu0 %v433
    %835 = vmatpush.msra.mxu0 %v429
    %836 = vmatpush.msra.mxu0 %v425
    %837 = vmatpush.msra.mxu0 %v421
    %838 = vmatpush.msra.mxu0 %v417
    %839 = vmatpush.msra.mxu0 %v413
    %840 = vmatpush.msra.mxu0 %v409
    %841 = vmatpush.msra.mxu0 %v405
    %842 = vmatpush.msra.mxu0 %v401
    %843 = vmatpush.msra.mxu0 %v397
    %844 = vmatpush.msra.mxu0 %v393
    %845 = vmatpush.msra.mxu0 %v389
    %846 = vmatpush.msra.mxu0 %v385
    %847 = vmatmul.f32.gmra.mxu0 0.0
    %v848 = vpop.f32.mrf.mxu0
    %v849 = vadd.f32 %v829, %v848
    %850 = vdwg.mxu0
    %851 = vmatpush.msra.mxu0 %v382
    %852 = vmatpush.msra.mxu0 %v378
    %853 = vmatpush.msra.mxu0 %v374
    %854 = vmatpush.msra.mxu0 %v370
    %855 = vmatpush.msra.mxu0 %v366
    %856 = vmatpush.msra.mxu0 %v362
    %857 = vmatpush.msra.mxu0 %v358
    %858 = vmatpush.msra.mxu0 %v354
    %859 = vmatpush.msra.mxu0 %v350
    %860 = vmatpush.msra.mxu0 %v346
    %861 = vmatpush.msra.mxu0 %v342
    %862 = vmatpush.msra.mxu0 %v338
    %863 = vmatpush.msra.mxu0 %v334
    %864 = vmatpush.msra.mxu0 %v330
    %865 = vmatpush.msra.mxu0 %v326
    %866 = vmatpush.msra.mxu0 %v322
    %867 = vmatmul.f32.gmra.mxu0 %v730
    %v868 = vpop.f32.mrf.mxu0
    %v869 = vadd.f32 %v454, %v868
    %870 = vdwg.mxu0
    %871 = vmatpush.msra.mxu0 %v446
    %872 = vmatpush.msra.mxu0 %v442
    %873 = vmatpush.msra.mxu0 %v438
    %874 = vmatpush.msra.mxu0 %v434
    %875 = vmatpush.msra.mxu0 %v430
    %876 = vmatpush.msra.mxu0 %v426
    %877 = vmatpush.msra.mxu0 %v422
    %878 = vmatpush.msra.mxu0 %v418
    %879 = vmatpush.msra.mxu0 %v414
    %880 = vmatpush.msra.mxu0 %v410
    %881 = vmatpush.msra.mxu0 %v406
    %882 = vmatpush.msra.mxu0 %v402
    %883 = vmatpush.msra.mxu0 %v398
    %884 = vmatpush.msra.mxu0 %v394
    %885 = vmatpush.msra.mxu0 %v390
    %886 = vmatpush.msra.mxu0 %v386
    %887 = vmatmul.f32.gmra.mxu0 0.0
    %v888 = vpop.f32.mrf.mxu0
    %v889 = vadd.f32 %v869, %v888
    %890 = vdwg.mxu0
    %v891 = vmul.f32 %v769, 0.5
    %v892 = vmul.f32 %v809, 0.5
    %v893 = vmul.f32 %v849, 0.5
    %v894 = vtanh.pop %v891
    %v895 = vtanh.pop %v892
    %v896 = vtanh.pop %v893
    %v897 = vmul.f32 %v894, 0.5
    %v898 = vmul.f32 %v895, 0.5
    %v899 = vmul.f32 %v896, 0.5
    %v900 = vadd.f32 %v897, 0.5
    %v901 = vadd.f32 %v898, 0.5
    %v902 = vadd.f32 %v899, 0.5
    %v903 = vtanh.pop %v889
    %v904 = vmul.f32 %v901, 0.0
    %v905 = vmul.f32 %v900, %v903
    %v906 = vadd.f32 %v904, %v905
    %v907 = vtanh.pop %v906
    %v908 = vmul.f32 %v902, %v907
    %909 = vst [vmem:[#allocation3] sm:$0xff] %v908
    %v910 = vld [vmem:[%s518] sm:$0xff]
    %v911 = vld [vmem:[%s518 + $0x8] sm:$0xff]
    %v912 = vld [vmem:[%s518 + $0x10] sm:$0xff]
    %v913 = vld [vmem:[%s518 + $0x18] sm:$0xff]
    %914 = vmatpush.msra.mxu0 %v187
    %915 = vmatpush.msra.mxu0 %v183
    %916 = vmatpush.msra.mxu0 %v179
    %917 = vmatpush.msra.mxu0 %v175
    %918 = vmatpush.msra.mxu0 %v171
    %919 = vmatpush.msra.mxu0 %v167
    %920 = vmatpush.msra.mxu0 %v163
    %921 = vmatpush.msra.mxu0 %v159
    %922 = vmatpush.msra.mxu0 %v155
    %923 = vmatpush.msra.mxu0 %v151
    %924 = vmatpush.msra.mxu0 %v147
    %925 = vmatpush.msra.mxu0 %v143
    %926 = vmatpush.msra.mxu0 %v139
    %927 = vmatpush.msra.mxu0 %v135
    %928 = vmatpush.msra.mxu0 %v131
    %929 = vmatpush.msra.mxu0 %v127
    %930 = vmatmul.f32.gmra.mxu0 %v730
    %v931 = vpop.f32.mrf.mxu0
    %v932 = vadd.f32 0.0, %v931
    %933 = vdwg.mxu0
    %934 = vmatpush.msra.mxu0 %v188
    %935 = vmatpush.msra.mxu0 %v184
    %936 = vmatpush.msra.mxu0 %v180
    %937 = vmatpush.msra.mxu0 %v176
    %938 = vmatpush.msra.mxu0 %v172
    %939 = vmatpush.msra.mxu0 %v168
    %940 = vmatpush.msra.mxu0 %v164
    %941 = vmatpush.msra.mxu0 %v160
    %942 = vmatpush.msra.mxu0 %v156
    %943 = vmatpush.msra.mxu0 %v152
    %944 = vmatpush.msra.mxu0 %v148
    %945 = vmatpush.msra.mxu0 %v144
    %946 = vmatpush.msra.mxu0 %v140
    %947 = vmatpush.msra.mxu0 %v136
    %948 = vmatpush.msra.mxu0 %v132
    %949 = vmatpush.msra.mxu0 %v128
    %950 = vmatmul.f32.gmra.mxu0 %v730
    %v951 = vpop.f32.mrf.mxu0
    %v952 = vadd.f32 0.0, %v951
    %953 = vdwg.mxu0
    %954 = vmatpush.msra.mxu0 %v189
    %955 = vmatpush.msra.mxu0 %v185
    %956 = vmatpush.msra.mxu0 %v181
    %957 = vmatpush.msra.mxu0 %v177
    %958 = vmatpush.msra.mxu0 %v173
    %959 = vmatpush.msra.mxu0 %v169
    %960 = vmatpush.msra.mxu0 %v165
    %961 = vmatpush.msra.mxu0 %v161
    %962 = vmatpush.msra.mxu0 %v157
    %963 = vmatpush.msra.mxu0 %v153
    %964 = vmatpush.msra.mxu0 %v149
    %965 = vmatpush.msra.mxu0 %v145
    %966 = vmatpush.msra.mxu0 %v141
    %967 = vmatpush.msra.mxu0 %v137
    %968 = vmatpush.msra.mxu0 %v133
    %969 = vmatpush.msra.mxu0 %v129
    %970 = vmatmul.f32.gmra.mxu0 %v730
    %v971 = vpop.f32.mrf.mxu0
    %v972 = vadd.f32 0.0, %v971
    %973 = vdwg.mxu0
    %974 = vmatpush.msra.mxu0 %v190
    %975 = vmatpush.msra.mxu0 %v186
    %976 = vmatpush.msra.mxu0 %v182
    %977 = vmatpush.msra.mxu0 %v178
    %978 = vmatpush.msra.mxu0 %v174
    %979 = vmatpush.msra.mxu0 %v170
    %980 = vmatpush.msra.mxu0 %v166
    %981 = vmatpush.msra.mxu0 %v162
    %982 = vmatpush.msra.mxu0 %v158
    %983 = vmatpush.msra.mxu0 %v154
    %984 = vmatpush.msra.mxu0 %v150
    %985 = vmatpush.msra.mxu0 %v146
    %986 = vmatpush.msra.mxu0 %v142
    %987 = vmatpush.msra.mxu0 %v138
    %988 = vmatpush.msra.mxu0 %v134
    %989 = vmatpush.msra.mxu0 %v130
    %990 = vmatmul.f32.gmra.mxu0 %v730
    %v991 = vpop.f32.mrf.mxu0
    %v992 = vadd.f32 0.0, %v991
    %993 = vdwg.mxu0
    %v994 = vadd.f32 %v910, %v932
    %v995 = vadd.f32 %v911, %v952
    %v996 = vadd.f32 %v912, %v972
    %v997 = vadd.f32 %v913, %v992
    %v998 = vmul.f32 %v994, 0.5
    %v999 = vmul.f32 %v995, 0.5
    %v1000 = vmul.f32 %v996, 0.5
    %v1001 = vtanh.pop %v998
    %v1002 = vtanh.pop %v999
    %v1003 = vtanh.pop %v1000
    %v1004 = vmul.f32 %v1001, 0.5
    %v1005 = vmul.f32 %v1002, 0.5
    %v1006 = vmul.f32 %v1003, 0.5
    %v1007 = vadd.f32 %v1004, 0.5
    %v1008 = vadd.f32 %v1005, 0.5
    %v1009 = vadd.f32 %v1006, 0.5
    %v1010 = vtanh.pop %v997
    %v1011 = vmul.f32 %v1008, %v728
    %v1012 = vmul.f32 %v1007, %v1010
    %v1013 = vadd.f32 %v1011, %v1012
    %v1014 = vtanh.pop %v1013
    %v1015 = vmul.f32 %v1009, %v1014
    %1016 = vmatpush.msra.mxu0 %v379
    %1017 = vmatpush.msra.mxu0 %v375
    %1018 = vmatpush.msra.mxu0 %v371
    %1019 = vmatpush.msra.mxu0 %v367
    %1020 = vmatpush.msra.mxu0 %v363
    %1021 = vmatpush.msra.mxu0 %v359
    %1022 = vmatpush.msra.mxu0 %v355
    %1023 = vmatpush.msra.mxu0 %v351
    %1024 = vmatpush.msra.mxu0 %v347
    %1025 = vmatpush.msra.mxu0 %v343
    %1026 = vmatpush.msra.mxu0 %v339
    %1027 = vmatpush.msra.mxu0 %v335
    %1028 = vmatpush.msra.mxu0 %v331
    %1029 = vmatpush.msra.mxu0 %v327
    %1030 = vmatpush.msra.mxu0 %v323
    %1031 = vmatpush.msra.mxu0 %v319
    %1032 = vmatmul.f32.gmra.mxu0 %v1015
    %v1033 = vpop.f32.mrf.mxu0
    %v1034 = vadd.f32 %v451, %v1033
    %1035 = vdwg.mxu0
    %1036 = vmatpush.msra.mxu0 %v443
    %1037 = vmatpush.msra.mxu0 %v439
    %1038 = vmatpush.msra.mxu0 %v435
    %1039 = vmatpush.msra.mxu0 %v431
    %1040 = vmatpush.msra.mxu0 %v427
    %1041 = vmatpush.msra.mxu0 %v423
    %1042 = vmatpush.msra.mxu0 %v419
    %1043 = vmatpush.msra.mxu0 %v415
    %1044 = vmatpush.msra.mxu0 %v411
    %1045 = vmatpush.msra.mxu0 %v407
    %1046 = vmatpush.msra.mxu0 %v403
    %1047 = vmatpush.msra.mxu0 %v399
    %1048 = vmatpush.msra.mxu0 %v395
    %1049 = vmatpush.msra.mxu0 %v391
    %1050 = vmatpush.msra.mxu0 %v387
    %1051 = vmatpush.msra.mxu0 %v383
    %1052 = vmatmul.f32.gmra.mxu0 %v908
    %v1053 = vpop.f32.mrf.mxu0
    %v1054 = vadd.f32 %v1034, %v1053
    %1055 = vdwg.mxu0
    %1056 = vmatpush.msra.mxu0 %v380
    %1057 = vmatpush.msra.mxu0 %v376
    %1058 = vmatpush.msra.mxu0 %v372
    %1059 = vmatpush.msra.mxu0 %v368
    %1060 = vmatpush.msra.mxu0 %v364
    %1061 = vmatpush.msra.mxu0 %v360
    %1062 = vmatpush.msra.mxu0 %v356
    %1063 = vmatpush.msra.mxu0 %v352
    %1064 = vmatpush.msra.mxu0 %v348
    %1065 = vmatpush.msra.mxu0 %v344
    %1066 = vmatpush.msra.mxu0 %v340
    %1067 = vmatpush.msra.mxu0 %v336
    %1068 = vmatpush.msra.mxu0 %v332
    %1069 = vmatpush.msra.mxu0 %v328
    %1070 = vmatpush.msra.mxu0 %v324
    %1071 = vmatpush.msra.mxu0 %v320
    %1072 = vmatmul.f32.gmra.mxu0 %v1015
    %v1073 = vpop.f32.mrf.mxu0
    %v1074 = vadd.f32 %v452, %v1073
    %1075 = vdwg.mxu0
    %1076 = vmatpush.msra.mxu0 %v444
    %1077 = vmatpush.msra.mxu0 %v440
    %1078 = vmatpush.msra.mxu0 %v436
    %1079 = vmatpush.msra.mxu0 %v432
    %1080 = vmatpush.msra.mxu0 %v428
    %1081 = vmatpush.msra.mxu0 %v424
    %1082 = vmatpush.msra.mxu0 %v420
    %1083 = vmatpush.msra.mxu0 %v416
    %1084 = vmatpush.msra.mxu0 %v412
    %1085 = vmatpush.msra.mxu0 %v408
    %1086 = vmatpush.msra.mxu0 %v404
    %1087 = vmatpush.msra.mxu0 %v400
    %1088 = vmatpush.msra.mxu0 %v396
    %1089 = vmatpush.msra.mxu0 %v392
    %1090 = vmatpush.msra.mxu0 %v388
    %1091 = vmatpush.msra.mxu0 %v384
    %1092 = vmatmul.f32.gmra.mxu0 %v908
    %v1093 = vpop.f32.mrf.mxu0
    %v1094 = vadd.f32 %v1074, %v1093
    %1095 = vdwg.mxu0
    %1096 = vmatpush.msra.mxu0 %v381
    %1097 = vmatpush.msra.mxu0 %v377
    %1098 = vmatpush.msra.mxu0 %v373
    %1099 = vmatpush.msra.mxu0 %v369
    %1100 = vmatpush.msra.mxu0 %v365
    %1101 = vmatpush.msra.mxu0 %v361
    %1102 = vmatpush.msra.mxu0 %v357
    %1103 = vmatpush.msra.mxu0 %v353
    %1104 = vmatpush.msra.mxu0 %v349
    %1105 = vmatpush.msra.mxu0 %v345
    %1106 = vmatpush.msra.mxu0 %v341
    %1107 = vmatpush.msra.mxu0 %v337
    %1108 = vmatpush.msra.mxu0 %v333
    %1109 = vmatpush.msra.mxu0 %v329
    %1110 = vmatpush.msra.mxu0 %v325
    %1111 = vmatpush.msra.mxu0 %v321
    %1112 = vmatmul.f32.gmra.mxu0 %v1015
    %v1113 = vpop.f32.mrf.mxu0
    %v1114 = vadd.f32 %v453, %v1113
    %1115 = vdwg.mxu0
    %1116 = vmatpush.msra.mxu0 %v445
    %1117 = vmatpush.msra.mxu0 %v441
    %1118 = vmatpush.msra.mxu0 %v437
    %1119 = vmatpush.msra.mxu0 %v433
    %1120 = vmatpush.msra.mxu0 %v429
    %1121 = vmatpush.msra.mxu0 %v425
    %1122 = vmatpush.msra.mxu0 %v421
    %1123 = vmatpush.msra.mxu0 %v417
    %1124 = vmatpush.msra.mxu0 %v413
    %1125 = vmatpush.msra.mxu0 %v409
    %1126 = vmatpush.msra.mxu0 %v405
    %1127 = vmatpush.msra.mxu0 %v401
    %1128 = vmatpush.msra.mxu0 %v397
    %1129 = vmatpush.msra.mxu0 %v393
    %1130 = vmatpush.msra.mxu0 %v389
    %1131 = vmatpush.msra.mxu0 %v385
    %1132 = vmatmul.f32.gmra.mxu0 %v908
    %v1133 = vpop.f32.mrf.mxu0
    %v1134 = vadd.f32 %v1114, %v1133
    %1135 = vdwg.mxu0
    %1136 = vmatpush.msra.mxu0 %v382
    %1137 = vmatpush.msra.mxu0 %v378
    %1138 = vmatpush.msra.mxu0 %v374
    %1139 = vmatpush.msra.mxu0 %v370
    %1140 = vmatpush.msra.mxu0 %v366
    %1141 = vmatpush.msra.mxu0 %v362
    %1142 = vmatpush.msra.mxu0 %v358
    %1143 = vmatpush.msra.mxu0 %v354
    %1144 = vmatpush.msra.mxu0 %v350
    %1145 = vmatpush.msra.mxu0 %v346
    %1146 = vmatpush.msra.mxu0 %v342
    %1147 = vmatpush.msra.mxu0 %v338
    %1148 = vmatpush.msra.mxu0 %v334
    %1149 = vmatpush.msra.mxu0 %v330
    %1150 = vmatpush.msra.mxu0 %v326
    %1151 = vmatpush.msra.mxu0 %v322
    %1152 = vmatmul.f32.gmra.mxu0 %v1015
    %v1153 = vpop.f32.mrf.mxu0
    %v1154 = vadd.f32 %v454, %v1153
    %1155 = vdwg.mxu0
    %1156 = vmatpush.msra.mxu0 %v446
    %1157 = vmatpush.msra.mxu0 %v442
    %1158 = vmatpush.msra.mxu0 %v438
    %1159 = vmatpush.msra.mxu0 %v434
    %1160 = vmatpush.msra.mxu0 %v430
    %1161 = vmatpush.msra.mxu0 %v426
    %1162 = vmatpush.msra.mxu0 %v422
    %1163 = vmatpush.msra.mxu0 %v418
    %1164 = vmatpush.msra.mxu0 %v414
    %1165 = vmatpush.msra.mxu0 %v410
    %1166 = vmatpush.msra.mxu0 %v406
    %1167 = vmatpush.msra.mxu0 %v402
    %1168 = vmatpush.msra.mxu0 %v398
    %1169 = vmatpush.msra.mxu0 %v394
    %1170 = vmatpush.msra.mxu0 %v390
    %1171 = vmatpush.msra.mxu0 %v386
    %1172 = vmatmul.f32.gmra.mxu0 %v908
    %v1173 = vpop.f32.mrf.mxu0
    %v1174 = vadd.f32 %v1154, %v1173
    %1175 = vdwg.mxu0
    %v1176 = vmul.f32 %v1054, 0.5
    %v1177 = vmul.f32 %v1094, 0.5
    %v1178 = vmul.f32 %v1134, 0.5
    %v1179 = vtanh.pop %v1176
    %v1180 = vtanh.pop %v1177
    %v1181 = vtanh.pop %v1178
    %v1182 = vmul.f32 %v1179, 0.5
    %v1183 = vmul.f32 %v1180, 0.5
    %v1184 = vmul.f32 %v1181, 0.5
    %v1185 = vadd.f32 %v1182, 0.5
    %v1186 = vadd.f32 %v1183, 0.5
    %v1187 = vadd.f32 %v1184, 0.5
    %v1188 = vtanh.pop %v1174
    %v1189 = vmul.f32 %v1186, %v906
    %v1190 = vmul.f32 %v1185, %v1188
    %v1191 = vadd.f32 %v1189, %v1190
    %v1192 = vtanh.pop %v1191
    %v1193 = vmul.f32 %v1187, %v1192
    %s1194 = scalar_lea.vmem [#allocation3], 8
    %1195 = vst [vmem:[%s1194] sm:$0xff] %v1193
    %v1196 = vld [vmem:[%s535] sm:$0xff]
    %v1197 = vld [vmem:[%s535 + $0x8] sm:$0xff]
    %v1198 = vld [vmem:[%s535 + $0x10] sm:$0xff]
    %v1199 = vld [vmem:[%s535 + $0x18] sm:$0xff]
    %1200 = vmatpush.msra.mxu0 %v187
    %1201 = vmatpush.msra.mxu0 %v183
    %1202 = vmatpush.msra.mxu0 %v179
    %1203 = vmatpush.msra.mxu0 %v175
    %1204 = vmatpush.msra.mxu0 %v171
    %1205 = vmatpush.msra.mxu0 %v167
    %1206 = vmatpush.msra.mxu0 %v163
    %1207 = vmatpush.msra.mxu0 %v159
    %1208 = vmatpush.msra.mxu0 %v155
    %1209 = vmatpush.msra.mxu0 %v151
    %1210 = vmatpush.msra.mxu0 %v147
    %1211 = vmatpush.msra.mxu0 %v143
    %1212 = vmatpush.msra.mxu0 %v139
    %1213 = vmatpush.msra.mxu0 %v135
    %1214 = vmatpush.msra.mxu0 %v131
    %1215 = vmatpush.msra.mxu0 %v127
    %1216 = vmatmul.f32.gmra.mxu0 %v1015
    %v1217 = vpop.f32.mrf.mxu0
    %v1218 = vadd.f32 0.0, %v1217
    %1219 = vdwg.mxu0
    %1220 = vmatpush.msra.mxu0 %v188
    %1221 = vmatpush.msra.mxu0 %v184
    %1222 = vmatpush.msra.mxu0 %v180
    %1223 = vmatpush.msra.mxu0 %v176
    %1224 = vmatpush.msra.mxu0 %v172
    %1225 = vmatpush.msra.mxu0 %v168
    %1226 = vmatpush.msra.mxu0 %v164
    %1227 = vmatpush.msra.mxu0 %v160
    %1228 = vmatpush.msra.mxu0 %v156
    %1229 = vmatpush.msra.mxu0 %v152
    %1230 = vmatpush.msra.mxu0 %v148
    %1231 = vmatpush.msra.mxu0 %v144
    %1232 = vmatpush.msra.mxu0 %v140
    %1233 = vmatpush.msra.mxu0 %v136
    %1234 = vmatpush.msra.mxu0 %v132
    %1235 = vmatpush.msra.mxu0 %v128
    %1236 = vmatmul.f32.gmra.mxu0 %v1015
    %v1237 = vpop.f32.mrf.mxu0
    %v1238 = vadd.f32 0.0, %v1237
    %1239 = vdwg.mxu0
    %1240 = vmatpush.msra.mxu0 %v189
    %1241 = vmatpush.msra.mxu0 %v185
    %1242 = vmatpush.msra.mxu0 %v181
    %1243 = vmatpush.msra.mxu0 %v177
    %1244 = vmatpush.msra.mxu0 %v173
    %1245 = vmatpush.msra.mxu0 %v169
    %1246 = vmatpush.msra.mxu0 %v165
    %1247 = vmatpush.msra.mxu0 %v161
    %1248 = vmatpush.msra.mxu0 %v157
    %1249 = vmatpush.msra.mxu0 %v153
    %1250 = vmatpush.msra.mxu0 %v149
    %1251 = vmatpush.msra.mxu0 %v145
    %1252 = vmatpush.msra.mxu0 %v141
    %1253 = vmatpush.msra.mxu0 %v137
    %1254 = vmatpush.msra.mxu0 %v133
    %1255 = vmatpush.msra.mxu0 %v129
    %1256 = vmatmul.f32.gmra.mxu0 %v1015
    %v1257 = vpop.f32.mrf.mxu0
    %v1258 = vadd.f32 0.0, %v1257
    %1259 = vdwg.mxu0
    %1260 = vmatpush.msra.mxu0 %v190
    %1261 = vmatpush.msra.mxu0 %v186
    %1262 = vmatpush.msra.mxu0 %v182
    %1263 = vmatpush.msra.mxu0 %v178
    %1264 = vmatpush.msra.mxu0 %v174
    %1265 = vmatpush.msra.mxu0 %v170
    %1266 = vmatpush.msra.mxu0 %v166
    %1267 = vmatpush.msra.mxu0 %v162
    %1268 = vmatpush.msra.mxu0 %v158
    %1269 = vmatpush.msra.mxu0 %v154
    %1270 = vmatpush.msra.mxu0 %v150
    %1271 = vmatpush.msra.mxu0 %v146
    %1272 = vmatpush.msra.mxu0 %v142
    %1273 = vmatpush.msra.mxu0 %v138
    %1274 = vmatpush.msra.mxu0 %v134
    %1275 = vmatpush.msra.mxu0 %v130
    %1276 = vmatmul.f32.gmra.mxu0 %v1015
    %v1277 = vpop.f32.mrf.mxu0
    %v1278 = vadd.f32 0.0, %v1277
    %1279 = vdwg.mxu0
    %v1280 = vadd.f32 %v1196, %v1218
    %v1281 = vadd.f32 %v1197, %v1238
    %v1282 = vadd.f32 %v1198, %v1258
    %v1283 = vadd.f32 %v1199, %v1278
    %v1284 = vmul.f32 %v1280, 0.5
    %v1285 = vmul.f32 %v1281, 0.5
    %v1286 = vmul.f32 %v1282, 0.5
    %v1287 = vtanh.pop %v1284
    %v1288 = vtanh.pop %v1285
    %v1289 = vtanh.pop %v1286
    %v1290 = vmul.f32 %v1287, 0.5
    %v1291 = vmul.f32 %v1288, 0.5
    %v1292 = vmul.f32 %v1289, 0.5
    %v1293 = vadd.f32 %v1290, 0.5
    %v1294 = vadd.f32 %v1291, 0.5
    %v1295 = vadd.f32 %v1292, 0.5
    %v1296 = vtanh.pop %v1283
    %v1297 = vmul.f32 %v1294, %v1013
    %v1298 = vmul.f32 %v1293, %v1296
    %v1299 = vadd.f32 %v1297, %v1298
    %v1300 = vtanh.pop %v1299
    %v1301 = vmul.f32 %v1295, %v1300
    %1302 = vmatpush.msra.mxu0 %v379
    %1303 = vmatpush.msra.mxu0 %v375
    %1304 = vmatpush.msra.mxu0 %v371
    %1305 = vmatpush.msra.mxu0 %v367
    %1306 = vmatpush.msra.mxu0 %v363
    %1307 = vmatpush.msra.mxu0 %v359
    %1308 = vmatpush.msra.mxu0 %v355
    %1309 = vmatpush.msra.mxu0 %v351
    %1310 = vmatpush.msra.mxu0 %v347
    %1311 = vmatpush.msra.mxu0 %v343
    %1312 = vmatpush.msra.mxu0 %v339
    %1313 = vmatpush.msra.mxu0 %v335
    %1314 = vmatpush.msra.mxu0 %v331
    %1315 = vmatpush.msra.mxu0 %v327
    %1316 = vmatpush.msra.mxu0 %v323
    %1317 = vmatpush.msra.mxu0 %v319
    %1318 = vmatmul.f32.gmra.mxu0 %v1301
    %v1319 = vpop.f32.mrf.mxu0
    %v1320 = vadd.f32 %v451, %v1319
    %1321 = vdwg.mxu0
    %1322 = vmatpush.msra.mxu0 %v443
    %1323 = vmatpush.msra.mxu0 %v439
    %1324 = vmatpush.msra.mxu0 %v435
    %1325 = vmatpush.msra.mxu0 %v431
    %1326 = vmatpush.msra.mxu0 %v427
    %1327 = vmatpush.msra.mxu0 %v423
    %1328 = vmatpush.msra.mxu0 %v419
    %1329 = vmatpush.msra.mxu0 %v415
    %1330 = vmatpush.msra.mxu0 %v411
    %1331 = vmatpush.msra.mxu0 %v407
    %1332 = vmatpush.msra.mxu0 %v403
    %1333 = vmatpush.msra.mxu0 %v399
    %1334 = vmatpush.msra.mxu0 %v395
    %1335 = vmatpush.msra.mxu0 %v391
    %1336 = vmatpush.msra.mxu0 %v387
    %1337 = vmatpush.msra.mxu0 %v383
    %1338 = vmatmul.f32.gmra.mxu0 %v1193
    %v1339 = vpop.f32.mrf.mxu0
    %v1340 = vadd.f32 %v1320, %v1339
    %1341 = vdwg.mxu0
    %1342 = vmatpush.msra.mxu0 %v380
    %1343 = vmatpush.msra.mxu0 %v376
    %1344 = vmatpush.msra.mxu0 %v372
    %1345 = vmatpush.msra.mxu0 %v368
    %1346 = vmatpush.msra.mxu0 %v364
    %1347 = vmatpush.msra.mxu0 %v360
    %1348 = vmatpush.msra.mxu0 %v356
    %1349 = vmatpush.msra.mxu0 %v352
    %1350 = vmatpush.msra.mxu0 %v348
    %1351 = vmatpush.msra.mxu0 %v344
    %1352 = vmatpush.msra.mxu0 %v340
    %1353 = vmatpush.msra.mxu0 %v336
    %1354 = vmatpush.msra.mxu0 %v332
    %1355 = vmatpush.msra.mxu0 %v328
    %1356 = vmatpush.msra.mxu0 %v324
    %1357 = vmatpush.msra.mxu0 %v320
    %1358 = vmatmul.f32.gmra.mxu0 %v1301
    %v1359 = vpop.f32.mrf.mxu0
    %v1360 = vadd.f32 %v452, %v1359
    %1361 = vdwg.mxu0
    %1362 = vmatpush.msra.mxu0 %v444
    %1363 = vmatpush.msra.mxu0 %v440
    %1364 = vmatpush.msra.mxu0 %v436
    %1365 = vmatpush.msra.mxu0 %v432
    %1366 = vmatpush.msra.mxu0 %v428
    %1367 = vmatpush.msra.mxu0 %v424
    %1368 = vmatpush.msra.mxu0 %v420
    %1369 = vmatpush.msra.mxu0 %v416
    %1370 = vmatpush.msra.mxu0 %v412
    %1371 = vmatpush.msra.mxu0 %v408
    %1372 = vmatpush.msra.mxu0 %v404
    %1373 = vmatpush.msra.mxu0 %v400
    %1374 = vmatpush.msra.mxu0 %v396
    %1375 = vmatpush.msra.mxu0 %v392
    %1376 = vmatpush.msra.mxu0 %v388
    %1377 = vmatpush.msra.mxu0 %v384
    %1378 = vmatmul.f32.gmra.mxu0 %v1193
    %v1379 = vpop.f32.mrf.mxu0
    %v1380 = vadd.f32 %v1360, %v1379
    %1381 = vdwg.mxu0
    %1382 = vmatpush.msra.mxu0 %v381
    %1383 = vmatpush.msra.mxu0 %v377
    %1384 = vmatpush.msra.mxu0 %v373
    %1385 = vmatpush.msra.mxu0 %v369
    %1386 = vmatpush.msra.mxu0 %v365
    %1387 = vmatpush.msra.mxu0 %v361
    %1388 = vmatpush.msra.mxu0 %v357
    %1389 = vmatpush.msra.mxu0 %v353
    %1390 = vmatpush.msra.mxu0 %v349
    %1391 = vmatpush.msra.mxu0 %v345
    %1392 = vmatpush.msra.mxu0 %v341
    %1393 = vmatpush.msra.mxu0 %v337
    %1394 = vmatpush.msra.mxu0 %v333
    %1395 = vmatpush.msra.mxu0 %v329
    %1396 = vmatpush.msra.mxu0 %v325
    %1397 = vmatpush.msra.mxu0 %v321
    %1398 = vmatmul.f32.gmra.mxu0 %v1301
    %v1399 = vpop.f32.mrf.mxu0
    %v1400 = vadd.f32 %v453, %v1399
    %1401 = vdwg.mxu0
    %1402 = vmatpush.msra.mxu0 %v445
    %1403 = vmatpush.msra.mxu0 %v441
    %1404 = vmatpush.msra.mxu0 %v437
    %1405 = vmatpush.msra.mxu0 %v433
    %1406 = vmatpush.msra.mxu0 %v429
    %1407 = vmatpush.msra.mxu0 %v425
    %1408 = vmatpush.msra.mxu0 %v421
    %1409 = vmatpush.msra.mxu0 %v417
    %1410 = vmatpush.msra.mxu0 %v413
    %1411 = vmatpush.msra.mxu0 %v409
    %1412 = vmatpush.msra.mxu0 %v405
    %1413 = vmatpush.msra.mxu0 %v401
    %1414 = vmatpush.msra.mxu0 %v397
    %1415 = vmatpush.msra.mxu0 %v393
    %1416 = vmatpush.msra.mxu0 %v389
    %1417 = vmatpush.msra.mxu0 %v385
    %1418 = vmatmul.f32.gmra.mxu0 %v1193
    %v1419 = vpop.f32.mrf.mxu0
    %v1420 = vadd.f32 %v1400, %v1419
    %1421 = vdwg.mxu0
    %1422 = vmatpush.msra.mxu0 %v382
    %1423 = vmatpush.msra.mxu0 %v378
    %1424 = vmatpush.msra.mxu0 %v374
    %1425 = vmatpush.msra.mxu0 %v370
    %1426 = vmatpush.msra.mxu0 %v366
    %1427 = vmatpush.msra.mxu0 %v362
    %1428 = vmatpush.msra.mxu0 %v358
    %1429 = vmatpush.msra.mxu0 %v354
    %1430 = vmatpush.msra.mxu0 %v350
    %1431 = vmatpush.msra.mxu0 %v346
    %1432 = vmatpush.msra.mxu0 %v342
    %1433 = vmatpush.msra.mxu0 %v338
    %1434 = vmatpush.msra.mxu0 %v334
    %1435 = vmatpush.msra.mxu0 %v330
    %1436 = vmatpush.msra.mxu0 %v326
    %1437 = vmatpush.msra.mxu0 %v322
    %1438 = vmatmul.f32.gmra.mxu0 %v1301
    %v1439 = vpop.f32.mrf.mxu0
    %v1440 = vadd.f32 %v454, %v1439
    %1441 = vdwg.mxu0
    %1442 = vmatpush.msra.mxu0 %v446
    %1443 = vmatpush.msra.mxu0 %v442
    %1444 = vmatpush.msra.mxu0 %v438
    %1445 = vmatpush.msra.mxu0 %v434
    %1446 = vmatpush.msra.mxu0 %v430
    %1447 = vmatpush.msra.mxu0 %v426
    %1448 = vmatpush.msra.mxu0 %v422
    %1449 = vmatpush.msra.mxu0 %v418
    %1450 = vmatpush.msra.mxu0 %v414
    %1451 = vmatpush.msra.mxu0 %v410
    %1452 = vmatpush.msra.mxu0 %v406
    %1453 = vmatpush.msra.mxu0 %v402
    %1454 = vmatpush.msra.mxu0 %v398
    %1455 = vmatpush.msra.mxu0 %v394
    %1456 = vmatpush.msra.mxu0 %v390
    %1457 = vmatpush.msra.mxu0 %v386
    %1458 = vmatmul.f32.gmra.mxu0 %v1193
    %v1459 = vpop.f32.mrf.mxu0
    %v1460 = vadd.f32 %v1440, %v1459
    %1461 = vdwg.mxu0
    %v1462 = vmul.f32 %v1340, 0.5
    %v1463 = vmul.f32 %v1380, 0.5
    %v1464 = vmul.f32 %v1420, 0.5
    %v1465 = vtanh.pop %v1462
    %v1466 = vtanh.pop %v1463
    %v1467 = vtanh.pop %v1464
    %v1468 = vmul.f32 %v1465, 0.5
    %v1469 = vmul.f32 %v1466, 0.5
    %v1470 = vmul.f32 %v1467, 0.5
    %v1471 = vadd.f32 %v1468, 0.5
    %v1472 = vadd.f32 %v1469, 0.5
    %v1473 = vadd.f32 %v1470, 0.5
    %v1474 = vtanh.pop %v1460
    %v1475 = vmul.f32 %v1472, %v1191
    %v1476 = vmul.f32 %v1471, %v1474
    %v1477 = vadd.f32 %v1475, %v1476
    %v1478 = vtanh.pop %v1477
    %v1479 = vmul.f32 %v1473, %v1478
    %s1480 = scalar_lea.vmem [#allocation3], 16
    %1481 = vst [vmem:[%s1480] sm:$0xff] %v1479
    %v1482 = vld [vmem:[%s552] sm:$0xff]
    %v1483 = vld [vmem:[%s552 + $0x8] sm:$0xff]
    %v1484 = vld [vmem:[%s552 + $0x10] sm:$0xff]
    %v1485 = vld [vmem:[%s552 + $0x18] sm:$0xff]
    %1486 = vmatpush.msra.mxu0 %v187
    %1487 = vmatpush.msra.mxu0 %v183
    %1488 = vmatpush.msra.mxu0 %v179
    %1489 = vmatpush.msra.mxu0 %v175
    %1490 = vmatpush.msra.mxu0 %v171
    %1491 = vmatpush.msra.mxu0 %v167
    %1492 = vmatpush.msra.mxu0 %v163
    %1493 = vmatpush.msra.mxu0 %v159
    %1494 = vmatpush.msra.mxu0 %v155
    %1495 = vmatpush.msra.mxu0 %v151
    %1496 = vmatpush.msra.mxu0 %v147
    %1497 = vmatpush.msra.mxu0 %v143
    %1498 = vmatpush.msra.mxu0 %v139
    %1499 = vmatpush.msra.mxu0 %v135
    %1500 = vmatpush.msra.mxu0 %v131
    %1501 = vmatpush.msra.mxu0 %v127
    %1502 = vmatmul.f32.gmra.mxu0 %v1301
    %v1503 = vpop.f32.mrf.mxu0
    %v1504 = vadd.f32 0.0, %v1503
    %1505 = vdwg.mxu0
    %1506 = vmatpush.msra.mxu0 %v188
    %1507 = vmatpush.msra.mxu0 %v184
    %1508 = vmatpush.msra.mxu0 %v180
    %1509 = vmatpush.msra.mxu0 %v176
    %1510 = vmatpush.msra.mxu0 %v172
    %1511 = vmatpush.msra.mxu0 %v168
    %1512 = vmatpush.msra.mxu0 %v164
    %1513 = vmatpush.msra.mxu0 %v160
    %1514 = vmatpush.msra.mxu0 %v156
    %1515 = vmatpush.msra.mxu0 %v152
    %1516 = vmatpush.msra.mxu0 %v148
    %1517 = vmatpush.msra.mxu0 %v144
    %1518 = vmatpush.msra.mxu0 %v140
    %1519 = vmatpush.msra.mxu0 %v136
    %1520 = vmatpush.msra.mxu0 %v132
    %1521 = vmatpush.msra.mxu0 %v128
    %1522 = vmatmul.f32.gmra.mxu0 %v1301
    %v1523 = vpop.f32.mrf.mxu0
    %v1524 = vadd.f32 0.0, %v1523
    %1525 = vdwg.mxu0
    %1526 = vmatpush.msra.mxu0 %v189
    %1527 = vmatpush.msra.mxu0 %v185
    %1528 = vmatpush.msra.mxu0 %v181
    %1529 = vmatpush.msra.mxu0 %v177
    %1530 = vmatpush.msra.mxu0 %v173
    %1531 = vmatpush.msra.mxu0 %v169
    %1532 = vmatpush.msra.mxu0 %v165
    %1533 = vmatpush.msra.mxu0 %v161
    %1534 = vmatpush.msra.mxu0 %v157
    %1535 = vmatpush.msra.mxu0 %v153
    %1536 = vmatpush.msra.mxu0 %v149
    %1537 = vmatpush.msra.mxu0 %v145
    %1538 = vmatpush.msra.mxu0 %v141
    %1539 = vmatpush.msra.mxu0 %v137
    %1540 = vmatpush.msra.mxu0 %v133
    %1541 = vmatpush.msra.mxu0 %v129
    %1542 = vmatmul.f32.gmra.mxu0 %v1301
    %v1543 = vpop.f32.mrf.mxu0
    %v1544 = vadd.f32 0.0, %v1543
    %1545 = vdwg.mxu0
    %1546 = vmatpush.msra.mxu0 %v190
    %1547 = vmatpush.msra.mxu0 %v186
    %1548 = vmatpush.msra.mxu0 %v182
    %1549 = vmatpush.msra.mxu0 %v178
    %1550 = vmatpush.msra.mxu0 %v174
    %1551 = vmatpush.msra.mxu0 %v170
    %1552 = vmatpush.msra.mxu0 %v166
    %1553 = vmatpush.msra.mxu0 %v162
    %1554 = vmatpush.msra.mxu0 %v158
    %1555 = vmatpush.msra.mxu0 %v154
    %1556 = vmatpush.msra.mxu0 %v150
    %1557 = vmatpush.msra.mxu0 %v146
    %1558 = vmatpush.msra.mxu0 %v142
    %1559 = vmatpush.msra.mxu0 %v138
    %1560 = vmatpush.msra.mxu0 %v134
    %1561 = vmatpush.msra.mxu0 %v130
    %1562 = vmatmul.f32.gmra.mxu0 %v1301
    %v1563 = vpop.f32.mrf.mxu0
    %v1564 = vadd.f32 0.0, %v1563
    %1565 = vdwg.mxu0
    %v1566 = vadd.f32 %v1482, %v1504
    %v1567 = vadd.f32 %v1483, %v1524
    %v1568 = vadd.f32 %v1484, %v1544
    %v1569 = vadd.f32 %v1485, %v1564
    %v1570 = vmul.f32 %v1566, 0.5
    %v1571 = vmul.f32 %v1567, 0.5
    %v1572 = vmul.f32 %v1568, 0.5
    %v1573 = vtanh.pop %v1570
    %v1574 = vtanh.pop %v1571
    %v1575 = vtanh.pop %v1572
    %v1576 = vmul.f32 %v1573, 0.5
    %v1577 = vmul.f32 %v1574, 0.5
    %v1578 = vmul.f32 %v1575, 0.5
    %v1579 = vadd.f32 %v1576, 0.5
    %v1580 = vadd.f32 %v1577, 0.5
    %v1581 = vadd.f32 %v1578, 0.5
    %v1582 = vtanh.pop %v1569
    %v1583 = vmul.f32 %v1580, %v1299
    %v1584 = vmul.f32 %v1579, %v1582
    %v1585 = vadd.f32 %v1583, %v1584
    %v1586 = vtanh.pop %v1585
    %v1587 = vmul.f32 %v1581, %v1586
    %1588 = vmatpush.msra.mxu0 %v379
    %1589 = vmatpush.msra.mxu0 %v375
    %1590 = vmatpush.msra.mxu0 %v371
    %1591 = vmatpush.msra.mxu0 %v367
    %1592 = vmatpush.msra.mxu0 %v363
    %1593 = vmatpush.msra.mxu0 %v359
    %1594 = vmatpush.msra.mxu0 %v355
    %1595 = vmatpush.msra.mxu0 %v351
    %1596 = vmatpush.msra.mxu0 %v347
    %1597 = vmatpush.msra.mxu0 %v343
    %1598 = vmatpush.msra.mxu0 %v339
    %1599 = vmatpush.msra.mxu0 %v335
    %1600 = vmatpush.msra.mxu0 %v331
    %1601 = vmatpush.msra.mxu0 %v327
    %1602 = vmatpush.msra.mxu0 %v323
    %1603 = vmatpush.msra.mxu0 %v319
    %1604 = vmatmul.f32.gmra.mxu0 %v1587
    %v1605 = vpop.f32.mrf.mxu0
    %v1606 = vadd.f32 %v451, %v1605
    %1607 = vdwg.mxu0
    %1608 = vmatpush.msra.mxu0 %v443
    %1609 = vmatpush.msra.mxu0 %v439
    %1610 = vmatpush.msra.mxu0 %v435
    %1611 = vmatpush.msra.mxu0 %v431
    %1612 = vmatpush.msra.mxu0 %v427
    %1613 = vmatpush.msra.mxu0 %v423
    %1614 = vmatpush.msra.mxu0 %v419
    %1615 = vmatpush.msra.mxu0 %v415
    %1616 = vmatpush.msra.mxu0 %v411
    %1617 = vmatpush.msra.mxu0 %v407
    %1618 = vmatpush.msra.mxu0 %v403
    %1619 = vmatpush.msra.mxu0 %v399
    %1620 = vmatpush.msra.mxu0 %v395
    %1621 = vmatpush.msra.mxu0 %v391
    %1622 = vmatpush.msra.mxu0 %v387
    %1623 = vmatpush.msra.mxu0 %v383
    %1624 = vmatmul.f32.gmra.mxu0 %v1479
    %v1625 = vpop.f32.mrf.mxu0
    %v1626 = vadd.f32 %v1606, %v1625
    %1627 = vdwg.mxu0
    %1628 = vmatpush.msra.mxu0 %v380
    %1629 = vmatpush.msra.mxu0 %v376
    %1630 = vmatpush.msra.mxu0 %v372
    %1631 = vmatpush.msra.mxu0 %v368
    %1632 = vmatpush.msra.mxu0 %v364
    %1633 = vmatpush.msra.mxu0 %v360
    %1634 = vmatpush.msra.mxu0 %v356
    %1635 = vmatpush.msra.mxu0 %v352
    %1636 = vmatpush.msra.mxu0 %v348
    %1637 = vmatpush.msra.mxu0 %v344
    %1638 = vmatpush.msra.mxu0 %v340
    %1639 = vmatpush.msra.mxu0 %v336
    %1640 = vmatpush.msra.mxu0 %v332
    %1641 = vmatpush.msra.mxu0 %v328
    %1642 = vmatpush.msra.mxu0 %v324
    %1643 = vmatpush.msra.mxu0 %v320
    %1644 = vmatmul.f32.gmra.mxu0 %v1587
    %v1645 = vpop.f32.mrf.mxu0
    %v1646 = vadd.f32 %v452, %v1645
    %1647 = vdwg.mxu0
    %1648 = vmatpush.msra.mxu0 %v444
    %1649 = vmatpush.msra.mxu0 %v440
    %1650 = vmatpush.msra.mxu0 %v436
    %1651 = vmatpush.msra.mxu0 %v432
    %1652 = vmatpush.msra.mxu0 %v428
    %1653 = vmatpush.msra.mxu0 %v424
    %1654 = vmatpush.msra.mxu0 %v420
    %1655 = vmatpush.msra.mxu0 %v416
    %1656 = vmatpush.msra.mxu0 %v412
    %1657 = vmatpush.msra.mxu0 %v408
    %1658 = vmatpush.msra.mxu0 %v404
    %1659 = vmatpush.msra.mxu0 %v400
    %1660 = vmatpush.msra.mxu0 %v396
    %1661 = vmatpush.msra.mxu0 %v392
    %1662 = vmatpush.msra.mxu0 %v388
    %1663 = vmatpush.msra.mxu0 %v384
    %1664 = vmatmul.f32.gmra.mxu0 %v1479
    %v1665 = vpop.f32.mrf.mxu0
    %v1666 = vadd.f32 %v1646, %v1665
    %1667 = vdwg.mxu0
    %1668 = vmatpush.msra.mxu0 %v381
    %1669 = vmatpush.msra.mxu0 %v377
    %1670 = vmatpush.msra.mxu0 %v373
    %1671 = vmatpush.msra.mxu0 %v369
    %1672 = vmatpush.msra.mxu0 %v365
    %1673 = vmatpush.msra.mxu0 %v361
    %1674 = vmatpush.msra.mxu0 %v357
    %1675 = vmatpush.msra.mxu0 %v353
    %1676 = vmatpush.msra.mxu0 %v349
    %1677 = vmatpush.msra.mxu0 %v345
    %1678 = vmatpush.msra.mxu0 %v341
    %1679 = vmatpush.msra.mxu0 %v337
    %1680 = vmatpush.msra.mxu0 %v333
    %1681 = vmatpush.msra.mxu0 %v329
    %1682 = vmatpush.msra.mxu0 %v325
    %1683 = vmatpush.msra.mxu0 %v321
    %1684 = vmatmul.f32.gmra.mxu0 %v1587
    %v1685 = vpop.f32.mrf.mxu0
    %v1686 = vadd.f32 %v453, %v1685
    %1687 = vdwg.mxu0
    %1688 = vmatpush.msra.mxu0 %v445
    %1689 = vmatpush.msra.mxu0 %v441
    %1690 = vmatpush.msra.mxu0 %v437
    %1691 = vmatpush.msra.mxu0 %v433
    %1692 = vmatpush.msra.mxu0 %v429
    %1693 = vmatpush.msra.mxu0 %v425
    %1694 = vmatpush.msra.mxu0 %v421
    %1695 = vmatpush.msra.mxu0 %v417
    %1696 = vmatpush.msra.mxu0 %v413
    %1697 = vmatpush.msra.mxu0 %v409
    %1698 = vmatpush.msra.mxu0 %v405
    %1699 = vmatpush.msra.mxu0 %v401
    %1700 = vmatpush.msra.mxu0 %v397
    %1701 = vmatpush.msra.mxu0 %v393
    %1702 = vmatpush.msra.mxu0 %v389
    %1703 = vmatpush.msra.mxu0 %v385
    %1704 = vmatmul.f32.gmra.mxu0 %v1479
    %v1705 = vpop.f32.mrf.mxu0
    %v1706 = vadd.f32 %v1686, %v1705
    %1707 = vdwg.mxu0
    %1708 = vmatpush.msra.mxu0 %v382
    %1709 = vmatpush.msra.mxu0 %v378
    %1710 = vmatpush.msra.mxu0 %v374
    %1711 = vmatpush.msra.mxu0 %v370
    %1712 = vmatpush.msra.mxu0 %v366
    %1713 = vmatpush.msra.mxu0 %v362
    %1714 = vmatpush.msra.mxu0 %v358
    %1715 = vmatpush.msra.mxu0 %v354
    %1716 = vmatpush.msra.mxu0 %v350
    %1717 = vmatpush.msra.mxu0 %v346
    %1718 = vmatpush.msra.mxu0 %v342
    %1719 = vmatpush.msra.mxu0 %v338
    %1720 = vmatpush.msra.mxu0 %v334
    %1721 = vmatpush.msra.mxu0 %v330
    %1722 = vmatpush.msra.mxu0 %v326
    %1723 = vmatpush.msra.mxu0 %v322
    %1724 = vmatmul.f32.gmra.mxu0 %v1587
    %v1725 = vpop.f32.mrf.mxu0
    %v1726 = vadd.f32 %v454, %v1725
    %1727 = vdwg.mxu0
    %1728 = vmatpush.msra.mxu0 %v446
    %1729 = vmatpush.msra.mxu0 %v442
    %1730 = vmatpush.msra.mxu0 %v438
    %1731 = vmatpush.msra.mxu0 %v434
    %1732 = vmatpush.msra.mxu0 %v430
    %1733 = vmatpush.msra.mxu0 %v426
    %1734 = vmatpush.msra.mxu0 %v422
    %1735 = vmatpush.msra.mxu0 %v418
    %1736 = vmatpush.msra.mxu0 %v414
    %1737 = vmatpush.msra.mxu0 %v410
    %1738 = vmatpush.msra.mxu0 %v406
    %1739 = vmatpush.msra.mxu0 %v402
    %1740 = vmatpush.msra.mxu0 %v398
    %1741 = vmatpush.msra.mxu0 %v394
    %1742 = vmatpush.msra.mxu0 %v390
    %1743 = vmatpush.msra.mxu0 %v386
    %1744 = vmatmul.f32.gmra.mxu0 %v1479
    %v1745 = vpop.f32.mrf.mxu0
    %v1746 = vadd.f32 %v1726, %v1745
    %1747 = vdwg.mxu0
    %v1748 = vmul.f32 %v1626, 0.5
    %v1749 = vmul.f32 %v1666, 0.5
    %v1750 = vmul.f32 %v1706, 0.5
    %v1751 = vtanh.pop %v1748
    %v1752 = vtanh.pop %v1749
    %v1753 = vtanh.pop %v1750
    %v1754 = vmul.f32 %v1751, 0.5
    %v1755 = vmul.f32 %v1752, 0.5
    %v1756 = vmul.f32 %v1753, 0.5
    %v1757 = vadd.f32 %v1754, 0.5
    %v1758 = vadd.f32 %v1755, 0.5
    %v1759 = vadd.f32 %v1756, 0.5
    %v1760 = vtanh.pop %v1746
    %v1761 = vmul.f32 %v1758, %v1477
    %v1762 = vmul.f32 %v1757, %v1760
    %v1763 = vadd.f32 %v1761, %v1762
    %v1764 = vtanh.pop %v1763
    %v1765 = vmul.f32 %v1759, %v1764
    %s1766 = scalar_lea.vmem [#allocation3], 24
    %1767 = vst [vmem:[%s1766] sm:$0xff] %v1765
    %v1768 = vld [vmem:[%s569] sm:$0xff]
    %v1769 = vld [vmem:[%s569 + $0x8] sm:$0xff]
    %v1770 = vld [vmem:[%s569 + $0x10] sm:$0xff]
    %v1771 = vld [vmem:[%s569 + $0x18] sm:$0xff]
    %1772 = vmatpush.msra.mxu0 %v187
    %1773 = vmatpush.msra.mxu0 %v183
    %1774 = vmatpush.msra.mxu0 %v179
    %1775 = vmatpush.msra.mxu0 %v175
    %1776 = vmatpush.msra.mxu0 %v171
    %1777 = vmatpush.msra.mxu0 %v167
    %1778 = vmatpush.msra.mxu0 %v163
    %1779 = vmatpush.msra.mxu0 %v159
    %1780 = vmatpush.msra.mxu0 %v155
    %1781 = vmatpush.msra.mxu0 %v151
    %1782 = vmatpush.msra.mxu0 %v147
    %1783 = vmatpush.msra.mxu0 %v143
    %1784 = vmatpush.msra.mxu0 %v139
    %1785 = vmatpush.msra.mxu0 %v135
    %1786 = vmatpush.msra.mxu0 %v131
    %1787 = vmatpush.msra.mxu0 %v127
    %1788 = vmatmul.f32.gmra.mxu0 %v1587
    %v1789 = vpop.f32.mrf.mxu0
    %v1790 = vadd.f32 0.0, %v1789
    %1791 = vdwg.mxu0
    %1792 = vmatpush.msra.mxu0 %v188
    %1793 = vmatpush.msra.mxu0 %v184
    %1794 = vmatpush.msra.mxu0 %v180
    %1795 = vmatpush.msra.mxu0 %v176
    %1796 = vmatpush.msra.mxu0 %v172
    %1797 = vmatpush.msra.mxu0 %v168
    %1798 = vmatpush.msra.mxu0 %v164
    %1799 = vmatpush.msra.mxu0 %v160
    %1800 = vmatpush.msra.mxu0 %v156
    %1801 = vmatpush.msra.mxu0 %v152
    %1802 = vmatpush.msra.mxu0 %v148
    %1803 = vmatpush.msra.mxu0 %v144
    %1804 = vmatpush.msra.mxu0 %v140
    %1805 = vmatpush.msra.mxu0 %v136
    %1806 = vmatpush.msra.mxu0 %v132
    %1807 = vmatpush.msra.mxu0 %v128
    %1808 = vmatmul.f32.gmra.mxu0 %v1587
    %v1809 = vpop.f32.mrf.mxu0
    %v1810 = vadd.f32 0.0, %v1809
    %1811 = vdwg.mxu0
    %1812 = vmatpush.msra.mxu0 %v189
    %1813 = vmatpush.msra.mxu0 %v185
    %1814 = vmatpush.msra.mxu0 %v181
    %1815 = vmatpush.msra.mxu0 %v177
    %1816 = vmatpush.msra.mxu0 %v173
    %1817 = vmatpush.msra.mxu0 %v169
    %1818 = vmatpush.msra.mxu0 %v165
    %1819 = vmatpush.msra.mxu0 %v161
    %1820 = vmatpush.msra.mxu0 %v157
    %1821 = vmatpush.msra.mxu0 %v153
    %1822 = vmatpush.msra.mxu0 %v149
    %1823 = vmatpush.msra.mxu0 %v145
    %1824 = vmatpush.msra.mxu0 %v141
    %1825 = vmatpush.msra.mxu0 %v137
    %1826 = vmatpush.msra.mxu0 %v133
    %1827 = vmatpush.msra.mxu0 %v129
    %1828 = vmatmul.f32.gmra.mxu0 %v1587
    %v1829 = vpop.f32.mrf.mxu0
    %v1830 = vadd.f32 0.0, %v1829
    %1831 = vdwg.mxu0
    %1832 = vmatpush.msra.mxu0 %v190
    %1833 = vmatpush.msra.mxu0 %v186
    %1834 = vmatpush.msra.mxu0 %v182
    %1835 = vmatpush.msra.mxu0 %v178
    %1836 = vmatpush.msra.mxu0 %v174
    %1837 = vmatpush.msra.mxu0 %v170
    %1838 = vmatpush.msra.mxu0 %v166
    %1839 = vmatpush.msra.mxu0 %v162
    %1840 = vmatpush.msra.mxu0 %v158
    %1841 = vmatpush.msra.mxu0 %v154
    %1842 = vmatpush.msra.mxu0 %v150
    %1843 = vmatpush.msra.mxu0 %v146
    %1844 = vmatpush.msra.mxu0 %v142
    %1845 = vmatpush.msra.mxu0 %v138
    %1846 = vmatpush.msra.mxu0 %v134
    %1847 = vmatpush.msra.mxu0 %v130
    %1848 = vmatmul.f32.gmra.mxu0 %v1587
    %v1849 = vpop.f32.mrf.mxu0
    %v1850 = vadd.f32 0.0, %v1849
    %1851 = vdwg.mxu0
    %v1852 = vadd.f32 %v1768, %v1790
    %v1853 = vadd.f32 %v1769, %v1810
    %v1854 = vadd.f32 %v1770, %v1830
    %v1855 = vadd.f32 %v1771, %v1850
    %v1856 = vmul.f32 %v1852, 0.5
    %v1857 = vmul.f32 %v1853, 0.5
    %v1858 = vmul.f32 %v1854, 0.5
    %v1859 = vtanh.pop %v1856
    %v1860 = vtanh.pop %v1857
    %v1861 = vtanh.pop %v1858
    %v1862 = vmul.f32 %v1859, 0.5
    %v1863 = vmul.f32 %v1860, 0.5
    %v1864 = vmul.f32 %v1861, 0.5
    %v1865 = vadd.f32 %v1862, 0.5
    %v1866 = vadd.f32 %v1863, 0.5
    %v1867 = vadd.f32 %v1864, 0.5
    %v1868 = vtanh.pop %v1855
    %v1869 = vmul.f32 %v1866, %v1585
    %v1870 = vmul.f32 %v1865, %v1868
    %v1871 = vadd.f32 %v1869, %v1870
    %v1872 = vtanh.pop %v1871
    %v1873 = vmul.f32 %v1867, %v1872
    %1874 = vmatpush.msra.mxu0 %v379
    %1875 = vmatpush.msra.mxu0 %v375
    %1876 = vmatpush.msra.mxu0 %v371
    %1877 = vmatpush.msra.mxu0 %v367
    %1878 = vmatpush.msra.mxu0 %v363
    %1879 = vmatpush.msra.mxu0 %v359
    %1880 = vmatpush.msra.mxu0 %v355
    %1881 = vmatpush.msra.mxu0 %v351
    %1882 = vmatpush.msra.mxu0 %v347
    %1883 = vmatpush.msra.mxu0 %v343
    %1884 = vmatpush.msra.mxu0 %v339
    %1885 = vmatpush.msra.mxu0 %v335
    %1886 = vmatpush.msra.mxu0 %v331
    %1887 = vmatpush.msra.mxu0 %v327
    %1888 = vmatpush.msra.mxu0 %v323
    %1889 = vmatpush.msra.mxu0 %v319
    %1890 = vmatmul.f32.gmra.mxu0 %v1873
    %v1891 = vpop.f32.mrf.mxu0
    %v1892 = vadd.f32 %v451, %v1891
    %1893 = vdwg.mxu0
    %1894 = vmatpush.msra.mxu0 %v443
    %1895 = vmatpush.msra.mxu0 %v439
    %1896 = vmatpush.msra.mxu0 %v435
    %1897 = vmatpush.msra.mxu0 %v431
    %1898 = vmatpush.msra.mxu0 %v427
    %1899 = vmatpush.msra.mxu0 %v423
    %1900 = vmatpush.msra.mxu0 %v419
    %1901 = vmatpush.msra.mxu0 %v415
    %1902 = vmatpush.msra.mxu0 %v411
    %1903 = vmatpush.msra.mxu0 %v407
    %1904 = vmatpush.msra.mxu0 %v403
    %1905 = vmatpush.msra.mxu0 %v399
    %1906 = vmatpush.msra.mxu0 %v395
    %1907 = vmatpush.msra.mxu0 %v391
    %1908 = vmatpush.msra.mxu0 %v387
    %1909 = vmatpush.msra.mxu0 %v383
    %1910 = vmatmul.f32.gmra.mxu0 %v1765
    %v1911 = vpop.f32.mrf.mxu0
    %v1912 = vadd.f32 %v1892, %v1911
    %1913 = vdwg.mxu0
    %1914 = vmatpush.msra.mxu0 %v380
    %1915 = vmatpush.msra.mxu0 %v376
    %1916 = vmatpush.msra.mxu0 %v372
    %1917 = vmatpush.msra.mxu0 %v368
    %1918 = vmatpush.msra.mxu0 %v364
    %1919 = vmatpush.msra.mxu0 %v360
    %1920 = vmatpush.msra.mxu0 %v356
    %1921 = vmatpush.msra.mxu0 %v352
    %1922 = vmatpush.msra.mxu0 %v348
    %1923 = vmatpush.msra.mxu0 %v344
    %1924 = vmatpush.msra.mxu0 %v340
    %1925 = vmatpush.msra.mxu0 %v336
    %1926 = vmatpush.msra.mxu0 %v332
    %1927 = vmatpush.msra.mxu0 %v328
    %1928 = vmatpush.msra.mxu0 %v324
    %1929 = vmatpush.msra.mxu0 %v320
    %1930 = vmatmul.f32.gmra.mxu0 %v1873
    %v1931 = vpop.f32.mrf.mxu0
    %v1932 = vadd.f32 %v452, %v1931
    %1933 = vdwg.mxu0
    %1934 = vmatpush.msra.mxu0 %v444
    %1935 = vmatpush.msra.mxu0 %v440
    %1936 = vmatpush.msra.mxu0 %v436
    %1937 = vmatpush.msra.mxu0 %v432
    %1938 = vmatpush.msra.mxu0 %v428
    %1939 = vmatpush.msra.mxu0 %v424
    %1940 = vmatpush.msra.mxu0 %v420
    %1941 = vmatpush.msra.mxu0 %v416
    %1942 = vmatpush.msra.mxu0 %v412
    %1943 = vmatpush.msra.mxu0 %v408
    %1944 = vmatpush.msra.mxu0 %v404
    %1945 = vmatpush.msra.mxu0 %v400
    %1946 = vmatpush.msra.mxu0 %v396
    %1947 = vmatpush.msra.mxu0 %v392
    %1948 = vmatpush.msra.mxu0 %v388
    %1949 = vmatpush.msra.mxu0 %v384
    %1950 = vmatmul.f32.gmra.mxu0 %v1765
    %v1951 = vpop.f32.mrf.mxu0
    %v1952 = vadd.f32 %v1932, %v1951
    %1953 = vdwg.mxu0
    %1954 = vmatpush.msra.mxu0 %v381
    %1955 = vmatpush.msra.mxu0 %v377
    %1956 = vmatpush.msra.mxu0 %v373
    %1957 = vmatpush.msra.mxu0 %v369
    %1958 = vmatpush.msra.mxu0 %v365
    %1959 = vmatpush.msra.mxu0 %v361
    %1960 = vmatpush.msra.mxu0 %v357
    %1961 = vmatpush.msra.mxu0 %v353
    %1962 = vmatpush.msra.mxu0 %v349
    %1963 = vmatpush.msra.mxu0 %v345
    %1964 = vmatpush.msra.mxu0 %v341
    %1965 = vmatpush.msra.mxu0 %v337
    %1966 = vmatpush.msra.mxu0 %v333
    %1967 = vmatpush.msra.mxu0 %v329
    %1968 = vmatpush.msra.mxu0 %v325
    %1969 = vmatpush.msra.mxu0 %v321
    %1970 = vmatmul.f32.gmra.mxu0 %v1873
    %v1971 = vpop.f32.mrf.mxu0
    %v1972 = vadd.f32 %v453, %v1971
    %1973 = vdwg.mxu0
    %1974 = vmatpush.msra.mxu0 %v445
    %1975 = vmatpush.msra.mxu0 %v441
    %1976 = vmatpush.msra.mxu0 %v437
    %1977 = vmatpush.msra.mxu0 %v433
    %1978 = vmatpush.msra.mxu0 %v429
    %1979 = vmatpush.msra.mxu0 %v425
    %1980 = vmatpush.msra.mxu0 %v421
    %1981 = vmatpush.msra.mxu0 %v417
    %1982 = vmatpush.msra.mxu0 %v413
    %1983 = vmatpush.msra.mxu0 %v409
    %1984 = vmatpush.msra.mxu0 %v405
    %1985 = vmatpush.msra.mxu0 %v401
    %1986 = vmatpush.msra.mxu0 %v397
    %1987 = vmatpush.msra.mxu0 %v393
    %1988 = vmatpush.msra.mxu0 %v389
    %1989 = vmatpush.msra.mxu0 %v385
    %1990 = vmatmul.f32.gmra.mxu0 %v1765
    %v1991 = vpop.f32.mrf.mxu0
    %v1992 = vadd.f32 %v1972, %v1991
    %1993 = vdwg.mxu0
    %1994 = vmatpush.msra.mxu0 %v382
    %1995 = vmatpush.msra.mxu0 %v378
    %1996 = vmatpush.msra.mxu0 %v374
    %1997 = vmatpush.msra.mxu0 %v370
    %1998 = vmatpush.msra.mxu0 %v366
    %1999 = vmatpush.msra.mxu0 %v362
    %2000 = vmatpush.msra.mxu0 %v358
    %2001 = vmatpush.msra.mxu0 %v354
    %2002 = vmatpush.msra.mxu0 %v350
    %2003 = vmatpush.msra.mxu0 %v346
    %2004 = vmatpush.msra.mxu0 %v342
    %2005 = vmatpush.msra.mxu0 %v338
    %2006 = vmatpush.msra.mxu0 %v334
    %2007 = vmatpush.msra.mxu0 %v330
    %2008 = vmatpush.msra.mxu0 %v326
    %2009 = vmatpush.msra.mxu0 %v322
    %2010 = vmatmul.f32.gmra.mxu0 %v1873
    %v2011 = vpop.f32.mrf.mxu0
    %v2012 = vadd.f32 %v454, %v2011
    %2013 = vdwg.mxu0
    %2014 = vmatpush.msra.mxu0 %v446
    %2015 = vmatpush.msra.mxu0 %v442
    %2016 = vmatpush.msra.mxu0 %v438
    %2017 = vmatpush.msra.mxu0 %v434
    %2018 = vmatpush.msra.mxu0 %v430
    %2019 = vmatpush.msra.mxu0 %v426
    %2020 = vmatpush.msra.mxu0 %v422
    %2021 = vmatpush.msra.mxu0 %v418
    %2022 = vmatpush.msra.mxu0 %v414
    %2023 = vmatpush.msra.mxu0 %v410
    %2024 = vmatpush.msra.mxu0 %v406
    %2025 = vmatpush.msra.mxu0 %v402
    %2026 = vmatpush.msra.mxu0 %v398
    %2027 = vmatpush.msra.mxu0 %v394
    %2028 = vmatpush.msra.mxu0 %v390
    %2029 = vmatpush.msra.mxu0 %v386
    %2030 = vmatmul.f32.gmra.mxu0 %v1765
    %v2031 = vpop.f32.mrf.mxu0
    %v2032 = vadd.f32 %v2012, %v2031
    %2033 = vdwg.mxu0
    %v2034 = vmul.f32 %v1912, 0.5
    %v2035 = vmul.f32 %v1952, 0.5
    %v2036 = vmul.f32 %v1992, 0.5
    %v2037 = vtanh.pop %v2034
    %v2038 = vtanh.pop %v2035
    %v2039 = vtanh.pop %v2036
    %v2040 = vmul.f32 %v2037, 0.5
    %v2041 = vmul.f32 %v2038, 0.5
    %v2042 = vmul.f32 %v2039, 0.5
    %v2043 = vadd.f32 %v2040, 0.5
    %v2044 = vadd.f32 %v2041, 0.5
    %v2045 = vadd.f32 %v2042, 0.5
    %v2046 = vtanh.pop %v2032
    %v2047 = vmul.f32 %v2044, %v1763
    %v2048 = vmul.f32 %v2043, %v2046
    %v2049 = vadd.f32 %v2047, %v2048
    %v2050 = vtanh.pop %v2049
    %v2051 = vmul.f32 %v2045, %v2050
    %s2052 = scalar_lea.vmem [#allocation3], 32
    %2053 = vst [vmem:[%s2052] sm:$0xff] %v2051
    %v2054 = vld [vmem:[%s586] sm:$0xff]
    %v2055 = vld [vmem:[%s586 + $0x8] sm:$0xff]
    %v2056 = vld [vmem:[%s586 + $0x10] sm:$0xff]
    %v2057 = vld [vmem:[%s586 + $0x18] sm:$0xff]
    %2058 = vmatpush.msra.mxu0 %v187
    %2059 = vmatpush.msra.mxu0 %v183
    %2060 = vmatpush.msra.mxu0 %v179
    %2061 = vmatpush.msra.mxu0 %v175
    %2062 = vmatpush.msra.mxu0 %v171
    %2063 = vmatpush.msra.mxu0 %v167
    %2064 = vmatpush.msra.mxu0 %v163
    %2065 = vmatpush.msra.mxu0 %v159
    %2066 = vmatpush.msra.mxu0 %v155
    %2067 = vmatpush.msra.mxu0 %v151
    %2068 = vmatpush.msra.mxu0 %v147
    %2069 = vmatpush.msra.mxu0 %v143
    %2070 = vmatpush.msra.mxu0 %v139
    %2071 = vmatpush.msra.mxu0 %v135
    %2072 = vmatpush.msra.mxu0 %v131
    %2073 = vmatpush.msra.mxu0 %v127
    %2074 = vmatmul.f32.gmra.mxu0 %v1873
    %v2075 = vpop.f32.mrf.mxu0
    %v2076 = vadd.f32 0.0, %v2075
    %2077 = vdwg.mxu0
    %2078 = vmatpush.msra.mxu0 %v188
    %2079 = vmatpush.msra.mxu0 %v184
    %2080 = vmatpush.msra.mxu0 %v180
    %2081 = vmatpush.msra.mxu0 %v176
    %2082 = vmatpush.msra.mxu0 %v172
    %2083 = vmatpush.msra.mxu0 %v168
    %2084 = vmatpush.msra.mxu0 %v164
    %2085 = vmatpush.msra.mxu0 %v160
    %2086 = vmatpush.msra.mxu0 %v156
    %2087 = vmatpush.msra.mxu0 %v152
    %2088 = vmatpush.msra.mxu0 %v148
    %2089 = vmatpush.msra.mxu0 %v144
    %2090 = vmatpush.msra.mxu0 %v140
    %2091 = vmatpush.msra.mxu0 %v136
    %2092 = vmatpush.msra.mxu0 %v132
    %2093 = vmatpush.msra.mxu0 %v128
    %2094 = vmatmul.f32.gmra.mxu0 %v1873
    %v2095 = vpop.f32.mrf.mxu0
    %v2096 = vadd.f32 0.0, %v2095
    %2097 = vdwg.mxu0
    %2098 = vmatpush.msra.mxu0 %v189
    %2099 = vmatpush.msra.mxu0 %v185
    %2100 = vmatpush.msra.mxu0 %v181
    %2101 = vmatpush.msra.mxu0 %v177
    %2102 = vmatpush.msra.mxu0 %v173
    %2103 = vmatpush.msra.mxu0 %v169
    %2104 = vmatpush.msra.mxu0 %v165
    %2105 = vmatpush.msra.mxu0 %v161
    %2106 = vmatpush.msra.mxu0 %v157
    %2107 = vmatpush.msra.mxu0 %v153
    %2108 = vmatpush.msra.mxu0 %v149
    %2109 = vmatpush.msra.mxu0 %v145
    %2110 = vmatpush.msra.mxu0 %v141
    %2111 = vmatpush.msra.mxu0 %v137
    %2112 = vmatpush.msra.mxu0 %v133
    %2113 = vmatpush.msra.mxu0 %v129
    %2114 = vmatmul.f32.gmra.mxu0 %v1873
    %v2115 = vpop.f32.mrf.mxu0
    %v2116 = vadd.f32 0.0, %v2115
    %2117 = vdwg.mxu0
    %2118 = vmatpush.msra.mxu0 %v190
    %2119 = vmatpush.msra.mxu0 %v186
    %2120 = vmatpush.msra.mxu0 %v182
    %2121 = vmatpush.msra.mxu0 %v178
    %2122 = vmatpush.msra.mxu0 %v174
    %2123 = vmatpush.msra.mxu0 %v170
    %2124 = vmatpush.msra.mxu0 %v166
    %2125 = vmatpush.msra.mxu0 %v162
    %2126 = vmatpush.msra.mxu0 %v158
    %2127 = vmatpush.msra.mxu0 %v154
    %2128 = vmatpush.msra.mxu0 %v150
    %2129 = vmatpush.msra.mxu0 %v146
    %2130 = vmatpush.msra.mxu0 %v142
    %2131 = vmatpush.msra.mxu0 %v138
    %2132 = vmatpush.msra.mxu0 %v134
    %2133 = vmatpush.msra.mxu0 %v130
    %2134 = vmatmul.f32.gmra.mxu0 %v1873
    %v2135 = vpop.f32.mrf.mxu0
    %v2136 = vadd.f32 0.0, %v2135
    %2137 = vdwg.mxu0
    %v2138 = vadd.f32 %v2054, %v2076
    %v2139 = vadd.f32 %v2055, %v2096
    %v2140 = vadd.f32 %v2056, %v2116
    %v2141 = vadd.f32 %v2057, %v2136
    %v2142 = vmul.f32 %v2138, 0.5
    %v2143 = vmul.f32 %v2139, 0.5
    %v2144 = vmul.f32 %v2140, 0.5
    %v2145 = vtanh.pop %v2142
    %v2146 = vtanh.pop %v2143
    %v2147 = vtanh.pop %v2144
    %v2148 = vmul.f32 %v2145, 0.5
    %v2149 = vmul.f32 %v2146, 0.5
    %v2150 = vmul.f32 %v2147, 0.5
    %v2151 = vadd.f32 %v2148, 0.5
    %v2152 = vadd.f32 %v2149, 0.5
    %v2153 = vadd.f32 %v2150, 0.5
    %v2154 = vtanh.pop %v2141
    %v2155 = vmul.f32 %v2152, %v1871
    %v2156 = vmul.f32 %v2151, %v2154
    %v2157 = vadd.f32 %v2155, %v2156
    %v2158 = vtanh.pop %v2157
    %v2159 = vmul.f32 %v2153, %v2158
    %2160 = vmatpush.msra.mxu0 %v379
    %2161 = vmatpush.msra.mxu0 %v375
    %2162 = vmatpush.msra.mxu0 %v371
    %2163 = vmatpush.msra.mxu0 %v367
    %2164 = vmatpush.msra.mxu0 %v363
    %2165 = vmatpush.msra.mxu0 %v359
    %2166 = vmatpush.msra.mxu0 %v355
    %2167 = vmatpush.msra.mxu0 %v351
    %2168 = vmatpush.msra.mxu0 %v347
    %2169 = vmatpush.msra.mxu0 %v343
    %2170 = vmatpush.msra.mxu0 %v339
    %2171 = vmatpush.msra.mxu0 %v335
    %2172 = vmatpush.msra.mxu0 %v331
    %2173 = vmatpush.msra.mxu0 %v327
    %2174 = vmatpush.msra.mxu0 %v323
    %2175 = vmatpush.msra.mxu0 %v319
    %2176 = vmatmul.f32.gmra.mxu0 %v2159
    %v2177 = vpop.f32.mrf.mxu0
    %v2178 = vadd.f32 %v451, %v2177
    %2179 = vdwg.mxu0
    %2180 = vmatpush.msra.mxu0 %v443
    %2181 = vmatpush.msra.mxu0 %v439
    %2182 = vmatpush.msra.mxu0 %v435
    %2183 = vmatpush.msra.mxu0 %v431
    %2184 = vmatpush.msra.mxu0 %v427
    %2185 = vmatpush.msra.mxu0 %v423
    %2186 = vmatpush.msra.mxu0 %v419
    %2187 = vmatpush.msra.mxu0 %v415
    %2188 = vmatpush.msra.mxu0 %v411
    %2189 = vmatpush.msra.mxu0 %v407
    %2190 = vmatpush.msra.mxu0 %v403
    %2191 = vmatpush.msra.mxu0 %v399
    %2192 = vmatpush.msra.mxu0 %v395
    %2193 = vmatpush.msra.mxu0 %v391
    %2194 = vmatpush.msra.mxu0 %v387
    %2195 = vmatpush.msra.mxu0 %v383
    %2196 = vmatmul.f32.gmra.mxu0 %v2051
    %v2197 = vpop.f32.mrf.mxu0
    %v2198 = vadd.f32 %v2178, %v2197
    %2199 = vdwg.mxu0
    %2200 = vmatpush.msra.mxu0 %v380
    %2201 = vmatpush.msra.mxu0 %v376
    %2202 = vmatpush.msra.mxu0 %v372
    %2203 = vmatpush.msra.mxu0 %v368
    %2204 = vmatpush.msra.mxu0 %v364
    %2205 = vmatpush.msra.mxu0 %v360
    %2206 = vmatpush.msra.mxu0 %v356
    %2207 = vmatpush.msra.mxu0 %v352
    %2208 = vmatpush.msra.mxu0 %v348
    %2209 = vmatpush.msra.mxu0 %v344
    %2210 = vmatpush.msra.mxu0 %v340
    %2211 = vmatpush.msra.mxu0 %v336
    %2212 = vmatpush.msra.mxu0 %v332
    %2213 = vmatpush.msra.mxu0 %v328
    %2214 = vmatpush.msra.mxu0 %v324
    %2215 = vmatpush.msra.mxu0 %v320
    %2216 = vmatmul.f32.gmra.mxu0 %v2159
    %v2217 = vpop.f32.mrf.mxu0
    %v2218 = vadd.f32 %v452, %v2217
    %2219 = vdwg.mxu0
    %2220 = vmatpush.msra.mxu0 %v444
    %2221 = vmatpush.msra.mxu0 %v440
    %2222 = vmatpush.msra.mxu0 %v436
    %2223 = vmatpush.msra.mxu0 %v432
    %2224 = vmatpush.msra.mxu0 %v428
    %2225 = vmatpush.msra.mxu0 %v424
    %2226 = vmatpush.msra.mxu0 %v420
    %2227 = vmatpush.msra.mxu0 %v416
    %2228 = vmatpush.msra.mxu0 %v412
    %2229 = vmatpush.msra.mxu0 %v408
    %2230 = vmatpush.msra.mxu0 %v404
    %2231 = vmatpush.msra.mxu0 %v400
    %2232 = vmatpush.msra.mxu0 %v396
    %2233 = vmatpush.msra.mxu0 %v392
    %2234 = vmatpush.msra.mxu0 %v388
    %2235 = vmatpush.msra.mxu0 %v384
    %2236 = vmatmul.f32.gmra.mxu0 %v2051
    %v2237 = vpop.f32.mrf.mxu0
    %v2238 = vadd.f32 %v2218, %v2237
    %2239 = vdwg.mxu0
    %2240 = vmatpush.msra.mxu0 %v381
    %2241 = vmatpush.msra.mxu0 %v377
    %2242 = vmatpush.msra.mxu0 %v373
    %2243 = vmatpush.msra.mxu0 %v369
    %2244 = vmatpush.msra.mxu0 %v365
    %2245 = vmatpush.msra.mxu0 %v361
    %2246 = vmatpush.msra.mxu0 %v357
    %2247 = vmatpush.msra.mxu0 %v353
    %2248 = vmatpush.msra.mxu0 %v349
    %2249 = vmatpush.msra.mxu0 %v345
    %2250 = vmatpush.msra.mxu0 %v341
    %2251 = vmatpush.msra.mxu0 %v337
    %2252 = vmatpush.msra.mxu0 %v333
    %2253 = vmatpush.msra.mxu0 %v329
    %2254 = vmatpush.msra.mxu0 %v325
    %2255 = vmatpush.msra.mxu0 %v321
    %2256 = vmatmul.f32.gmra.mxu0 %v2159
    %v2257 = vpop.f32.mrf.mxu0
    %v2258 = vadd.f32 %v453, %v2257
    %2259 = vdwg.mxu0
    %2260 = vmatpush.msra.mxu0 %v445
    %2261 = vmatpush.msra.mxu0 %v441
    %2262 = vmatpush.msra.mxu0 %v437
    %2263 = vmatpush.msra.mxu0 %v433
    %2264 = vmatpush.msra.mxu0 %v429
    %2265 = vmatpush.msra.mxu0 %v425
    %2266 = vmatpush.msra.mxu0 %v421
    %2267 = vmatpush.msra.mxu0 %v417
    %2268 = vmatpush.msra.mxu0 %v413
    %2269 = vmatpush.msra.mxu0 %v409
    %2270 = vmatpush.msra.mxu0 %v405
    %2271 = vmatpush.msra.mxu0 %v401
    %2272 = vmatpush.msra.mxu0 %v397
    %2273 = vmatpush.msra.mxu0 %v393
    %2274 = vmatpush.msra.mxu0 %v389
    %2275 = vmatpush.msra.mxu0 %v385
    %2276 = vmatmul.f32.gmra.mxu0 %v2051
    %v2277 = vpop.f32.mrf.mxu0
    %v2278 = vadd.f32 %v2258, %v2277
    %2279 = vdwg.mxu0
    %2280 = vmatpush.msra.mxu0 %v382
    %2281 = vmatpush.msra.mxu0 %v378
    %2282 = vmatpush.msra.mxu0 %v374
    %2283 = vmatpush.msra.mxu0 %v370
    %2284 = vmatpush.msra.mxu0 %v366
    %2285 = vmatpush.msra.mxu0 %v362
    %2286 = vmatpush.msra.mxu0 %v358
    %2287 = vmatpush.msra.mxu0 %v354
    %2288 = vmatpush.msra.mxu0 %v350
    %2289 = vmatpush.msra.mxu0 %v346
    %2290 = vmatpush.msra.mxu0 %v342
    %2291 = vmatpush.msra.mxu0 %v338
    %2292 = vmatpush.msra.mxu0 %v334
    %2293 = vmatpush.msra.mxu0 %v330
    %2294 = vmatpush.msra.mxu0 %v326
    %2295 = vmatpush.msra.mxu0 %v322
    %2296 = vmatmul.f32.gmra.mxu0 %v2159
    %v2297 = vpop.f32.mrf.mxu0
    %v2298 = vadd.f32 %v454, %v2297
    %2299 = vdwg.mxu0
    %2300 = vmatpush.msra.mxu0 %v446
    %2301 = vmatpush.msra.mxu0 %v442
    %2302 = vmatpush.msra.mxu0 %v438
    %2303 = vmatpush.msra.mxu0 %v434
    %2304 = vmatpush.msra.mxu0 %v430
    %2305 = vmatpush.msra.mxu0 %v426
    %2306 = vmatpush.msra.mxu0 %v422
    %2307 = vmatpush.msra.mxu0 %v418
    %2308 = vmatpush.msra.mxu0 %v414
    %2309 = vmatpush.msra.mxu0 %v410
    %2310 = vmatpush.msra.mxu0 %v406
    %2311 = vmatpush.msra.mxu0 %v402
    %2312 = vmatpush.msra.mxu0 %v398
    %2313 = vmatpush.msra.mxu0 %v394
    %2314 = vmatpush.msra.mxu0 %v390
    %2315 = vmatpush.msra.mxu0 %v386
    %2316 = vmatmul.f32.gmra.mxu0 %v2051
    %v2317 = vpop.f32.mrf.mxu0
    %v2318 = vadd.f32 %v2298, %v2317
    %2319 = vdwg.mxu0
    %v2320 = vmul.f32 %v2198, 0.5
    %v2321 = vmul.f32 %v2238, 0.5
    %v2322 = vmul.f32 %v2278, 0.5
    %v2323 = vtanh.pop %v2320
    %v2324 = vtanh.pop %v2321
    %v2325 = vtanh.pop %v2322
    %v2326 = vmul.f32 %v2323, 0.5
    %v2327 = vmul.f32 %v2324, 0.5
    %v2328 = vmul.f32 %v2325, 0.5
    %v2329 = vadd.f32 %v2326, 0.5
    %v2330 = vadd.f32 %v2327, 0.5
    %v2331 = vadd.f32 %v2328, 0.5
    %v2332 = vtanh.pop %v2318
    %v2333 = vmul.f32 %v2330, %v2049
    %v2334 = vmul.f32 %v2329, %v2332
    %v2335 = vadd.f32 %v2333, %v2334
    %v2336 = vtanh.pop %v2335
    %v2337 = vmul.f32 %v2331, %v2336
    %s2338 = scalar_lea.vmem [#allocation3], 40
    %2339 = vst [vmem:[%s2338] sm:$0xff] %v2337
    %v2340 = vld [vmem:[%s603] sm:$0xff]
    %v2341 = vld [vmem:[%s603 + $0x8] sm:$0xff]
    %v2342 = vld [vmem:[%s603 + $0x10] sm:$0xff]
    %v2343 = vld [vmem:[%s603 + $0x18] sm:$0xff]
    %2344 = vmatpush.msra.mxu0 %v187
    %2345 = vmatpush.msra.mxu0 %v183
    %2346 = vmatpush.msra.mxu0 %v179
    %2347 = vmatpush.msra.mxu0 %v175
    %2348 = vmatpush.msra.mxu0 %v171
    %2349 = vmatpush.msra.mxu0 %v167
    %2350 = vmatpush.msra.mxu0 %v163
    %2351 = vmatpush.msra.mxu0 %v159
    %2352 = vmatpush.msra.mxu0 %v155
    %2353 = vmatpush.msra.mxu0 %v151
    %2354 = vmatpush.msra.mxu0 %v147
    %2355 = vmatpush.msra.mxu0 %v143
    %2356 = vmatpush.msra.mxu0 %v139
    %2357 = vmatpush.msra.mxu0 %v135
    %2358 = vmatpush.msra.mxu0 %v131
    %2359 = vmatpush.msra.mxu0 %v127
    %2360 = vmatmul.f32.gmra.mxu0 %v2159
    %v2361 = vpop.f32.mrf.mxu0
    %v2362 = vadd.f32 0.0, %v2361
    %2363 = vdwg.mxu0
    %2364 = vmatpush.msra.mxu0 %v188
    %2365 = vmatpush.msra.mxu0 %v184
    %2366 = vmatpush.msra.mxu0 %v180
    %2367 = vmatpush.msra.mxu0 %v176
    %2368 = vmatpush.msra.mxu0 %v172
    %2369 = vmatpush.msra.mxu0 %v168
    %2370 = vmatpush.msra.mxu0 %v164
    %2371 = vmatpush.msra.mxu0 %v160
    %2372 = vmatpush.msra.mxu0 %v156
    %2373 = vmatpush.msra.mxu0 %v152
    %2374 = vmatpush.msra.mxu0 %v148
    %2375 = vmatpush.msra.mxu0 %v144
    %2376 = vmatpush.msra.mxu0 %v140
    %2377 = vmatpush.msra.mxu0 %v136
    %2378 = vmatpush.msra.mxu0 %v132
    %2379 = vmatpush.msra.mxu0 %v128
    %2380 = vmatmul.f32.gmra.mxu0 %v2159
    %v2381 = vpop.f32.mrf.mxu0
    %v2382 = vadd.f32 0.0, %v2381
    %2383 = vdwg.mxu0
    %2384 = vmatpush.msra.mxu0 %v189
    %2385 = vmatpush.msra.mxu0 %v185
    %2386 = vmatpush.msra.mxu0 %v181
    %2387 = vmatpush.msra.mxu0 %v177
    %2388 = vmatpush.msra.mxu0 %v173
    %2389 = vmatpush.msra.mxu0 %v169
    %2390 = vmatpush.msra.mxu0 %v165
    %2391 = vmatpush.msra.mxu0 %v161
    %2392 = vmatpush.msra.mxu0 %v157
    %2393 = vmatpush.msra.mxu0 %v153
    %2394 = vmatpush.msra.mxu0 %v149
    %2395 = vmatpush.msra.mxu0 %v145
    %2396 = vmatpush.msra.mxu0 %v141
    %2397 = vmatpush.msra.mxu0 %v137
    %2398 = vmatpush.msra.mxu0 %v133
    %2399 = vmatpush.msra.mxu0 %v129
    %2400 = vmatmul.f32.gmra.mxu0 %v2159
    %v2401 = vpop.f32.mrf.mxu0
    %v2402 = vadd.f32 0.0, %v2401
    %2403 = vdwg.mxu0
    %2404 = vmatpush.msra.mxu0 %v190
    %2405 = vmatpush.msra.mxu0 %v186
    %2406 = vmatpush.msra.mxu0 %v182
    %2407 = vmatpush.msra.mxu0 %v178
    %2408 = vmatpush.msra.mxu0 %v174
    %2409 = vmatpush.msra.mxu0 %v170
    %2410 = vmatpush.msra.mxu0 %v166
    %2411 = vmatpush.msra.mxu0 %v162
    %2412 = vmatpush.msra.mxu0 %v158
    %2413 = vmatpush.msra.mxu0 %v154
    %2414 = vmatpush.msra.mxu0 %v150
    %2415 = vmatpush.msra.mxu0 %v146
    %2416 = vmatpush.msra.mxu0 %v142
    %2417 = vmatpush.msra.mxu0 %v138
    %2418 = vmatpush.msra.mxu0 %v134
    %2419 = vmatpush.msra.mxu0 %v130
    %2420 = vmatmul.f32.gmra.mxu0 %v2159
    %v2421 = vpop.f32.mrf.mxu0
    %v2422 = vadd.f32 0.0, %v2421
    %2423 = vdwg.mxu0
    %v2424 = vadd.f32 %v2340, %v2362
    %v2425 = vadd.f32 %v2341, %v2382
    %v2426 = vadd.f32 %v2342, %v2402
    %v2427 = vadd.f32 %v2343, %v2422
    %v2428 = vmul.f32 %v2424, 0.5
    %v2429 = vmul.f32 %v2425, 0.5
    %v2430 = vmul.f32 %v2426, 0.5
    %v2431 = vtanh.pop %v2428
    %v2432 = vtanh.pop %v2429
    %v2433 = vtanh.pop %v2430
    %v2434 = vmul.f32 %v2431, 0.5
    %v2435 = vmul.f32 %v2432, 0.5
    %v2436 = vmul.f32 %v2433, 0.5
    %v2437 = vadd.f32 %v2434, 0.5
    %v2438 = vadd.f32 %v2435, 0.5
    %v2439 = vadd.f32 %v2436, 0.5
    %v2440 = vtanh.pop %v2427
    %v2441 = vmul.f32 %v2438, %v2157
    %v2442 = vmul.f32 %v2437, %v2440
    %v2443 = vadd.f32 %v2441, %v2442
    %v2444 = vtanh.pop %v2443
    %v2445 = vmul.f32 %v2439, %v2444
    %2446 = vmatpush.msra.mxu0 %v379
    %2447 = vmatpush.msra.mxu0 %v375
    %2448 = vmatpush.msra.mxu0 %v371
    %2449 = vmatpush.msra.mxu0 %v367
    %2450 = vmatpush.msra.mxu0 %v363
    %2451 = vmatpush.msra.mxu0 %v359
    %2452 = vmatpush.msra.mxu0 %v355
    %2453 = vmatpush.msra.mxu0 %v351
    %2454 = vmatpush.msra.mxu0 %v347
    %2455 = vmatpush.msra.mxu0 %v343
    %2456 = vmatpush.msra.mxu0 %v339
    %2457 = vmatpush.msra.mxu0 %v335
    %2458 = vmatpush.msra.mxu0 %v331
    %2459 = vmatpush.msra.mxu0 %v327
    %2460 = vmatpush.msra.mxu0 %v323
    %2461 = vmatpush.msra.mxu0 %v319
    %2462 = vmatmul.f32.gmra.mxu0 %v2445
    %v2463 = vpop.f32.mrf.mxu0
    %v2464 = vadd.f32 %v451, %v2463
    %2465 = vdwg.mxu0
    %2466 = vmatpush.msra.mxu0 %v443
    %2467 = vmatpush.msra.mxu0 %v439
    %2468 = vmatpush.msra.mxu0 %v435
    %2469 = vmatpush.msra.mxu0 %v431
    %2470 = vmatpush.msra.mxu0 %v427
    %2471 = vmatpush.msra.mxu0 %v423
    %2472 = vmatpush.msra.mxu0 %v419
    %2473 = vmatpush.msra.mxu0 %v415
    %2474 = vmatpush.msra.mxu0 %v411
    %2475 = vmatpush.msra.mxu0 %v407
    %2476 = vmatpush.msra.mxu0 %v403
    %2477 = vmatpush.msra.mxu0 %v399
    %2478 = vmatpush.msra.mxu0 %v395
    %2479 = vmatpush.msra.mxu0 %v391
    %2480 = vmatpush.msra.mxu0 %v387
    %2481 = vmatpush.msra.mxu0 %v383
    %2482 = vmatmul.f32.gmra.mxu0 %v2337
    %v2483 = vpop.f32.mrf.mxu0
    %v2484 = vadd.f32 %v2464, %v2483
    %2485 = vdwg.mxu0
    %2486 = vmatpush.msra.mxu0 %v380
    %2487 = vmatpush.msra.mxu0 %v376
    %2488 = vmatpush.msra.mxu0 %v372
    %2489 = vmatpush.msra.mxu0 %v368
    %2490 = vmatpush.msra.mxu0 %v364
    %2491 = vmatpush.msra.mxu0 %v360
    %2492 = vmatpush.msra.mxu0 %v356
    %2493 = vmatpush.msra.mxu0 %v352
    %2494 = vmatpush.msra.mxu0 %v348
    %2495 = vmatpush.msra.mxu0 %v344
    %2496 = vmatpush.msra.mxu0 %v340
    %2497 = vmatpush.msra.mxu0 %v336
    %2498 = vmatpush.msra.mxu0 %v332
    %2499 = vmatpush.msra.mxu0 %v328
    %2500 = vmatpush.msra.mxu0 %v324
    %2501 = vmatpush.msra.mxu0 %v320
    %2502 = vmatmul.f32.gmra.mxu0 %v2445
    %v2503 = vpop.f32.mrf.mxu0
    %v2504 = vadd.f32 %v452, %v2503
    %2505 = vdwg.mxu0
    %2506 = vmatpush.msra.mxu0 %v444
    %2507 = vmatpush.msra.mxu0 %v440
    %2508 = vmatpush.msra.mxu0 %v436
    %2509 = vmatpush.msra.mxu0 %v432
    %2510 = vmatpush.msra.mxu0 %v428
    %2511 = vmatpush.msra.mxu0 %v424
    %2512 = vmatpush.msra.mxu0 %v420
    %2513 = vmatpush.msra.mxu0 %v416
    %2514 = vmatpush.msra.mxu0 %v412
    %2515 = vmatpush.msra.mxu0 %v408
    %2516 = vmatpush.msra.mxu0 %v404
    %2517 = vmatpush.msra.mxu0 %v400
    %2518 = vmatpush.msra.mxu0 %v396
    %2519 = vmatpush.msra.mxu0 %v392
    %2520 = vmatpush.msra.mxu0 %v388
    %2521 = vmatpush.msra.mxu0 %v384
    %2522 = vmatmul.f32.gmra.mxu0 %v2337
    %v2523 = vpop.f32.mrf.mxu0
    %v2524 = vadd.f32 %v2504, %v2523
    %2525 = vdwg.mxu0
    %2526 = vmatpush.msra.mxu0 %v381
    %2527 = vmatpush.msra.mxu0 %v377
    %2528 = vmatpush.msra.mxu0 %v373
    %2529 = vmatpush.msra.mxu0 %v369
    %2530 = vmatpush.msra.mxu0 %v365
    %2531 = vmatpush.msra.mxu0 %v361
    %2532 = vmatpush.msra.mxu0 %v357
    %2533 = vmatpush.msra.mxu0 %v353
    %2534 = vmatpush.msra.mxu0 %v349
    %2535 = vmatpush.msra.mxu0 %v345
    %2536 = vmatpush.msra.mxu0 %v341
    %2537 = vmatpush.msra.mxu0 %v337
    %2538 = vmatpush.msra.mxu0 %v333
    %2539 = vmatpush.msra.mxu0 %v329
    %2540 = vmatpush.msra.mxu0 %v325
    %2541 = vmatpush.msra.mxu0 %v321
    %2542 = vmatmul.f32.gmra.mxu0 %v2445
    %v2543 = vpop.f32.mrf.mxu0
    %v2544 = vadd.f32 %v453, %v2543
    %2545 = vdwg.mxu0
    %2546 = vmatpush.msra.mxu0 %v445
    %2547 = vmatpush.msra.mxu0 %v441
    %2548 = vmatpush.msra.mxu0 %v437
    %2549 = vmatpush.msra.mxu0 %v433
    %2550 = vmatpush.msra.mxu0 %v429
    %2551 = vmatpush.msra.mxu0 %v425
    %2552 = vmatpush.msra.mxu0 %v421
    %2553 = vmatpush.msra.mxu0 %v417
    %2554 = vmatpush.msra.mxu0 %v413
    %2555 = vmatpush.msra.mxu0 %v409
    %2556 = vmatpush.msra.mxu0 %v405
    %2557 = vmatpush.msra.mxu0 %v401
    %2558 = vmatpush.msra.mxu0 %v397
    %2559 = vmatpush.msra.mxu0 %v393
    %2560 = vmatpush.msra.mxu0 %v389
    %2561 = vmatpush.msra.mxu0 %v385
    %2562 = vmatmul.f32.gmra.mxu0 %v2337
    %v2563 = vpop.f32.mrf.mxu0
    %v2564 = vadd.f32 %v2544, %v2563
    %2565 = vdwg.mxu0
    %2566 = vmatpush.msra.mxu0 %v382
    %2567 = vmatpush.msra.mxu0 %v378
    %2568 = vmatpush.msra.mxu0 %v374
    %2569 = vmatpush.msra.mxu0 %v370
    %2570 = vmatpush.msra.mxu0 %v366
    %2571 = vmatpush.msra.mxu0 %v362
    %2572 = vmatpush.msra.mxu0 %v358
    %2573 = vmatpush.msra.mxu0 %v354
    %2574 = vmatpush.msra.mxu0 %v350
    %2575 = vmatpush.msra.mxu0 %v346
    %2576 = vmatpush.msra.mxu0 %v342
    %2577 = vmatpush.msra.mxu0 %v338
    %2578 = vmatpush.msra.mxu0 %v334
    %2579 = vmatpush.msra.mxu0 %v330
    %2580 = vmatpush.msra.mxu0 %v326
    %2581 = vmatpush.msra.mxu0 %v322
    %2582 = vmatmul.f32.gmra.mxu0 %v2445
    %v2583 = vpop.f32.mrf.mxu0
    %v2584 = vadd.f32 %v454, %v2583
    %2585 = vdwg.mxu0
    %2586 = vmatpush.msra.mxu0 %v446
    %2587 = vmatpush.msra.mxu0 %v442
    %2588 = vmatpush.msra.mxu0 %v438
    %2589 = vmatpush.msra.mxu0 %v434
    %2590 = vmatpush.msra.mxu0 %v430
    %2591 = vmatpush.msra.mxu0 %v426
    %2592 = vmatpush.msra.mxu0 %v422
    %2593 = vmatpush.msra.mxu0 %v418
    %2594 = vmatpush.msra.mxu0 %v414
    %2595 = vmatpush.msra.mxu0 %v410
    %2596 = vmatpush.msra.mxu0 %v406
    %2597 = vmatpush.msra.mxu0 %v402
    %2598 = vmatpush.msra.mxu0 %v398
    %2599 = vmatpush.msra.mxu0 %v394
    %2600 = vmatpush.msra.mxu0 %v390
    %2601 = vmatpush.msra.mxu0 %v386
    %2602 = vmatmul.f32.gmra.mxu0 %v2337
    %v2603 = vpop.f32.mrf.mxu0
    %v2604 = vadd.f32 %v2584, %v2603
    %2605 = vdwg.mxu0
    %v2606 = vmul.f32 %v2484, 0.5
    %v2607 = vmul.f32 %v2524, 0.5
    %v2608 = vmul.f32 %v2564, 0.5
    %v2609 = vtanh.pop %v2606
    %v2610 = vtanh.pop %v2607
    %v2611 = vtanh.pop %v2608
    %v2612 = vmul.f32 %v2609, 0.5
    %v2613 = vmul.f32 %v2610, 0.5
    %v2614 = vmul.f32 %v2611, 0.5
    %v2615 = vadd.f32 %v2612, 0.5
    %v2616 = vadd.f32 %v2613, 0.5
    %v2617 = vadd.f32 %v2614, 0.5
    %v2618 = vtanh.pop %v2604
    %v2619 = vmul.f32 %v2616, %v2335
    %v2620 = vmul.f32 %v2615, %v2618
    %v2621 = vadd.f32 %v2619, %v2620
    %v2622 = vtanh.pop %v2621
    %v2623 = vmul.f32 %v2617, %v2622
    %s2624 = scalar_lea.vmem [#allocation3], 48
    %2625 = vst [vmem:[%s2624] sm:$0xff] %v2623
    %v2626 = vld [vmem:[%s620] sm:$0xff]
    %v2627 = vld [vmem:[%s620 + $0x8] sm:$0xff]
    %v2628 = vld [vmem:[%s620 + $0x10] sm:$0xff]
    %v2629 = vld [vmem:[%s620 + $0x18] sm:$0xff]
    %2630 = vmatpush.msra.mxu0 %v187
    %2631 = vmatpush.msra.mxu0 %v183
    %2632 = vmatpush.msra.mxu0 %v179
    %2633 = vmatpush.msra.mxu0 %v175
    %2634 = vmatpush.msra.mxu0 %v171
    %2635 = vmatpush.msra.mxu0 %v167
    %2636 = vmatpush.msra.mxu0 %v163
    %2637 = vmatpush.msra.mxu0 %v159
    %2638 = vmatpush.msra.mxu0 %v155
    %2639 = vmatpush.msra.mxu0 %v151
    %2640 = vmatpush.msra.mxu0 %v147
    %2641 = vmatpush.msra.mxu0 %v143
    %2642 = vmatpush.msra.mxu0 %v139
    %2643 = vmatpush.msra.mxu0 %v135
    %2644 = vmatpush.msra.mxu0 %v131
    %2645 = vmatpush.msra.mxu0 %v127
    %2646 = vmatmul.f32.gmra.mxu0 %v2445
    %v2647 = vpop.f32.mrf.mxu0
    %v2648 = vadd.f32 0.0, %v2647
    %2649 = vdwg.mxu0
    %2650 = vmatpush.msra.mxu0 %v188
    %2651 = vmatpush.msra.mxu0 %v184
    %2652 = vmatpush.msra.mxu0 %v180
    %2653 = vmatpush.msra.mxu0 %v176
    %2654 = vmatpush.msra.mxu0 %v172
    %2655 = vmatpush.msra.mxu0 %v168
    %2656 = vmatpush.msra.mxu0 %v164
    %2657 = vmatpush.msra.mxu0 %v160
    %2658 = vmatpush.msra.mxu0 %v156
    %2659 = vmatpush.msra.mxu0 %v152
    %2660 = vmatpush.msra.mxu0 %v148
    %2661 = vmatpush.msra.mxu0 %v144
    %2662 = vmatpush.msra.mxu0 %v140
    %2663 = vmatpush.msra.mxu0 %v136
    %2664 = vmatpush.msra.mxu0 %v132
    %2665 = vmatpush.msra.mxu0 %v128
    %2666 = vmatmul.f32.gmra.mxu0 %v2445
    %v2667 = vpop.f32.mrf.mxu0
    %v2668 = vadd.f32 0.0, %v2667
    %2669 = vdwg.mxu0
    %2670 = vmatpush.msra.mxu0 %v189
    %2671 = vmatpush.msra.mxu0 %v185
    %2672 = vmatpush.msra.mxu0 %v181
    %2673 = vmatpush.msra.mxu0 %v177
    %2674 = vmatpush.msra.mxu0 %v173
    %2675 = vmatpush.msra.mxu0 %v169
    %2676 = vmatpush.msra.mxu0 %v165
    %2677 = vmatpush.msra.mxu0 %v161
    %2678 = vmatpush.msra.mxu0 %v157
    %2679 = vmatpush.msra.mxu0 %v153
    %2680 = vmatpush.msra.mxu0 %v149
    %2681 = vmatpush.msra.mxu0 %v145
    %2682 = vmatpush.msra.mxu0 %v141
    %2683 = vmatpush.msra.mxu0 %v137
    %2684 = vmatpush.msra.mxu0 %v133
    %2685 = vmatpush.msra.mxu0 %v129
    %2686 = vmatmul.f32.gmra.mxu0 %v2445
    %v2687 = vpop.f32.mrf.mxu0
    %v2688 = vadd.f32 0.0, %v2687
    %2689 = vdwg.mxu0
    %2690 = vmatpush.msra.mxu0 %v190
    %2691 = vmatpush.msra.mxu0 %v186
    %2692 = vmatpush.msra.mxu0 %v182
    %2693 = vmatpush.msra.mxu0 %v178
    %2694 = vmatpush.msra.mxu0 %v174
    %2695 = vmatpush.msra.mxu0 %v170
    %2696 = vmatpush.msra.mxu0 %v166
    %2697 = vmatpush.msra.mxu0 %v162
    %2698 = vmatpush.msra.mxu0 %v158
    %2699 = vmatpush.msra.mxu0 %v154
    %2700 = vmatpush.msra.mxu0 %v150
    %2701 = vmatpush.msra.mxu0 %v146
    %2702 = vmatpush.msra.mxu0 %v142
    %2703 = vmatpush.msra.mxu0 %v138
    %2704 = vmatpush.msra.mxu0 %v134
    %2705 = vmatpush.msra.mxu0 %v130
    %2706 = vmatmul.f32.gmra.mxu0 %v2445
    %v2707 = vpop.f32.mrf.mxu0
    %v2708 = vadd.f32 0.0, %v2707
    %2709 = vdwg.mxu0
    %v2710 = vadd.f32 %v2626, %v2648
    %v2711 = vadd.f32 %v2627, %v2668
    %v2712 = vadd.f32 %v2628, %v2688
    %v2713 = vadd.f32 %v2629, %v2708
    %v2714 = vmul.f32 %v2710, 0.5
    %v2715 = vmul.f32 %v2711, 0.5
    %v2716 = vmul.f32 %v2712, 0.5
    %v2717 = vtanh.pop %v2714
    %v2718 = vtanh.pop %v2715
    %v2719 = vtanh.pop %v2716
    %v2720 = vmul.f32 %v2717, 0.5
    %v2721 = vmul.f32 %v2718, 0.5
    %v2722 = vmul.f32 %v2719, 0.5
    %v2723 = vadd.f32 %v2720, 0.5
    %v2724 = vadd.f32 %v2721, 0.5
    %v2725 = vadd.f32 %v2722, 0.5
    %v2726 = vtanh.pop %v2713
    %v2727 = vmul.f32 %v2724, %v2443
    %v2728 = vmul.f32 %v2723, %v2726
    %v2729 = vadd.f32 %v2727, %v2728
    %v2730 = vtanh.pop %v2729
    %v2731 = vmul.f32 %v2725, %v2730
    %2732 = vmatpush.msra.mxu0 %v379
    %2733 = vmatpush.msra.mxu0 %v375
    %2734 = vmatpush.msra.mxu0 %v371
    %2735 = vmatpush.msra.mxu0 %v367
    %2736 = vmatpush.msra.mxu0 %v363
    %2737 = vmatpush.msra.mxu0 %v359
    %2738 = vmatpush.msra.mxu0 %v355
    %2739 = vmatpush.msra.mxu0 %v351
    %2740 = vmatpush.msra.mxu0 %v347
    %2741 = vmatpush.msra.mxu0 %v343
    %2742 = vmatpush.msra.mxu0 %v339
    %2743 = vmatpush.msra.mxu0 %v335
    %2744 = vmatpush.msra.mxu0 %v331
    %2745 = vmatpush.msra.mxu0 %v327
    %2746 = vmatpush.msra.mxu0 %v323
    %2747 = vmatpush.msra.mxu0 %v319
    %2748 = vmatmul.f32.gmra.mxu0 %v2731
    %v2749 = vpop.f32.mrf.mxu0
    %v2750 = vadd.f32 %v451, %v2749
    %2751 = vdwg.mxu0
    %2752 = vmatpush.msra.mxu0 %v443
    %2753 = vmatpush.msra.mxu0 %v439
    %2754 = vmatpush.msra.mxu0 %v435
    %2755 = vmatpush.msra.mxu0 %v431
    %2756 = vmatpush.msra.mxu0 %v427
    %2757 = vmatpush.msra.mxu0 %v423
    %2758 = vmatpush.msra.mxu0 %v419
    %2759 = vmatpush.msra.mxu0 %v415
    %2760 = vmatpush.msra.mxu0 %v411
    %2761 = vmatpush.msra.mxu0 %v407
    %2762 = vmatpush.msra.mxu0 %v403
    %2763 = vmatpush.msra.mxu0 %v399
    %2764 = vmatpush.msra.mxu0 %v395
    %2765 = vmatpush.msra.mxu0 %v391
    %2766 = vmatpush.msra.mxu0 %v387
    %2767 = vmatpush.msra.mxu0 %v383
    %2768 = vmatmul.f32.gmra.mxu0 %v2623
    %v2769 = vpop.f32.mrf.mxu0
    %v2770 = vadd.f32 %v2750, %v2769
    %2771 = vdwg.mxu0
    %2772 = vmatpush.msra.mxu0 %v380
    %2773 = vmatpush.msra.mxu0 %v376
    %2774 = vmatpush.msra.mxu0 %v372
    %2775 = vmatpush.msra.mxu0 %v368
    %2776 = vmatpush.msra.mxu0 %v364
    %2777 = vmatpush.msra.mxu0 %v360
    %2778 = vmatpush.msra.mxu0 %v356
    %2779 = vmatpush.msra.mxu0 %v352
    %2780 = vmatpush.msra.mxu0 %v348
    %2781 = vmatpush.msra.mxu0 %v344
    %2782 = vmatpush.msra.mxu0 %v340
    %2783 = vmatpush.msra.mxu0 %v336
    %2784 = vmatpush.msra.mxu0 %v332
    %2785 = vmatpush.msra.mxu0 %v328
    %2786 = vmatpush.msra.mxu0 %v324
    %2787 = vmatpush.msra.mxu0 %v320
    %2788 = vmatmul.f32.gmra.mxu0 %v2731
    %v2789 = vpop.f32.mrf.mxu0
    %v2790 = vadd.f32 %v452, %v2789
    %2791 = vdwg.mxu0
    %2792 = vmatpush.msra.mxu0 %v444
    %2793 = vmatpush.msra.mxu0 %v440
    %2794 = vmatpush.msra.mxu0 %v436
    %2795 = vmatpush.msra.mxu0 %v432
    %2796 = vmatpush.msra.mxu0 %v428
    %2797 = vmatpush.msra.mxu0 %v424
    %2798 = vmatpush.msra.mxu0 %v420
    %2799 = vmatpush.msra.mxu0 %v416
    %2800 = vmatpush.msra.mxu0 %v412
    %2801 = vmatpush.msra.mxu0 %v408
    %2802 = vmatpush.msra.mxu0 %v404
    %2803 = vmatpush.msra.mxu0 %v400
    %2804 = vmatpush.msra.mxu0 %v396
    %2805 = vmatpush.msra.mxu0 %v392
    %2806 = vmatpush.msra.mxu0 %v388
    %2807 = vmatpush.msra.mxu0 %v384
    %2808 = vmatmul.f32.gmra.mxu0 %v2623
    %v2809 = vpop.f32.mrf.mxu0
    %v2810 = vadd.f32 %v2790, %v2809
    %2811 = vdwg.mxu0
    %2812 = vmatpush.msra.mxu0 %v381
    %2813 = vmatpush.msra.mxu0 %v377
    %2814 = vmatpush.msra.mxu0 %v373
    %2815 = vmatpush.msra.mxu0 %v369
    %2816 = vmatpush.msra.mxu0 %v365
    %2817 = vmatpush.msra.mxu0 %v361
    %2818 = vmatpush.msra.mxu0 %v357
    %2819 = vmatpush.msra.mxu0 %v353
    %2820 = vmatpush.msra.mxu0 %v349
    %2821 = vmatpush.msra.mxu0 %v345
    %2822 = vmatpush.msra.mxu0 %v341
    %2823 = vmatpush.msra.mxu0 %v337
    %2824 = vmatpush.msra.mxu0 %v333
    %2825 = vmatpush.msra.mxu0 %v329
    %2826 = vmatpush.msra.mxu0 %v325
    %2827 = vmatpush.msra.mxu0 %v321
    %2828 = vmatmul.f32.gmra.mxu0 %v2731
    %v2829 = vpop.f32.mrf.mxu0
    %v2830 = vadd.f32 %v453, %v2829
    %2831 = vdwg.mxu0
    %2832 = vmatpush.msra.mxu0 %v445
    %2833 = vmatpush.msra.mxu0 %v441
    %2834 = vmatpush.msra.mxu0 %v437
    %2835 = vmatpush.msra.mxu0 %v433
    %2836 = vmatpush.msra.mxu0 %v429
    %2837 = vmatpush.msra.mxu0 %v425
    %2838 = vmatpush.msra.mxu0 %v421
    %2839 = vmatpush.msra.mxu0 %v417
    %2840 = vmatpush.msra.mxu0 %v413
    %2841 = vmatpush.msra.mxu0 %v409
    %2842 = vmatpush.msra.mxu0 %v405
    %2843 = vmatpush.msra.mxu0 %v401
    %2844 = vmatpush.msra.mxu0 %v397
    %2845 = vmatpush.msra.mxu0 %v393
    %2846 = vmatpush.msra.mxu0 %v389
    %2847 = vmatpush.msra.mxu0 %v385
    %2848 = vmatmul.f32.gmra.mxu0 %v2623
    %v2849 = vpop.f32.mrf.mxu0
    %v2850 = vadd.f32 %v2830, %v2849
    %2851 = vdwg.mxu0
    %2852 = vmatpush.msra.mxu0 %v382
    %2853 = vmatpush.msra.mxu0 %v378
    %2854 = vmatpush.msra.mxu0 %v374
    %2855 = vmatpush.msra.mxu0 %v370
    %2856 = vmatpush.msra.mxu0 %v366
    %2857 = vmatpush.msra.mxu0 %v362
    %2858 = vmatpush.msra.mxu0 %v358
    %2859 = vmatpush.msra.mxu0 %v354
    %2860 = vmatpush.msra.mxu0 %v350
    %2861 = vmatpush.msra.mxu0 %v346
    %2862 = vmatpush.msra.mxu0 %v342
    %2863 = vmatpush.msra.mxu0 %v338
    %2864 = vmatpush.msra.mxu0 %v334
    %2865 = vmatpush.msra.mxu0 %v330
    %2866 = vmatpush.msra.mxu0 %v326
    %2867 = vmatpush.msra.mxu0 %v322
    %2868 = vmatmul.f32.gmra.mxu0 %v2731
    %v2869 = vpop.f32.mrf.mxu0
    %v2870 = vadd.f32 %v454, %v2869
    %2871 = vdwg.mxu0
    %2872 = vmatpush.msra.mxu0 %v446
    %2873 = vmatpush.msra.mxu0 %v442
    %2874 = vmatpush.msra.mxu0 %v438
    %2875 = vmatpush.msra.mxu0 %v434
    %2876 = vmatpush.msra.mxu0 %v430
    %2877 = vmatpush.msra.mxu0 %v426
    %2878 = vmatpush.msra.mxu0 %v422
    %2879 = vmatpush.msra.mxu0 %v418
    %2880 = vmatpush.msra.mxu0 %v414
    %2881 = vmatpush.msra.mxu0 %v410
    %2882 = vmatpush.msra.mxu0 %v406
    %2883 = vmatpush.msra.mxu0 %v402
    %2884 = vmatpush.msra.mxu0 %v398
    %2885 = vmatpush.msra.mxu0 %v394
    %2886 = vmatpush.msra.mxu0 %v390
    %2887 = vmatpush.msra.mxu0 %v386
    %2888 = vmatmul.f32.gmra.mxu0 %v2623
    %v2889 = vpop.f32.mrf.mxu0
    %v2890 = vadd.f32 %v2870, %v2889
    %2891 = vdwg.mxu0
    %v2892 = vmul.f32 %v2770, 0.5
    %v2893 = vmul.f32 %v2810, 0.5
    %v2894 = vmul.f32 %v2850, 0.5
    %v2895 = vtanh.pop %v2892
    %v2896 = vtanh.pop %v2893
    %v2897 = vtanh.pop %v2894
    %v2898 = vmul.f32 %v2895, 0.5
    %v2899 = vmul.f32 %v2896, 0.5
    %v2900 = vmul.f32 %v2897, 0.5
    %v2901 = vadd.f32 %v2898, 0.5
    %v2902 = vadd.f32 %v2899, 0.5
    %v2903 = vadd.f32 %v2900, 0.5
    %v2904 = vtanh.pop %v2890
    %v2905 = vmul.f32 %v2902, %v2621
    %v2906 = vmul.f32 %v2901, %v2904
    %v2907 = vadd.f32 %v2905, %v2906
    %v2908 = vtanh.pop %v2907
    %v2909 = vmul.f32 %v2903, %v2908
    %s2910 = scalar_lea.vmem [#allocation3], 56
    %2911 = vst [vmem:[%s2910] sm:$0xff] %v2909
    %2912 = vmatpush.msra.mxu0 %v251
    %2913 = vmatpush.msra.mxu0 %v247
    %2914 = vmatpush.msra.mxu0 %v243
    %2915 = vmatpush.msra.mxu0 %v239
    %2916 = vmatpush.msra.mxu0 %v235
    %2917 = vmatpush.msra.mxu0 %v231
    %2918 = vmatpush.msra.mxu0 %v227
    %2919 = vmatpush.msra.mxu0 %v223
    %2920 = vmatpush.msra.mxu0 %v219
    %2921 = vmatpush.msra.mxu0 %v215
    %2922 = vmatpush.msra.mxu0 %v211
    %2923 = vmatpush.msra.mxu0 %v207
    %2924 = vmatpush.msra.mxu0 %v203
    %2925 = vmatpush.msra.mxu0 %v199
    %2926 = vmatpush.msra.mxu0 %v195
    %2927 = vmatpush.msra.mxu0 %v191
    %2928 = vmatmul.f32.gmra.mxu0 %v2731
    %v2929 = vpop.f32.mrf.mxu0
    %v2930 = vadd.f32 %v461, %v2929
    %2931 = vdwg.mxu0
    %2932 = vmatpush.msra.mxu0 %v315
    %2933 = vmatpush.msra.mxu0 %v311
    %2934 = vmatpush.msra.mxu0 %v307
    %2935 = vmatpush.msra.mxu0 %v303
    %2936 = vmatpush.msra.mxu0 %v299
    %2937 = vmatpush.msra.mxu0 %v295
    %2938 = vmatpush.msra.mxu0 %v291
    %2939 = vmatpush.msra.mxu0 %v287
    %2940 = vmatpush.msra.mxu0 %v283
    %2941 = vmatpush.msra.mxu0 %v279
    %2942 = vmatpush.msra.mxu0 %v275
    %2943 = vmatpush.msra.mxu0 %v271
    %2944 = vmatpush.msra.mxu0 %v267
    %2945 = vmatpush.msra.mxu0 %v263
    %2946 = vmatpush.msra.mxu0 %v259
    %2947 = vmatpush.msra.mxu0 %v255
    %2948 = vmatmul.f32.gmra.mxu0 %v2909
    %v2949 = vpop.f32.mrf.mxu0
    %v2950 = vadd.f32 %v2930, %v2949
    %2951 = vdwg.mxu0
    %2952 = vmatpush.msra.mxu0 %v252
    %2953 = vmatpush.msra.mxu0 %v248
    %2954 = vmatpush.msra.mxu0 %v244
    %2955 = vmatpush.msra.mxu0 %v240
    %2956 = vmatpush.msra.mxu0 %v236
    %2957 = vmatpush.msra.mxu0 %v232
    %2958 = vmatpush.msra.mxu0 %v228
    %2959 = vmatpush.msra.mxu0 %v224
    %2960 = vmatpush.msra.mxu0 %v220
    %2961 = vmatpush.msra.mxu0 %v216
    %2962 = vmatpush.msra.mxu0 %v212
    %2963 = vmatpush.msra.mxu0 %v208
    %2964 = vmatpush.msra.mxu0 %v204
    %2965 = vmatpush.msra.mxu0 %v200
    %2966 = vmatpush.msra.mxu0 %v196
    %2967 = vmatpush.msra.mxu0 %v192
    %2968 = vmatmul.f32.gmra.mxu0 %v2731
    %v2969 = vpop.f32.mrf.mxu0
    %v2970 = vadd.f32 %v462, %v2969
    %2971 = vdwg.mxu0
    %2972 = vmatpush.msra.mxu0 %v316
    %2973 = vmatpush.msra.mxu0 %v312
    %2974 = vmatpush.msra.mxu0 %v308
    %2975 = vmatpush.msra.mxu0 %v304
    %2976 = vmatpush.msra.mxu0 %v300
    %2977 = vmatpush.msra.mxu0 %v296
    %2978 = vmatpush.msra.mxu0 %v292
    %2979 = vmatpush.msra.mxu0 %v288
    %2980 = vmatpush.msra.mxu0 %v284
    %2981 = vmatpush.msra.mxu0 %v280
    %2982 = vmatpush.msra.mxu0 %v276
    %2983 = vmatpush.msra.mxu0 %v272
    %2984 = vmatpush.msra.mxu0 %v268
    %2985 = vmatpush.msra.mxu0 %v264
    %2986 = vmatpush.msra.mxu0 %v260
    %2987 = vmatpush.msra.mxu0 %v256
    %2988 = vmatmul.f32.gmra.mxu0 %v2909
    %v2989 = vpop.f32.mrf.mxu0
    %v2990 = vadd.f32 %v2970, %v2989
    %2991 = vdwg.mxu0
    %2992 = vmatpush.msra.mxu0 %v253
    %2993 = vmatpush.msra.mxu0 %v249
    %2994 = vmatpush.msra.mxu0 %v245
    %2995 = vmatpush.msra.mxu0 %v241
    %2996 = vmatpush.msra.mxu0 %v237
    %2997 = vmatpush.msra.mxu0 %v233
    %2998 = vmatpush.msra.mxu0 %v229
    %2999 = vmatpush.msra.mxu0 %v225
    %3000 = vmatpush.msra.mxu0 %v221
    %3001 = vmatpush.msra.mxu0 %v217
    %3002 = vmatpush.msra.mxu0 %v213
    %3003 = vmatpush.msra.mxu0 %v209
    %3004 = vmatpush.msra.mxu0 %v205
    %3005 = vmatpush.msra.mxu0 %v201
    %3006 = vmatpush.msra.mxu0 %v197
    %3007 = vmatpush.msra.mxu0 %v193
    %3008 = vmatmul.f32.gmra.mxu0 %v2731
    %v3009 = vpop.f32.mrf.mxu0
    %v3010 = vadd.f32 %v463, %v3009
    %3011 = vdwg.mxu0
    %3012 = vmatpush.msra.mxu0 %v317
    %3013 = vmatpush.msra.mxu0 %v313
    %3014 = vmatpush.msra.mxu0 %v309
    %3015 = vmatpush.msra.mxu0 %v305
    %3016 = vmatpush.msra.mxu0 %v301
    %3017 = vmatpush.msra.mxu0 %v297
    %3018 = vmatpush.msra.mxu0 %v293
    %3019 = vmatpush.msra.mxu0 %v289
    %3020 = vmatpush.msra.mxu0 %v285
    %3021 = vmatpush.msra.mxu0 %v281
    %3022 = vmatpush.msra.mxu0 %v277
    %3023 = vmatpush.msra.mxu0 %v273
    %3024 = vmatpush.msra.mxu0 %v269
    %3025 = vmatpush.msra.mxu0 %v265
    %3026 = vmatpush.msra.mxu0 %v261
    %3027 = vmatpush.msra.mxu0 %v257
    %3028 = vmatmul.f32.gmra.mxu0 %v2909
    %v3029 = vpop.f32.mrf.mxu0
    %v3030 = vadd.f32 %v3010, %v3029
    %3031 = vdwg.mxu0
    %3032 = vmatpush.msra.mxu0 %v254
    %3033 = vmatpush.msra.mxu0 %v250
    %3034 = vmatpush.msra.mxu0 %v246
    %3035 = vmatpush.msra.mxu0 %v242
    %3036 = vmatpush.msra.mxu0 %v238
    %3037 = vmatpush.msra.mxu0 %v234
    %3038 = vmatpush.msra.mxu0 %v230
    %3039 = vmatpush.msra.mxu0 %v226
    %3040 = vmatpush.msra.mxu0 %v222
    %3041 = vmatpush.msra.mxu0 %v218
    %3042 = vmatpush.msra.mxu0 %v214
    %3043 = vmatpush.msra.mxu0 %v210
    %3044 = vmatpush.msra.mxu0 %v206
    %3045 = vmatpush.msra.mxu0 %v202
    %3046 = vmatpush.msra.mxu0 %v198
    %3047 = vmatpush.msra.mxu0 %v194
    %3048 = vmatmul.f32.gmra.mxu0 %v2731
    %v3049 = vpop.f32.mrf.mxu0
    %v3050 = vadd.f32 %v464, %v3049
    %3051 = vdwg.mxu0
    %3052 = vmatpush.msra.mxu0 %v318
    %3053 = vmatpush.msra.mxu0 %v314
    %3054 = vmatpush.msra.mxu0 %v310
    %3055 = vmatpush.msra.mxu0 %v306
    %3056 = vmatpush.msra.mxu0 %v302
    %3057 = vmatpush.msra.mxu0 %v298
    %3058 = vmatpush.msra.mxu0 %v294
    %3059 = vmatpush.msra.mxu0 %v290
    %3060 = vmatpush.msra.mxu0 %v286
    %3061 = vmatpush.msra.mxu0 %v282
    %3062 = vmatpush.msra.mxu0 %v278
    %3063 = vmatpush.msra.mxu0 %v274
    %3064 = vmatpush.msra.mxu0 %v270
    %3065 = vmatpush.msra.mxu0 %v266
    %3066 = vmatpush.msra.mxu0 %v262
    %3067 = vmatpush.msra.mxu0 %v258
    %3068 = vmatmul.f32.gmra.mxu0 %v2909
    %v3069 = vpop.f32.mrf.mxu0
    %v3070 = vadd.f32 %v3050, %v3069
    %3071 = vdwg.mxu0
    %v3072 = vmul.f32 %v2950, 0.5
    %v3073 = vmul.f32 %v2990, 0.5
    %v3074 = vmul.f32 %v3030, 0.5
    %v3075 = vtanh.pop %v3072
    %v3076 = vtanh.pop %v3073
    %v3077 = vtanh.pop %v3074
    %v3078 = vmul.f32 %v3075, 0.5
    %v3079 = vmul.f32 %v3076, 0.5
    %v3080 = vmul.f32 %v3077, 0.5
    %v3081 = vadd.f32 %v3078, 0.5
    %v3082 = vadd.f32 %v3079, 0.5
    %v3083 = vadd.f32 %v3080, 0.5
    %v3084 = vtanh.pop %v3070
    %v3085 = vmul.f32 %v3082, %v2729
    %v3086 = vmul.f32 %v3081, %v3084
    %v3087 = vadd.f32 %v3085, %v3086
    %v3088 = vtanh.pop %v3087
    %v3089 = vmul.f32 %v3083, %v3088
    %3090 = vmatpush.msra.mxu0 %v379
    %3091 = vmatpush.msra.mxu0 %v375
    %3092 = vmatpush.msra.mxu0 %v371
    %3093 = vmatpush.msra.mxu0 %v367
    %3094 = vmatpush.msra.mxu0 %v363
    %3095 = vmatpush.msra.mxu0 %v359
    %3096 = vmatpush.msra.mxu0 %v355
    %3097 = vmatpush.msra.mxu0 %v351
    %3098 = vmatpush.msra.mxu0 %v347
    %3099 = vmatpush.msra.mxu0 %v343
    %3100 = vmatpush.msra.mxu0 %v339
    %3101 = vmatpush.msra.mxu0 %v335
    %3102 = vmatpush.msra.mxu0 %v331
    %3103 = vmatpush.msra.mxu0 %v327
    %3104 = vmatpush.msra.mxu0 %v323
    %3105 = vmatpush.msra.mxu0 %v319
    %3106 = vmatmul.f32.gmra.mxu0 %v3089
    %v3107 = vpop.f32.mrf.mxu0
    %v3108 = vadd.f32 %v451, %v3107
    %3109 = vdwg.mxu0
    %3110 = vmatpush.msra.mxu0 %v443
    %3111 = vmatpush.msra.mxu0 %v439
    %3112 = vmatpush.msra.mxu0 %v435
    %3113 = vmatpush.msra.mxu0 %v431
    %3114 = vmatpush.msra.mxu0 %v427
    %3115 = vmatpush.msra.mxu0 %v423
    %3116 = vmatpush.msra.mxu0 %v419
    %3117 = vmatpush.msra.mxu0 %v415
    %3118 = vmatpush.msra.mxu0 %v411
    %3119 = vmatpush.msra.mxu0 %v407
    %3120 = vmatpush.msra.mxu0 %v403
    %3121 = vmatpush.msra.mxu0 %v399
    %3122 = vmatpush.msra.mxu0 %v395
    %3123 = vmatpush.msra.mxu0 %v391
    %3124 = vmatpush.msra.mxu0 %v387
    %3125 = vmatpush.msra.mxu0 %v383
    %3126 = vmatmul.f32.gmra.mxu0 %v2909
    %v3127 = vpop.f32.mrf.mxu0
    %v3128 = vadd.f32 %v3108, %v3127
    %3129 = vdwg.mxu0
    %3130 = vmatpush.msra.mxu0 %v380
    %3131 = vmatpush.msra.mxu0 %v376
    %3132 = vmatpush.msra.mxu0 %v372
    %3133 = vmatpush.msra.mxu0 %v368
    %3134 = vmatpush.msra.mxu0 %v364
    %3135 = vmatpush.msra.mxu0 %v360
    %3136 = vmatpush.msra.mxu0 %v356
    %3137 = vmatpush.msra.mxu0 %v352
    %3138 = vmatpush.msra.mxu0 %v348
    %3139 = vmatpush.msra.mxu0 %v344
    %3140 = vmatpush.msra.mxu0 %v340
    %3141 = vmatpush.msra.mxu0 %v336
    %3142 = vmatpush.msra.mxu0 %v332
    %3143 = vmatpush.msra.mxu0 %v328
    %3144 = vmatpush.msra.mxu0 %v324
    %3145 = vmatpush.msra.mxu0 %v320
    %3146 = vmatmul.f32.gmra.mxu0 %v3089
    %v3147 = vpop.f32.mrf.mxu0
    %v3148 = vadd.f32 %v452, %v3147
    %3149 = vdwg.mxu0
    %3150 = vmatpush.msra.mxu0 %v444
    %3151 = vmatpush.msra.mxu0 %v440
    %3152 = vmatpush.msra.mxu0 %v436
    %3153 = vmatpush.msra.mxu0 %v432
    %3154 = vmatpush.msra.mxu0 %v428
    %3155 = vmatpush.msra.mxu0 %v424
    %3156 = vmatpush.msra.mxu0 %v420
    %3157 = vmatpush.msra.mxu0 %v416
    %3158 = vmatpush.msra.mxu0 %v412
    %3159 = vmatpush.msra.mxu0 %v408
    %3160 = vmatpush.msra.mxu0 %v404
    %3161 = vmatpush.msra.mxu0 %v400
    %3162 = vmatpush.msra.mxu0 %v396
    %3163 = vmatpush.msra.mxu0 %v392
    %3164 = vmatpush.msra.mxu0 %v388
    %3165 = vmatpush.msra.mxu0 %v384
    %3166 = vmatmul.f32.gmra.mxu0 %v2909
    %v3167 = vpop.f32.mrf.mxu0
    %v3168 = vadd.f32 %v3148, %v3167
    %3169 = vdwg.mxu0
    %3170 = vmatpush.msra.mxu0 %v381
    %3171 = vmatpush.msra.mxu0 %v377
    %3172 = vmatpush.msra.mxu0 %v373
    %3173 = vmatpush.msra.mxu0 %v369
    %3174 = vmatpush.msra.mxu0 %v365
    %3175 = vmatpush.msra.mxu0 %v361
    %3176 = vmatpush.msra.mxu0 %v357
    %3177 = vmatpush.msra.mxu0 %v353
    %3178 = vmatpush.msra.mxu0 %v349
    %3179 = vmatpush.msra.mxu0 %v345
    %3180 = vmatpush.msra.mxu0 %v341
    %3181 = vmatpush.msra.mxu0 %v337
    %3182 = vmatpush.msra.mxu0 %v333
    %3183 = vmatpush.msra.mxu0 %v329
    %3184 = vmatpush.msra.mxu0 %v325
    %3185 = vmatpush.msra.mxu0 %v321
    %3186 = vmatmul.f32.gmra.mxu0 %v3089
    %v3187 = vpop.f32.mrf.mxu0
    %v3188 = vadd.f32 %v453, %v3187
    %3189 = vdwg.mxu0
    %3190 = vmatpush.msra.mxu0 %v445
    %3191 = vmatpush.msra.mxu0 %v441
    %3192 = vmatpush.msra.mxu0 %v437
    %3193 = vmatpush.msra.mxu0 %v433
    %3194 = vmatpush.msra.mxu0 %v429
    %3195 = vmatpush.msra.mxu0 %v425
    %3196 = vmatpush.msra.mxu0 %v421
    %3197 = vmatpush.msra.mxu0 %v417
    %3198 = vmatpush.msra.mxu0 %v413
    %3199 = vmatpush.msra.mxu0 %v409
    %3200 = vmatpush.msra.mxu0 %v405
    %3201 = vmatpush.msra.mxu0 %v401
    %3202 = vmatpush.msra.mxu0 %v397
    %3203 = vmatpush.msra.mxu0 %v393
    %3204 = vmatpush.msra.mxu0 %v389
    %3205 = vmatpush.msra.mxu0 %v385
    %3206 = vmatmul.f32.gmra.mxu0 %v2909
    %v3207 = vpop.f32.mrf.mxu0
    %v3208 = vadd.f32 %v3188, %v3207
    %3209 = vdwg.mxu0
    %3210 = vmatpush.msra.mxu0 %v382
    %3211 = vmatpush.msra.mxu0 %v378
    %3212 = vmatpush.msra.mxu0 %v374
    %3213 = vmatpush.msra.mxu0 %v370
    %3214 = vmatpush.msra.mxu0 %v366
    %3215 = vmatpush.msra.mxu0 %v362
    %3216 = vmatpush.msra.mxu0 %v358
    %3217 = vmatpush.msra.mxu0 %v354
    %3218 = vmatpush.msra.mxu0 %v350
    %3219 = vmatpush.msra.mxu0 %v346
    %3220 = vmatpush.msra.mxu0 %v342
    %3221 = vmatpush.msra.mxu0 %v338
    %3222 = vmatpush.msra.mxu0 %v334
    %3223 = vmatpush.msra.mxu0 %v330
    %3224 = vmatpush.msra.mxu0 %v326
    %3225 = vmatpush.msra.mxu0 %v322
    %3226 = vmatmul.f32.gmra.mxu0 %v3089
    %v3227 = vpop.f32.mrf.mxu0
    %v3228 = vadd.f32 %v454, %v3227
    %3229 = vdwg.mxu0
    %3230 = vmatpush.msra.mxu0 %v446
    %3231 = vmatpush.msra.mxu0 %v442
    %3232 = vmatpush.msra.mxu0 %v438
    %3233 = vmatpush.msra.mxu0 %v434
    %3234 = vmatpush.msra.mxu0 %v430
    %3235 = vmatpush.msra.mxu0 %v426
    %3236 = vmatpush.msra.mxu0 %v422
    %3237 = vmatpush.msra.mxu0 %v418
    %3238 = vmatpush.msra.mxu0 %v414
    %3239 = vmatpush.msra.mxu0 %v410
    %3240 = vmatpush.msra.mxu0 %v406
    %3241 = vmatpush.msra.mxu0 %v402
    %3242 = vmatpush.msra.mxu0 %v398
    %3243 = vmatpush.msra.mxu0 %v394
    %3244 = vmatpush.msra.mxu0 %v390
    %3245 = vmatpush.msra.mxu0 %v386
    %3246 = vmatmul.f32.gmra.mxu0 %v2909
    %v3247 = vpop.f32.mrf.mxu0
    %v3248 = vadd.f32 %v3228, %v3247
    %3249 = vdwg.mxu0
    %v3250 = vmul.f32 %v3128, 0.5
    %v3251 = vmul.f32 %v3168, 0.5
    %v3252 = vmul.f32 %v3208, 0.5
    %v3253 = vtanh.pop %v3250
    %v3254 = vtanh.pop %v3251
    %v3255 = vtanh.pop %v3252
    %v3256 = vmul.f32 %v3253, 0.5
    %v3257 = vmul.f32 %v3254, 0.5
    %v3258 = vmul.f32 %v3255, 0.5
    %v3259 = vadd.f32 %v3256, 0.5
    %v3260 = vadd.f32 %v3257, 0.5
    %v3261 = vadd.f32 %v3258, 0.5
    %v3262 = vtanh.pop %v3248
    %v3263 = vmul.f32 %v3260, %v2907
    %v3264 = vmul.f32 %v3259, %v3262
    %v3265 = vadd.f32 %v3263, %v3264
    %v3266 = vtanh.pop %v3265
    %v3267 = vmul.f32 %v3261, %v3266
    %s3268 = scalar_lea.vmem [#allocation3], 64
    %3269 = vst [vmem:[%s3268] sm:$0xff] %v3267
    %3270 = vmatpush.msra.mxu0 %v251
    %3271 = vmatpush.msra.mxu0 %v247
    %3272 = vmatpush.msra.mxu0 %v243
    %3273 = vmatpush.msra.mxu0 %v239
    %3274 = vmatpush.msra.mxu0 %v235
    %3275 = vmatpush.msra.mxu0 %v231
    %3276 = vmatpush.msra.mxu0 %v227
    %3277 = vmatpush.msra.mxu0 %v223
    %3278 = vmatpush.msra.mxu0 %v219
    %3279 = vmatpush.msra.mxu0 %v215
    %3280 = vmatpush.msra.mxu0 %v211
    %3281 = vmatpush.msra.mxu0 %v207
    %3282 = vmatpush.msra.mxu0 %v203
    %3283 = vmatpush.msra.mxu0 %v199
    %3284 = vmatpush.msra.mxu0 %v195
    %3285 = vmatpush.msra.mxu0 %v191
    %3286 = vmatmul.f32.gmra.mxu0 %v3089
    %v3287 = vpop.f32.mrf.mxu0
    %v3288 = vadd.f32 %v461, %v3287
    %3289 = vdwg.mxu0
    %3290 = vmatpush.msra.mxu0 %v315
    %3291 = vmatpush.msra.mxu0 %v311
    %3292 = vmatpush.msra.mxu0 %v307
    %3293 = vmatpush.msra.mxu0 %v303
    %3294 = vmatpush.msra.mxu0 %v299
    %3295 = vmatpush.msra.mxu0 %v295
    %3296 = vmatpush.msra.mxu0 %v291
    %3297 = vmatpush.msra.mxu0 %v287
    %3298 = vmatpush.msra.mxu0 %v283
    %3299 = vmatpush.msra.mxu0 %v279
    %3300 = vmatpush.msra.mxu0 %v275
    %3301 = vmatpush.msra.mxu0 %v271
    %3302 = vmatpush.msra.mxu0 %v267
    %3303 = vmatpush.msra.mxu0 %v263
    %3304 = vmatpush.msra.mxu0 %v259
    %3305 = vmatpush.msra.mxu0 %v255
    %3306 = vmatmul.f32.gmra.mxu0 %v3267
    %v3307 = vpop.f32.mrf.mxu0
    %v3308 = vadd.f32 %v3288, %v3307
    %3309 = vdwg.mxu0
    %3310 = vmatpush.msra.mxu0 %v252
    %3311 = vmatpush.msra.mxu0 %v248
    %3312 = vmatpush.msra.mxu0 %v244
    %3313 = vmatpush.msra.mxu0 %v240
    %3314 = vmatpush.msra.mxu0 %v236
    %3315 = vmatpush.msra.mxu0 %v232
    %3316 = vmatpush.msra.mxu0 %v228
    %3317 = vmatpush.msra.mxu0 %v224
    %3318 = vmatpush.msra.mxu0 %v220
    %3319 = vmatpush.msra.mxu0 %v216
    %3320 = vmatpush.msra.mxu0 %v212
    %3321 = vmatpush.msra.mxu0 %v208
    %3322 = vmatpush.msra.mxu0 %v204
    %3323 = vmatpush.msra.mxu0 %v200
    %3324 = vmatpush.msra.mxu0 %v196
    %3325 = vmatpush.msra.mxu0 %v192
    %3326 = vmatmul.f32.gmra.mxu0 %v3089
    %v3327 = vpop.f32.mrf.mxu0
    %v3328 = vadd.f32 %v462, %v3327
    %3329 = vdwg.mxu0
    %3330 = vmatpush.msra.mxu0 %v316
    %3331 = vmatpush.msra.mxu0 %v312
    %3332 = vmatpush.msra.mxu0 %v308
    %3333 = vmatpush.msra.mxu0 %v304
    %3334 = vmatpush.msra.mxu0 %v300
    %3335 = vmatpush.msra.mxu0 %v296
    %3336 = vmatpush.msra.mxu0 %v292
    %3337 = vmatpush.msra.mxu0 %v288
    %3338 = vmatpush.msra.mxu0 %v284
    %3339 = vmatpush.msra.mxu0 %v280
    %3340 = vmatpush.msra.mxu0 %v276
    %3341 = vmatpush.msra.mxu0 %v272
    %3342 = vmatpush.msra.mxu0 %v268
    %3343 = vmatpush.msra.mxu0 %v264
    %3344 = vmatpush.msra.mxu0 %v260
    %3345 = vmatpush.msra.mxu0 %v256
    %3346 = vmatmul.f32.gmra.mxu0 %v3267
    %v3347 = vpop.f32.mrf.mxu0
    %v3348 = vadd.f32 %v3328, %v3347
    %3349 = vdwg.mxu0
    %3350 = vmatpush.msra.mxu0 %v253
    %3351 = vmatpush.msra.mxu0 %v249
    %3352 = vmatpush.msra.mxu0 %v245
    %3353 = vmatpush.msra.mxu0 %v241
    %3354 = vmatpush.msra.mxu0 %v237
    %3355 = vmatpush.msra.mxu0 %v233
    %3356 = vmatpush.msra.mxu0 %v229
    %3357 = vmatpush.msra.mxu0 %v225
    %3358 = vmatpush.msra.mxu0 %v221
    %3359 = vmatpush.msra.mxu0 %v217
    %3360 = vmatpush.msra.mxu0 %v213
    %3361 = vmatpush.msra.mxu0 %v209
    %3362 = vmatpush.msra.mxu0 %v205
    %3363 = vmatpush.msra.mxu0 %v201
    %3364 = vmatpush.msra.mxu0 %v197
    %3365 = vmatpush.msra.mxu0 %v193
    %3366 = vmatmul.f32.gmra.mxu0 %v3089
    %v3367 = vpop.f32.mrf.mxu0
    %v3368 = vadd.f32 %v463, %v3367
    %3369 = vdwg.mxu0
    %3370 = vmatpush.msra.mxu0 %v317
    %3371 = vmatpush.msra.mxu0 %v313
    %3372 = vmatpush.msra.mxu0 %v309
    %3373 = vmatpush.msra.mxu0 %v305
    %3374 = vmatpush.msra.mxu0 %v301
    %3375 = vmatpush.msra.mxu0 %v297
    %3376 = vmatpush.msra.mxu0 %v293
    %3377 = vmatpush.msra.mxu0 %v289
    %3378 = vmatpush.msra.mxu0 %v285
    %3379 = vmatpush.msra.mxu0 %v281
    %3380 = vmatpush.msra.mxu0 %v277
    %3381 = vmatpush.msra.mxu0 %v273
    %3382 = vmatpush.msra.mxu0 %v269
    %3383 = vmatpush.msra.mxu0 %v265
    %3384 = vmatpush.msra.mxu0 %v261
    %3385 = vmatpush.msra.mxu0 %v257
    %3386 = vmatmul.f32.gmra.mxu0 %v3267
    %v3387 = vpop.f32.mrf.mxu0
    %v3388 = vadd.f32 %v3368, %v3387
    %3389 = vdwg.mxu0
    %3390 = vmatpush.msra.mxu0 %v254
    %3391 = vmatpush.msra.mxu0 %v250
    %3392 = vmatpush.msra.mxu0 %v246
    %3393 = vmatpush.msra.mxu0 %v242
    %3394 = vmatpush.msra.mxu0 %v238
    %3395 = vmatpush.msra.mxu0 %v234
    %3396 = vmatpush.msra.mxu0 %v230
    %3397 = vmatpush.msra.mxu0 %v226
    %3398 = vmatpush.msra.mxu0 %v222
    %3399 = vmatpush.msra.mxu0 %v218
    %3400 = vmatpush.msra.mxu0 %v214
    %3401 = vmatpush.msra.mxu0 %v210
    %3402 = vmatpush.msra.mxu0 %v206
    %3403 = vmatpush.msra.mxu0 %v202
    %3404 = vmatpush.msra.mxu0 %v198
    %3405 = vmatpush.msra.mxu0 %v194
    %3406 = vmatmul.f32.gmra.mxu0 %v3089
    %v3407 = vpop.f32.mrf.mxu0
    %v3408 = vadd.f32 %v464, %v3407
    %3409 = vdwg.mxu0
    %3410 = vmatpush.msra.mxu0 %v318
    %3411 = vmatpush.msra.mxu0 %v314
    %3412 = vmatpush.msra.mxu0 %v310
    %3413 = vmatpush.msra.mxu0 %v306
    %3414 = vmatpush.msra.mxu0 %v302
    %3415 = vmatpush.msra.mxu0 %v298
    %3416 = vmatpush.msra.mxu0 %v294
    %3417 = vmatpush.msra.mxu0 %v290
    %3418 = vmatpush.msra.mxu0 %v286
    %3419 = vmatpush.msra.mxu0 %v282
    %3420 = vmatpush.msra.mxu0 %v278
    %3421 = vmatpush.msra.mxu0 %v274
    %3422 = vmatpush.msra.mxu0 %v270
    %3423 = vmatpush.msra.mxu0 %v266
    %3424 = vmatpush.msra.mxu0 %v262
    %3425 = vmatpush.msra.mxu0 %v258
    %3426 = vmatmul.f32.gmra.mxu0 %v3267
    %v3427 = vpop.f32.mrf.mxu0
    %v3428 = vadd.f32 %v3408, %v3427
    %3429 = vdwg.mxu0
    %v3430 = vmul.f32 %v3308, 0.5
    %v3431 = vmul.f32 %v3348, 0.5
    %v3432 = vmul.f32 %v3388, 0.5
    %v3433 = vtanh.pop %v3430
    %v3434 = vtanh.pop %v3431
    %v3435 = vtanh.pop %v3432
    %v3436 = vmul.f32 %v3433, 0.5
    %v3437 = vmul.f32 %v3434, 0.5
    %v3438 = vmul.f32 %v3435, 0.5
    %v3439 = vadd.f32 %v3436, 0.5
    %v3440 = vadd.f32 %v3437, 0.5
    %v3441 = vadd.f32 %v3438, 0.5
    %v3442 = vtanh.pop %v3428
    %v3443 = vmul.f32 %v3440, %v3087
    %v3444 = vmul.f32 %v3439, %v3442
    %v3445 = vadd.f32 %v3443, %v3444
    %v3446 = vtanh.pop %v3445
    %v3447 = vmul.f32 %v3441, %v3446
    %3448 = vmatpush.msra.mxu0 %v379
    %3449 = vmatpush.msra.mxu0 %v375
    %3450 = vmatpush.msra.mxu0 %v371
    %3451 = vmatpush.msra.mxu0 %v367
    %3452 = vmatpush.msra.mxu0 %v363
    %3453 = vmatpush.msra.mxu0 %v359
    %3454 = vmatpush.msra.mxu0 %v355
    %3455 = vmatpush.msra.mxu0 %v351
    %3456 = vmatpush.msra.mxu0 %v347
    %3457 = vmatpush.msra.mxu0 %v343
    %3458 = vmatpush.msra.mxu0 %v339
    %3459 = vmatpush.msra.mxu0 %v335
    %3460 = vmatpush.msra.mxu0 %v331
    %3461 = vmatpush.msra.mxu0 %v327
    %3462 = vmatpush.msra.mxu0 %v323
    %3463 = vmatpush.msra.mxu0 %v319
    %3464 = vmatmul.f32.gmra.mxu0 %v3447
    %v3465 = vpop.f32.mrf.mxu0
    %v3466 = vadd.f32 %v451, %v3465
    %3467 = vdwg.mxu0
    %3468 = vmatpush.msra.mxu0 %v443
    %3469 = vmatpush.msra.mxu0 %v439
    %3470 = vmatpush.msra.mxu0 %v435
    %3471 = vmatpush.msra.mxu0 %v431
    %3472 = vmatpush.msra.mxu0 %v427
    %3473 = vmatpush.msra.mxu0 %v423
    %3474 = vmatpush.msra.mxu0 %v419
    %3475 = vmatpush.msra.mxu0 %v415
    %3476 = vmatpush.msra.mxu0 %v411
    %3477 = vmatpush.msra.mxu0 %v407
    %3478 = vmatpush.msra.mxu0 %v403
    %3479 = vmatpush.msra.mxu0 %v399
    %3480 = vmatpush.msra.mxu0 %v395
    %3481 = vmatpush.msra.mxu0 %v391
    %3482 = vmatpush.msra.mxu0 %v387
    %3483 = vmatpush.msra.mxu0 %v383
    %3484 = vmatmul.f32.gmra.mxu0 %v3267
    %v3485 = vpop.f32.mrf.mxu0
    %v3486 = vadd.f32 %v3466, %v3485
    %3487 = vdwg.mxu0
    %3488 = vmatpush.msra.mxu0 %v380
    %3489 = vmatpush.msra.mxu0 %v376
    %3490 = vmatpush.msra.mxu0 %v372
    %3491 = vmatpush.msra.mxu0 %v368
    %3492 = vmatpush.msra.mxu0 %v364
    %3493 = vmatpush.msra.mxu0 %v360
    %3494 = vmatpush.msra.mxu0 %v356
    %3495 = vmatpush.msra.mxu0 %v352
    %3496 = vmatpush.msra.mxu0 %v348
    %3497 = vmatpush.msra.mxu0 %v344
    %3498 = vmatpush.msra.mxu0 %v340
    %3499 = vmatpush.msra.mxu0 %v336
    %3500 = vmatpush.msra.mxu0 %v332
    %3501 = vmatpush.msra.mxu0 %v328
    %3502 = vmatpush.msra.mxu0 %v324
    %3503 = vmatpush.msra.mxu0 %v320
    %3504 = vmatmul.f32.gmra.mxu0 %v3447
    %v3505 = vpop.f32.mrf.mxu0
    %v3506 = vadd.f32 %v452, %v3505
    %3507 = vdwg.mxu0
    %3508 = vmatpush.msra.mxu0 %v444
    %3509 = vmatpush.msra.mxu0 %v440
    %3510 = vmatpush.msra.mxu0 %v436
    %3511 = vmatpush.msra.mxu0 %v432
    %3512 = vmatpush.msra.mxu0 %v428
    %3513 = vmatpush.msra.mxu0 %v424
    %3514 = vmatpush.msra.mxu0 %v420
    %3515 = vmatpush.msra.mxu0 %v416
    %3516 = vmatpush.msra.mxu0 %v412
    %3517 = vmatpush.msra.mxu0 %v408
    %3518 = vmatpush.msra.mxu0 %v404
    %3519 = vmatpush.msra.mxu0 %v400
    %3520 = vmatpush.msra.mxu0 %v396
    %3521 = vmatpush.msra.mxu0 %v392
    %3522 = vmatpush.msra.mxu0 %v388
    %3523 = vmatpush.msra.mxu0 %v384
    %3524 = vmatmul.f32.gmra.mxu0 %v3267
    %v3525 = vpop.f32.mrf.mxu0
    %v3526 = vadd.f32 %v3506, %v3525
    %3527 = vdwg.mxu0
    %3528 = vmatpush.msra.mxu0 %v381
    %3529 = vmatpush.msra.mxu0 %v377
    %3530 = vmatpush.msra.mxu0 %v373
    %3531 = vmatpush.msra.mxu0 %v369
    %3532 = vmatpush.msra.mxu0 %v365
    %3533 = vmatpush.msra.mxu0 %v361
    %3534 = vmatpush.msra.mxu0 %v357
    %3535 = vmatpush.msra.mxu0 %v353
    %3536 = vmatpush.msra.mxu0 %v349
    %3537 = vmatpush.msra.mxu0 %v345
    %3538 = vmatpush.msra.mxu0 %v341
    %3539 = vmatpush.msra.mxu0 %v337
    %3540 = vmatpush.msra.mxu0 %v333
    %3541 = vmatpush.msra.mxu0 %v329
    %3542 = vmatpush.msra.mxu0 %v325
    %3543 = vmatpush.msra.mxu0 %v321
    %3544 = vmatmul.f32.gmra.mxu0 %v3447
    %v3545 = vpop.f32.mrf.mxu0
    %v3546 = vadd.f32 %v453, %v3545
    %3547 = vdwg.mxu0
    %3548 = vmatpush.msra.mxu0 %v445
    %3549 = vmatpush.msra.mxu0 %v441
    %3550 = vmatpush.msra.mxu0 %v437
    %3551 = vmatpush.msra.mxu0 %v433
    %3552 = vmatpush.msra.mxu0 %v429
    %3553 = vmatpush.msra.mxu0 %v425
    %3554 = vmatpush.msra.mxu0 %v421
    %3555 = vmatpush.msra.mxu0 %v417
    %3556 = vmatpush.msra.mxu0 %v413
    %3557 = vmatpush.msra.mxu0 %v409
    %3558 = vmatpush.msra.mxu0 %v405
    %3559 = vmatpush.msra.mxu0 %v401
    %3560 = vmatpush.msra.mxu0 %v397
    %3561 = vmatpush.msra.mxu0 %v393
    %3562 = vmatpush.msra.mxu0 %v389
    %3563 = vmatpush.msra.mxu0 %v385
    %3564 = vmatmul.f32.gmra.mxu0 %v3267
    %v3565 = vpop.f32.mrf.mxu0
    %v3566 = vadd.f32 %v3546, %v3565
    %3567 = vdwg.mxu0
    %3568 = vmatpush.msra.mxu0 %v382
    %3569 = vmatpush.msra.mxu0 %v378
    %3570 = vmatpush.msra.mxu0 %v374
    %3571 = vmatpush.msra.mxu0 %v370
    %3572 = vmatpush.msra.mxu0 %v366
    %3573 = vmatpush.msra.mxu0 %v362
    %3574 = vmatpush.msra.mxu0 %v358
    %3575 = vmatpush.msra.mxu0 %v354
    %3576 = vmatpush.msra.mxu0 %v350
    %3577 = vmatpush.msra.mxu0 %v346
    %3578 = vmatpush.msra.mxu0 %v342
    %3579 = vmatpush.msra.mxu0 %v338
    %3580 = vmatpush.msra.mxu0 %v334
    %3581 = vmatpush.msra.mxu0 %v330
    %3582 = vmatpush.msra.mxu0 %v326
    %3583 = vmatpush.msra.mxu0 %v322
    %3584 = vmatmul.f32.gmra.mxu0 %v3447
    %v3585 = vpop.f32.mrf.mxu0
    %v3586 = vadd.f32 %v454, %v3585
    %3587 = vdwg.mxu0
    %3588 = vmatpush.msra.mxu0 %v446
    %3589 = vmatpush.msra.mxu0 %v442
    %3590 = vmatpush.msra.mxu0 %v438
    %3591 = vmatpush.msra.mxu0 %v434
    %3592 = vmatpush.msra.mxu0 %v430
    %3593 = vmatpush.msra.mxu0 %v426
    %3594 = vmatpush.msra.mxu0 %v422
    %3595 = vmatpush.msra.mxu0 %v418
    %3596 = vmatpush.msra.mxu0 %v414
    %3597 = vmatpush.msra.mxu0 %v410
    %3598 = vmatpush.msra.mxu0 %v406
    %3599 = vmatpush.msra.mxu0 %v402
    %3600 = vmatpush.msra.mxu0 %v398
    %3601 = vmatpush.msra.mxu0 %v394
    %3602 = vmatpush.msra.mxu0 %v390
    %3603 = vmatpush.msra.mxu0 %v386
    %3604 = vmatmul.f32.gmra.mxu0 %v3267
    %v3605 = vpop.f32.mrf.mxu0
    %v3606 = vadd.f32 %v3586, %v3605
    %3607 = vdwg.mxu0
    %v3608 = vmul.f32 %v3486, 0.5
    %v3609 = vmul.f32 %v3526, 0.5
    %v3610 = vmul.f32 %v3566, 0.5
    %v3611 = vtanh.pop %v3608
    %v3612 = vtanh.pop %v3609
    %v3613 = vtanh.pop %v3610
    %v3614 = vmul.f32 %v3611, 0.5
    %v3615 = vmul.f32 %v3612, 0.5
    %v3616 = vmul.f32 %v3613, 0.5
    %v3617 = vadd.f32 %v3614, 0.5
    %v3618 = vadd.f32 %v3615, 0.5
    %v3619 = vadd.f32 %v3616, 0.5
    %v3620 = vtanh.pop %v3606
    %v3621 = vmul.f32 %v3618, %v3265
    %v3622 = vmul.f32 %v3617, %v3620
    %v3623 = vadd.f32 %v3621, %v3622
    %v3624 = vtanh.pop %v3623
    %v3625 = vmul.f32 %v3619, %v3624
    %s3626 = scalar_lea.vmem [#allocation3], 72
    %3627 = vst [vmem:[%s3626] sm:$0xff] %v3625
    %3628 = vmatpush.msra.mxu0 %v251
    %3629 = vmatpush.msra.mxu0 %v247
    %3630 = vmatpush.msra.mxu0 %v243
    %3631 = vmatpush.msra.mxu0 %v239
    %3632 = vmatpush.msra.mxu0 %v235
    %3633 = vmatpush.msra.mxu0 %v231
    %3634 = vmatpush.msra.mxu0 %v227
    %3635 = vmatpush.msra.mxu0 %v223
    %3636 = vmatpush.msra.mxu0 %v219
    %3637 = vmatpush.msra.mxu0 %v215
    %3638 = vmatpush.msra.mxu0 %v211
    %3639 = vmatpush.msra.mxu0 %v207
    %3640 = vmatpush.msra.mxu0 %v203
    %3641 = vmatpush.msra.mxu0 %v199
    %3642 = vmatpush.msra.mxu0 %v195
    %3643 = vmatpush.msra.mxu0 %v191
    %3644 = vmatmul.f32.gmra.mxu0 %v3447
    %v3645 = vpop.f32.mrf.mxu0
    %v3646 = vadd.f32 %v461, %v3645
    %3647 = vdwg.mxu0
    %3648 = vmatpush.msra.mxu0 %v315
    %3649 = vmatpush.msra.mxu0 %v311
    %3650 = vmatpush.msra.mxu0 %v307
    %3651 = vmatpush.msra.mxu0 %v303
    %3652 = vmatpush.msra.mxu0 %v299
    %3653 = vmatpush.msra.mxu0 %v295
    %3654 = vmatpush.msra.mxu0 %v291
    %3655 = vmatpush.msra.mxu0 %v287
    %3656 = vmatpush.msra.mxu0 %v283
    %3657 = vmatpush.msra.mxu0 %v279
    %3658 = vmatpush.msra.mxu0 %v275
    %3659 = vmatpush.msra.mxu0 %v271
    %3660 = vmatpush.msra.mxu0 %v267
    %3661 = vmatpush.msra.mxu0 %v263
    %3662 = vmatpush.msra.mxu0 %v259
    %3663 = vmatpush.msra.mxu0 %v255
    %3664 = vmatmul.f32.gmra.mxu0 %v3625
    %v3665 = vpop.f32.mrf.mxu0
    %v3666 = vadd.f32 %v3646, %v3665
    %3667 = vdwg.mxu0
    %3668 = vmatpush.msra.mxu0 %v252
    %3669 = vmatpush.msra.mxu0 %v248
    %3670 = vmatpush.msra.mxu0 %v244
    %3671 = vmatpush.msra.mxu0 %v240
    %3672 = vmatpush.msra.mxu0 %v236
    %3673 = vmatpush.msra.mxu0 %v232
    %3674 = vmatpush.msra.mxu0 %v228
    %3675 = vmatpush.msra.mxu0 %v224
    %3676 = vmatpush.msra.mxu0 %v220
    %3677 = vmatpush.msra.mxu0 %v216
    %3678 = vmatpush.msra.mxu0 %v212
    %3679 = vmatpush.msra.mxu0 %v208
    %3680 = vmatpush.msra.mxu0 %v204
    %3681 = vmatpush.msra.mxu0 %v200
    %3682 = vmatpush.msra.mxu0 %v196
    %3683 = vmatpush.msra.mxu0 %v192
    %3684 = vmatmul.f32.gmra.mxu0 %v3447
    %v3685 = vpop.f32.mrf.mxu0
    %v3686 = vadd.f32 %v462, %v3685
    %3687 = vdwg.mxu0
    %3688 = vmatpush.msra.mxu0 %v316
    %3689 = vmatpush.msra.mxu0 %v312
    %3690 = vmatpush.msra.mxu0 %v308
    %3691 = vmatpush.msra.mxu0 %v304
    %3692 = vmatpush.msra.mxu0 %v300
    %3693 = vmatpush.msra.mxu0 %v296
    %3694 = vmatpush.msra.mxu0 %v292
    %3695 = vmatpush.msra.mxu0 %v288
    %3696 = vmatpush.msra.mxu0 %v284
    %3697 = vmatpush.msra.mxu0 %v280
    %3698 = vmatpush.msra.mxu0 %v276
    %3699 = vmatpush.msra.mxu0 %v272
    %3700 = vmatpush.msra.mxu0 %v268
    %3701 = vmatpush.msra.mxu0 %v264
    %3702 = vmatpush.msra.mxu0 %v260
    %3703 = vmatpush.msra.mxu0 %v256
    %3704 = vmatmul.f32.gmra.mxu0 %v3625
    %v3705 = vpop.f32.mrf.mxu0
    %v3706 = vadd.f32 %v3686, %v3705
    %3707 = vdwg.mxu0
    %3708 = vmatpush.msra.mxu0 %v253
    %3709 = vmatpush.msra.mxu0 %v249
    %3710 = vmatpush.msra.mxu0 %v245
    %3711 = vmatpush.msra.mxu0 %v241
    %3712 = vmatpush.msra.mxu0 %v237
    %3713 = vmatpush.msra.mxu0 %v233
    %3714 = vmatpush.msra.mxu0 %v229
    %3715 = vmatpush.msra.mxu0 %v225
    %3716 = vmatpush.msra.mxu0 %v221
    %3717 = vmatpush.msra.mxu0 %v217
    %3718 = vmatpush.msra.mxu0 %v213
    %3719 = vmatpush.msra.mxu0 %v209
    %3720 = vmatpush.msra.mxu0 %v205
    %3721 = vmatpush.msra.mxu0 %v201
    %3722 = vmatpush.msra.mxu0 %v197
    %3723 = vmatpush.msra.mxu0 %v193
    %3724 = vmatmul.f32.gmra.mxu0 %v3447
    %v3725 = vpop.f32.mrf.mxu0
    %v3726 = vadd.f32 %v463, %v3725
    %3727 = vdwg.mxu0
    %3728 = vmatpush.msra.mxu0 %v317
    %3729 = vmatpush.msra.mxu0 %v313
    %3730 = vmatpush.msra.mxu0 %v309
    %3731 = vmatpush.msra.mxu0 %v305
    %3732 = vmatpush.msra.mxu0 %v301
    %3733 = vmatpush.msra.mxu0 %v297
    %3734 = vmatpush.msra.mxu0 %v293
    %3735 = vmatpush.msra.mxu0 %v289
    %3736 = vmatpush.msra.mxu0 %v285
    %3737 = vmatpush.msra.mxu0 %v281
    %3738 = vmatpush.msra.mxu0 %v277
    %3739 = vmatpush.msra.mxu0 %v273
    %3740 = vmatpush.msra.mxu0 %v269
    %3741 = vmatpush.msra.mxu0 %v265
    %3742 = vmatpush.msra.mxu0 %v261
    %3743 = vmatpush.msra.mxu0 %v257
    %3744 = vmatmul.f32.gmra.mxu0 %v3625
    %v3745 = vpop.f32.mrf.mxu0
    %v3746 = vadd.f32 %v3726, %v3745
    %3747 = vdwg.mxu0
    %3748 = vmatpush.msra.mxu0 %v254
    %3749 = vmatpush.msra.mxu0 %v250
    %3750 = vmatpush.msra.mxu0 %v246
    %3751 = vmatpush.msra.mxu0 %v242
    %3752 = vmatpush.msra.mxu0 %v238
    %3753 = vmatpush.msra.mxu0 %v234
    %3754 = vmatpush.msra.mxu0 %v230
    %3755 = vmatpush.msra.mxu0 %v226
    %3756 = vmatpush.msra.mxu0 %v222
    %3757 = vmatpush.msra.mxu0 %v218
    %3758 = vmatpush.msra.mxu0 %v214
    %3759 = vmatpush.msra.mxu0 %v210
    %3760 = vmatpush.msra.mxu0 %v206
    %3761 = vmatpush.msra.mxu0 %v202
    %3762 = vmatpush.msra.mxu0 %v198
    %3763 = vmatpush.msra.mxu0 %v194
    %3764 = vmatmul.f32.gmra.mxu0 %v3447
    %v3765 = vpop.f32.mrf.mxu0
    %v3766 = vadd.f32 %v464, %v3765
    %3767 = vdwg.mxu0
    %3768 = vmatpush.msra.mxu0 %v318
    %3769 = vmatpush.msra.mxu0 %v314
    %3770 = vmatpush.msra.mxu0 %v310
    %3771 = vmatpush.msra.mxu0 %v306
    %3772 = vmatpush.msra.mxu0 %v302
    %3773 = vmatpush.msra.mxu0 %v298
    %3774 = vmatpush.msra.mxu0 %v294
    %3775 = vmatpush.msra.mxu0 %v290
    %3776 = vmatpush.msra.mxu0 %v286
    %3777 = vmatpush.msra.mxu0 %v282
    %3778 = vmatpush.msra.mxu0 %v278
    %3779 = vmatpush.msra.mxu0 %v274
    %3780 = vmatpush.msra.mxu0 %v270
    %3781 = vmatpush.msra.mxu0 %v266
    %3782 = vmatpush.msra.mxu0 %v262
    %3783 = vmatpush.msra.mxu0 %v258
    %3784 = vmatmul.f32.gmra.mxu0 %v3625
    %v3785 = vpop.f32.mrf.mxu0
    %v3786 = vadd.f32 %v3766, %v3785
    %3787 = vdwg.mxu0
    %v3788 = vmul.f32 %v3666, 0.5
    %v3789 = vmul.f32 %v3706, 0.5
    %v3790 = vmul.f32 %v3746, 0.5
    %v3791 = vtanh.pop %v3788
    %v3792 = vtanh.pop %v3789
    %v3793 = vtanh.pop %v3790
    %v3794 = vmul.f32 %v3791, 0.5
    %v3795 = vmul.f32 %v3792, 0.5
    %v3796 = vmul.f32 %v3793, 0.5
    %v3797 = vadd.f32 %v3794, 0.5
    %v3798 = vadd.f32 %v3795, 0.5
    %v3799 = vadd.f32 %v3796, 0.5
    %v3800 = vtanh.pop %v3786
    %v3801 = vmul.f32 %v3798, %v3445
    %v3802 = vmul.f32 %v3797, %v3800
    %v3803 = vadd.f32 %v3801, %v3802
    %v3804 = vtanh.pop %v3803
    %v3805 = vmul.f32 %v3799, %v3804
    %3806 = vmatpush.msra.mxu0 %v379
    %3807 = vmatpush.msra.mxu0 %v375
    %3808 = vmatpush.msra.mxu0 %v371
    %3809 = vmatpush.msra.mxu0 %v367
    %3810 = vmatpush.msra.mxu0 %v363
    %3811 = vmatpush.msra.mxu0 %v359
    %3812 = vmatpush.msra.mxu0 %v355
    %3813 = vmatpush.msra.mxu0 %v351
    %3814 = vmatpush.msra.mxu0 %v347
    %3815 = vmatpush.msra.mxu0 %v343
    %3816 = vmatpush.msra.mxu0 %v339
    %3817 = vmatpush.msra.mxu0 %v335
    %3818 = vmatpush.msra.mxu0 %v331
    %3819 = vmatpush.msra.mxu0 %v327
    %3820 = vmatpush.msra.mxu0 %v323
    %3821 = vmatpush.msra.mxu0 %v319
    %3822 = vmatmul.f32.gmra.mxu0 %v3805
    %v3823 = vpop.f32.mrf.mxu0
    %v3824 = vadd.f32 %v451, %v3823
    %3825 = vdwg.mxu0
    %3826 = vmatpush.msra.mxu0 %v443
    %3827 = vmatpush.msra.mxu0 %v439
    %3828 = vmatpush.msra.mxu0 %v435
    %3829 = vmatpush.msra.mxu0 %v431
    %3830 = vmatpush.msra.mxu0 %v427
    %3831 = vmatpush.msra.mxu0 %v423
    %3832 = vmatpush.msra.mxu0 %v419
    %3833 = vmatpush.msra.mxu0 %v415
    %3834 = vmatpush.msra.mxu0 %v411
    %3835 = vmatpush.msra.mxu0 %v407
    %3836 = vmatpush.msra.mxu0 %v403
    %3837 = vmatpush.msra.mxu0 %v399
    %3838 = vmatpush.msra.mxu0 %v395
    %3839 = vmatpush.msra.mxu0 %v391
    %3840 = vmatpush.msra.mxu0 %v387
    %3841 = vmatpush.msra.mxu0 %v383
    %3842 = vmatmul.f32.gmra.mxu0 %v3625
    %v3843 = vpop.f32.mrf.mxu0
    %v3844 = vadd.f32 %v3824, %v3843
    %3845 = vdwg.mxu0
    %3846 = vmatpush.msra.mxu0 %v380
    %3847 = vmatpush.msra.mxu0 %v376
    %3848 = vmatpush.msra.mxu0 %v372
    %3849 = vmatpush.msra.mxu0 %v368
    %3850 = vmatpush.msra.mxu0 %v364
    %3851 = vmatpush.msra.mxu0 %v360
    %3852 = vmatpush.msra.mxu0 %v356
    %3853 = vmatpush.msra.mxu0 %v352
    %3854 = vmatpush.msra.mxu0 %v348
    %3855 = vmatpush.msra.mxu0 %v344
    %3856 = vmatpush.msra.mxu0 %v340
    %3857 = vmatpush.msra.mxu0 %v336
    %3858 = vmatpush.msra.mxu0 %v332
    %3859 = vmatpush.msra.mxu0 %v328
    %3860 = vmatpush.msra.mxu0 %v324
    %3861 = vmatpush.msra.mxu0 %v320
    %3862 = vmatmul.f32.gmra.mxu0 %v3805
    %v3863 = vpop.f32.mrf.mxu0
    %v3864 = vadd.f32 %v452, %v3863
    %3865 = vdwg.mxu0
    %3866 = vmatpush.msra.mxu0 %v444
    %3867 = vmatpush.msra.mxu0 %v440
    %3868 = vmatpush.msra.mxu0 %v436
    %3869 = vmatpush.msra.mxu0 %v432
    %3870 = vmatpush.msra.mxu0 %v428
    %3871 = vmatpush.msra.mxu0 %v424
    %3872 = vmatpush.msra.mxu0 %v420
    %3873 = vmatpush.msra.mxu0 %v416
    %3874 = vmatpush.msra.mxu0 %v412
    %3875 = vmatpush.msra.mxu0 %v408
    %3876 = vmatpush.msra.mxu0 %v404
    %3877 = vmatpush.msra.mxu0 %v400
    %3878 = vmatpush.msra.mxu0 %v396
    %3879 = vmatpush.msra.mxu0 %v392
    %3880 = vmatpush.msra.mxu0 %v388
    %3881 = vmatpush.msra.mxu0 %v384
    %3882 = vmatmul.f32.gmra.mxu0 %v3625
    %v3883 = vpop.f32.mrf.mxu0
    %v3884 = vadd.f32 %v3864, %v3883
    %3885 = vdwg.mxu0
    %3886 = vmatpush.msra.mxu0 %v381
    %3887 = vmatpush.msra.mxu0 %v377
    %3888 = vmatpush.msra.mxu0 %v373
    %3889 = vmatpush.msra.mxu0 %v369
    %3890 = vmatpush.msra.mxu0 %v365
    %3891 = vmatpush.msra.mxu0 %v361
    %3892 = vmatpush.msra.mxu0 %v357
    %3893 = vmatpush.msra.mxu0 %v353
    %3894 = vmatpush.msra.mxu0 %v349
    %3895 = vmatpush.msra.mxu0 %v345
    %3896 = vmatpush.msra.mxu0 %v341
    %3897 = vmatpush.msra.mxu0 %v337
    %3898 = vmatpush.msra.mxu0 %v333
    %3899 = vmatpush.msra.mxu0 %v329
    %3900 = vmatpush.msra.mxu0 %v325
    %3901 = vmatpush.msra.mxu0 %v321
    %3902 = vmatmul.f32.gmra.mxu0 %v3805
    %v3903 = vpop.f32.mrf.mxu0
    %v3904 = vadd.f32 %v453, %v3903
    %3905 = vdwg.mxu0
    %3906 = vmatpush.msra.mxu0 %v445
    %3907 = vmatpush.msra.mxu0 %v441
    %3908 = vmatpush.msra.mxu0 %v437
    %3909 = vmatpush.msra.mxu0 %v433
    %3910 = vmatpush.msra.mxu0 %v429
    %3911 = vmatpush.msra.mxu0 %v425
    %3912 = vmatpush.msra.mxu0 %v421
    %3913 = vmatpush.msra.mxu0 %v417
    %3914 = vmatpush.msra.mxu0 %v413
    %3915 = vmatpush.msra.mxu0 %v409
    %3916 = vmatpush.msra.mxu0 %v405
    %3917 = vmatpush.msra.mxu0 %v401
    %3918 = vmatpush.msra.mxu0 %v397
    %3919 = vmatpush.msra.mxu0 %v393
    %3920 = vmatpush.msra.mxu0 %v389
    %3921 = vmatpush.msra.mxu0 %v385
    %3922 = vmatmul.f32.gmra.mxu0 %v3625
    %v3923 = vpop.f32.mrf.mxu0
    %v3924 = vadd.f32 %v3904, %v3923
    %3925 = vdwg.mxu0
    %3926 = vmatpush.msra.mxu0 %v382
    %3927 = vmatpush.msra.mxu0 %v378
    %3928 = vmatpush.msra.mxu0 %v374
    %3929 = vmatpush.msra.mxu0 %v370
    %3930 = vmatpush.msra.mxu0 %v366
    %3931 = vmatpush.msra.mxu0 %v362
    %3932 = vmatpush.msra.mxu0 %v358
    %3933 = vmatpush.msra.mxu0 %v354
    %3934 = vmatpush.msra.mxu0 %v350
    %3935 = vmatpush.msra.mxu0 %v346
    %3936 = vmatpush.msra.mxu0 %v342
    %3937 = vmatpush.msra.mxu0 %v338
    %3938 = vmatpush.msra.mxu0 %v334
    %3939 = vmatpush.msra.mxu0 %v330
    %3940 = vmatpush.msra.mxu0 %v326
    %3941 = vmatpush.msra.mxu0 %v322
    %3942 = vmatmul.f32.gmra.mxu0 %v3805
    %v3943 = vpop.f32.mrf.mxu0
    %v3944 = vadd.f32 %v454, %v3943
    %3945 = vdwg.mxu0
    %3946 = vmatpush.msra.mxu0 %v446
    %3947 = vmatpush.msra.mxu0 %v442
    %3948 = vmatpush.msra.mxu0 %v438
    %3949 = vmatpush.msra.mxu0 %v434
    %3950 = vmatpush.msra.mxu0 %v430
    %3951 = vmatpush.msra.mxu0 %v426
    %3952 = vmatpush.msra.mxu0 %v422
    %3953 = vmatpush.msra.mxu0 %v418
    %3954 = vmatpush.msra.mxu0 %v414
    %3955 = vmatpush.msra.mxu0 %v410
    %3956 = vmatpush.msra.mxu0 %v406
    %3957 = vmatpush.msra.mxu0 %v402
    %3958 = vmatpush.msra.mxu0 %v398
    %3959 = vmatpush.msra.mxu0 %v394
    %3960 = vmatpush.msra.mxu0 %v390
    %3961 = vmatpush.msra.mxu0 %v386
    %3962 = vmatmul.f32.gmra.mxu0 %v3625
    %v3963 = vpop.f32.mrf.mxu0
    %v3964 = vadd.f32 %v3944, %v3963
    %3965 = vdwg.mxu0
    %v3966 = vmul.f32 %v3844, 0.5
    %v3967 = vmul.f32 %v3884, 0.5
    %v3968 = vmul.f32 %v3924, 0.5
    %v3969 = vtanh.pop %v3966
    %v3970 = vtanh.pop %v3967
    %v3971 = vtanh.pop %v3968
    %v3972 = vmul.f32 %v3969, 0.5
    %v3973 = vmul.f32 %v3970, 0.5
    %v3974 = vmul.f32 %v3971, 0.5
    %v3975 = vadd.f32 %v3972, 0.5
    %v3976 = vadd.f32 %v3973, 0.5
    %v3977 = vadd.f32 %v3974, 0.5
    %v3978 = vtanh.pop %v3964
    %v3979 = vmul.f32 %v3976, %v3623
    %v3980 = vmul.f32 %v3975, %v3978
    %v3981 = vadd.f32 %v3979, %v3980
    %v3982 = vtanh.pop %v3981
    %v3983 = vmul.f32 %v3977, %v3982
    %s3984 = scalar_lea.vmem [#allocation3], 80
    %3985 = vst [vmem:[%s3984] sm:$0xff] %v3983
    %3986 = vmatpush.msra.mxu0 %v251
    %3987 = vmatpush.msra.mxu0 %v247
    %3988 = vmatpush.msra.mxu0 %v243
    %3989 = vmatpush.msra.mxu0 %v239
    %3990 = vmatpush.msra.mxu0 %v235
    %3991 = vmatpush.msra.mxu0 %v231
    %3992 = vmatpush.msra.mxu0 %v227
    %3993 = vmatpush.msra.mxu0 %v223
    %3994 = vmatpush.msra.mxu0 %v219
    %3995 = vmatpush.msra.mxu0 %v215
    %3996 = vmatpush.msra.mxu0 %v211
    %3997 = vmatpush.msra.mxu0 %v207
    %3998 = vmatpush.msra.mxu0 %v203
    %3999 = vmatpush.msra.mxu0 %v199
    %4000 = vmatpush.msra.mxu0 %v195
    %4001 = vmatpush.msra.mxu0 %v191
    %4002 = vmatmul.f32.gmra.mxu0 %v3805
    %v4003 = vpop.f32.mrf.mxu0
    %v4004 = vadd.f32 %v461, %v4003
    %4005 = vdwg.mxu0
    %4006 = vmatpush.msra.mxu0 %v315
    %4007 = vmatpush.msra.mxu0 %v311
    %4008 = vmatpush.msra.mxu0 %v307
    %4009 = vmatpush.msra.mxu0 %v303
    %4010 = vmatpush.msra.mxu0 %v299
    %4011 = vmatpush.msra.mxu0 %v295
    %4012 = vmatpush.msra.mxu0 %v291
    %4013 = vmatpush.msra.mxu0 %v287
    %4014 = vmatpush.msra.mxu0 %v283
    %4015 = vmatpush.msra.mxu0 %v279
    %4016 = vmatpush.msra.mxu0 %v275
    %4017 = vmatpush.msra.mxu0 %v271
    %4018 = vmatpush.msra.mxu0 %v267
    %4019 = vmatpush.msra.mxu0 %v263
    %4020 = vmatpush.msra.mxu0 %v259
    %4021 = vmatpush.msra.mxu0 %v255
    %4022 = vmatmul.f32.gmra.mxu0 %v3983
    %v4023 = vpop.f32.mrf.mxu0
    %v4024 = vadd.f32 %v4004, %v4023
    %4025 = vdwg.mxu0
    %4026 = vmatpush.msra.mxu0 %v252
    %4027 = vmatpush.msra.mxu0 %v248
    %4028 = vmatpush.msra.mxu0 %v244
    %4029 = vmatpush.msra.mxu0 %v240
    %4030 = vmatpush.msra.mxu0 %v236
    %4031 = vmatpush.msra.mxu0 %v232
    %4032 = vmatpush.msra.mxu0 %v228
    %4033 = vmatpush.msra.mxu0 %v224
    %4034 = vmatpush.msra.mxu0 %v220
    %4035 = vmatpush.msra.mxu0 %v216
    %4036 = vmatpush.msra.mxu0 %v212
    %4037 = vmatpush.msra.mxu0 %v208
    %4038 = vmatpush.msra.mxu0 %v204
    %4039 = vmatpush.msra.mxu0 %v200
    %4040 = vmatpush.msra.mxu0 %v196
    %4041 = vmatpush.msra.mxu0 %v192
    %4042 = vmatmul.f32.gmra.mxu0 %v3805
    %v4043 = vpop.f32.mrf.mxu0
    %v4044 = vadd.f32 %v462, %v4043
    %4045 = vdwg.mxu0
    %4046 = vmatpush.msra.mxu0 %v316
    %4047 = vmatpush.msra.mxu0 %v312
    %4048 = vmatpush.msra.mxu0 %v308
    %4049 = vmatpush.msra.mxu0 %v304
    %4050 = vmatpush.msra.mxu0 %v300
    %4051 = vmatpush.msra.mxu0 %v296
    %4052 = vmatpush.msra.mxu0 %v292
    %4053 = vmatpush.msra.mxu0 %v288
    %4054 = vmatpush.msra.mxu0 %v284
    %4055 = vmatpush.msra.mxu0 %v280
    %4056 = vmatpush.msra.mxu0 %v276
    %4057 = vmatpush.msra.mxu0 %v272
    %4058 = vmatpush.msra.mxu0 %v268
    %4059 = vmatpush.msra.mxu0 %v264
    %4060 = vmatpush.msra.mxu0 %v260
    %4061 = vmatpush.msra.mxu0 %v256
    %4062 = vmatmul.f32.gmra.mxu0 %v3983
    %v4063 = vpop.f32.mrf.mxu0
    %v4064 = vadd.f32 %v4044, %v4063
    %4065 = vdwg.mxu0
    %4066 = vmatpush.msra.mxu0 %v253
    %4067 = vmatpush.msra.mxu0 %v249
    %4068 = vmatpush.msra.mxu0 %v245
    %4069 = vmatpush.msra.mxu0 %v241
    %4070 = vmatpush.msra.mxu0 %v237
    %4071 = vmatpush.msra.mxu0 %v233
    %4072 = vmatpush.msra.mxu0 %v229
    %4073 = vmatpush.msra.mxu0 %v225
    %4074 = vmatpush.msra.mxu0 %v221
    %4075 = vmatpush.msra.mxu0 %v217
    %4076 = vmatpush.msra.mxu0 %v213
    %4077 = vmatpush.msra.mxu0 %v209
    %4078 = vmatpush.msra.mxu0 %v205
    %4079 = vmatpush.msra.mxu0 %v201
    %4080 = vmatpush.msra.mxu0 %v197
    %4081 = vmatpush.msra.mxu0 %v193
    %4082 = vmatmul.f32.gmra.mxu0 %v3805
    %v4083 = vpop.f32.mrf.mxu0
    %v4084 = vadd.f32 %v463, %v4083
    %4085 = vdwg.mxu0
    %4086 = vmatpush.msra.mxu0 %v317
    %4087 = vmatpush.msra.mxu0 %v313
    %4088 = vmatpush.msra.mxu0 %v309
    %4089 = vmatpush.msra.mxu0 %v305
    %4090 = vmatpush.msra.mxu0 %v301
    %4091 = vmatpush.msra.mxu0 %v297
    %4092 = vmatpush.msra.mxu0 %v293
    %4093 = vmatpush.msra.mxu0 %v289
    %4094 = vmatpush.msra.mxu0 %v285
    %4095 = vmatpush.msra.mxu0 %v281
    %4096 = vmatpush.msra.mxu0 %v277
    %4097 = vmatpush.msra.mxu0 %v273
    %4098 = vmatpush.msra.mxu0 %v269
    %4099 = vmatpush.msra.mxu0 %v265
    %4100 = vmatpush.msra.mxu0 %v261
    %4101 = vmatpush.msra.mxu0 %v257
    %4102 = vmatmul.f32.gmra.mxu0 %v3983
    %v4103 = vpop.f32.mrf.mxu0
    %v4104 = vadd.f32 %v4084, %v4103
    %4105 = vdwg.mxu0
    %4106 = vmatpush.msra.mxu0 %v254
    %4107 = vmatpush.msra.mxu0 %v250
    %4108 = vmatpush.msra.mxu0 %v246
    %4109 = vmatpush.msra.mxu0 %v242
    %4110 = vmatpush.msra.mxu0 %v238
    %4111 = vmatpush.msra.mxu0 %v234
    %4112 = vmatpush.msra.mxu0 %v230
    %4113 = vmatpush.msra.mxu0 %v226
    %4114 = vmatpush.msra.mxu0 %v222
    %4115 = vmatpush.msra.mxu0 %v218
    %4116 = vmatpush.msra.mxu0 %v214
    %4117 = vmatpush.msra.mxu0 %v210
    %4118 = vmatpush.msra.mxu0 %v206
    %4119 = vmatpush.msra.mxu0 %v202
    %4120 = vmatpush.msra.mxu0 %v198
    %4121 = vmatpush.msra.mxu0 %v194
    %4122 = vmatmul.f32.gmra.mxu0 %v3805
    %v4123 = vpop.f32.mrf.mxu0
    %v4124 = vadd.f32 %v464, %v4123
    %4125 = vdwg.mxu0
    %4126 = vmatpush.msra.mxu0 %v318
    %4127 = vmatpush.msra.mxu0 %v314
    %4128 = vmatpush.msra.mxu0 %v310
    %4129 = vmatpush.msra.mxu0 %v306
    %4130 = vmatpush.msra.mxu0 %v302
    %4131 = vmatpush.msra.mxu0 %v298
    %4132 = vmatpush.msra.mxu0 %v294
    %4133 = vmatpush.msra.mxu0 %v290
    %4134 = vmatpush.msra.mxu0 %v286
    %4135 = vmatpush.msra.mxu0 %v282
    %4136 = vmatpush.msra.mxu0 %v278
    %4137 = vmatpush.msra.mxu0 %v274
    %4138 = vmatpush.msra.mxu0 %v270
    %4139 = vmatpush.msra.mxu0 %v266
    %4140 = vmatpush.msra.mxu0 %v262
    %4141 = vmatpush.msra.mxu0 %v258
    %4142 = vmatmul.f32.gmra.mxu0 %v3983
    %v4143 = vpop.f32.mrf.mxu0
    %v4144 = vadd.f32 %v4124, %v4143
    %4145 = vdwg.mxu0
    %v4146 = vmul.f32 %v4024, 0.5
    %v4147 = vmul.f32 %v4064, 0.5
    %v4148 = vmul.f32 %v4104, 0.5
    %v4149 = vtanh.pop %v4146
    %v4150 = vtanh.pop %v4147
    %v4151 = vtanh.pop %v4148
    %v4152 = vmul.f32 %v4149, 0.5
    %v4153 = vmul.f32 %v4150, 0.5
    %v4154 = vmul.f32 %v4151, 0.5
    %v4155 = vadd.f32 %v4152, 0.5
    %v4156 = vadd.f32 %v4153, 0.5
    %v4157 = vadd.f32 %v4154, 0.5
    %v4158 = vtanh.pop %v4144
    %v4159 = vmul.f32 %v4156, %v3803
    %v4160 = vmul.f32 %v4155, %v4158
    %v4161 = vadd.f32 %v4159, %v4160
    %v4162 = vtanh.pop %v4161
    %v4163 = vmul.f32 %v4157, %v4162
    %4164 = vmatpush.msra.mxu0 %v379
    %4165 = vmatpush.msra.mxu0 %v375
    %4166 = vmatpush.msra.mxu0 %v371
    %4167 = vmatpush.msra.mxu0 %v367
    %4168 = vmatpush.msra.mxu0 %v363
    %4169 = vmatpush.msra.mxu0 %v359
    %4170 = vmatpush.msra.mxu0 %v355
    %4171 = vmatpush.msra.mxu0 %v351
    %4172 = vmatpush.msra.mxu0 %v347
    %4173 = vmatpush.msra.mxu0 %v343
    %4174 = vmatpush.msra.mxu0 %v339
    %4175 = vmatpush.msra.mxu0 %v335
    %4176 = vmatpush.msra.mxu0 %v331
    %4177 = vmatpush.msra.mxu0 %v327
    %4178 = vmatpush.msra.mxu0 %v323
    %4179 = vmatpush.msra.mxu0 %v319
    %4180 = vmatmul.f32.gmra.mxu0 %v4163
    %v4181 = vpop.f32.mrf.mxu0
    %v4182 = vadd.f32 %v451, %v4181
    %4183 = vdwg.mxu0
    %4184 = vmatpush.msra.mxu0 %v443
    %4185 = vmatpush.msra.mxu0 %v439
    %4186 = vmatpush.msra.mxu0 %v435
    %4187 = vmatpush.msra.mxu0 %v431
    %4188 = vmatpush.msra.mxu0 %v427
    %4189 = vmatpush.msra.mxu0 %v423
    %4190 = vmatpush.msra.mxu0 %v419
    %4191 = vmatpush.msra.mxu0 %v415
    %4192 = vmatpush.msra.mxu0 %v411
    %4193 = vmatpush.msra.mxu0 %v407
    %4194 = vmatpush.msra.mxu0 %v403
    %4195 = vmatpush.msra.mxu0 %v399
    %4196 = vmatpush.msra.mxu0 %v395
    %4197 = vmatpush.msra.mxu0 %v391
    %4198 = vmatpush.msra.mxu0 %v387
    %4199 = vmatpush.msra.mxu0 %v383
    %4200 = vmatmul.f32.gmra.mxu0 %v3983
    %v4201 = vpop.f32.mrf.mxu0
    %v4202 = vadd.f32 %v4182, %v4201
    %4203 = vdwg.mxu0
    %4204 = vmatpush.msra.mxu0 %v380
    %4205 = vmatpush.msra.mxu0 %v376
    %4206 = vmatpush.msra.mxu0 %v372
    %4207 = vmatpush.msra.mxu0 %v368
    %4208 = vmatpush.msra.mxu0 %v364
    %4209 = vmatpush.msra.mxu0 %v360
    %4210 = vmatpush.msra.mxu0 %v356
    %4211 = vmatpush.msra.mxu0 %v352
    %4212 = vmatpush.msra.mxu0 %v348
    %4213 = vmatpush.msra.mxu0 %v344
    %4214 = vmatpush.msra.mxu0 %v340
    %4215 = vmatpush.msra.mxu0 %v336
    %4216 = vmatpush.msra.mxu0 %v332
    %4217 = vmatpush.msra.mxu0 %v328
    %4218 = vmatpush.msra.mxu0 %v324
    %4219 = vmatpush.msra.mxu0 %v320
    %4220 = vmatmul.f32.gmra.mxu0 %v4163
    %v4221 = vpop.f32.mrf.mxu0
    %v4222 = vadd.f32 %v452, %v4221
    %4223 = vdwg.mxu0
    %4224 = vmatpush.msra.mxu0 %v444
    %4225 = vmatpush.msra.mxu0 %v440
    %4226 = vmatpush.msra.mxu0 %v436
    %4227 = vmatpush.msra.mxu0 %v432
    %4228 = vmatpush.msra.mxu0 %v428
    %4229 = vmatpush.msra.mxu0 %v424
    %4230 = vmatpush.msra.mxu0 %v420
    %4231 = vmatpush.msra.mxu0 %v416
    %4232 = vmatpush.msra.mxu0 %v412
    %4233 = vmatpush.msra.mxu0 %v408
    %4234 = vmatpush.msra.mxu0 %v404
    %4235 = vmatpush.msra.mxu0 %v400
    %4236 = vmatpush.msra.mxu0 %v396
    %4237 = vmatpush.msra.mxu0 %v392
    %4238 = vmatpush.msra.mxu0 %v388
    %4239 = vmatpush.msra.mxu0 %v384
    %4240 = vmatmul.f32.gmra.mxu0 %v3983
    %v4241 = vpop.f32.mrf.mxu0
    %v4242 = vadd.f32 %v4222, %v4241
    %4243 = vdwg.mxu0
    %4244 = vmatpush.msra.mxu0 %v381
    %4245 = vmatpush.msra.mxu0 %v377
    %4246 = vmatpush.msra.mxu0 %v373
    %4247 = vmatpush.msra.mxu0 %v369
    %4248 = vmatpush.msra.mxu0 %v365
    %4249 = vmatpush.msra.mxu0 %v361
    %4250 = vmatpush.msra.mxu0 %v357
    %4251 = vmatpush.msra.mxu0 %v353
    %4252 = vmatpush.msra.mxu0 %v349
    %4253 = vmatpush.msra.mxu0 %v345
    %4254 = vmatpush.msra.mxu0 %v341
    %4255 = vmatpush.msra.mxu0 %v337
    %4256 = vmatpush.msra.mxu0 %v333
    %4257 = vmatpush.msra.mxu0 %v329
    %4258 = vmatpush.msra.mxu0 %v325
    %4259 = vmatpush.msra.mxu0 %v321
    %4260 = vmatmul.f32.gmra.mxu0 %v4163
    %v4261 = vpop.f32.mrf.mxu0
    %v4262 = vadd.f32 %v453, %v4261
    %4263 = vdwg.mxu0
    %4264 = vmatpush.msra.mxu0 %v445
    %4265 = vmatpush.msra.mxu0 %v441
    %4266 = vmatpush.msra.mxu0 %v437
    %4267 = vmatpush.msra.mxu0 %v433
    %4268 = vmatpush.msra.mxu0 %v429
    %4269 = vmatpush.msra.mxu0 %v425
    %4270 = vmatpush.msra.mxu0 %v421
    %4271 = vmatpush.msra.mxu0 %v417
    %4272 = vmatpush.msra.mxu0 %v413
    %4273 = vmatpush.msra.mxu0 %v409
    %4274 = vmatpush.msra.mxu0 %v405
    %4275 = vmatpush.msra.mxu0 %v401
    %4276 = vmatpush.msra.mxu0 %v397
    %4277 = vmatpush.msra.mxu0 %v393
    %4278 = vmatpush.msra.mxu0 %v389
    %4279 = vmatpush.msra.mxu0 %v385
    %4280 = vmatmul.f32.gmra.mxu0 %v3983
    %v4281 = vpop.f32.mrf.mxu0
    %v4282 = vadd.f32 %v4262, %v4281
    %4283 = vdwg.mxu0
    %4284 = vmatpush.msra.mxu0 %v382
    %4285 = vmatpush.msra.mxu0 %v378
    %4286 = vmatpush.msra.mxu0 %v374
    %4287 = vmatpush.msra.mxu0 %v370
    %4288 = vmatpush.msra.mxu0 %v366
    %4289 = vmatpush.msra.mxu0 %v362
    %4290 = vmatpush.msra.mxu0 %v358
    %4291 = vmatpush.msra.mxu0 %v354
    %4292 = vmatpush.msra.mxu0 %v350
    %4293 = vmatpush.msra.mxu0 %v346
    %4294 = vmatpush.msra.mxu0 %v342
    %4295 = vmatpush.msra.mxu0 %v338
    %4296 = vmatpush.msra.mxu0 %v334
    %4297 = vmatpush.msra.mxu0 %v330
    %4298 = vmatpush.msra.mxu0 %v326
    %4299 = vmatpush.msra.mxu0 %v322
    %4300 = vmatmul.f32.gmra.mxu0 %v4163
    %v4301 = vpop.f32.mrf.mxu0
    %v4302 = vadd.f32 %v454, %v4301
    %4303 = vdwg.mxu0
    %4304 = vmatpush.msra.mxu0 %v446
    %4305 = vmatpush.msra.mxu0 %v442
    %4306 = vmatpush.msra.mxu0 %v438
    %4307 = vmatpush.msra.mxu0 %v434
    %4308 = vmatpush.msra.mxu0 %v430
    %4309 = vmatpush.msra.mxu0 %v426
    %4310 = vmatpush.msra.mxu0 %v422
    %4311 = vmatpush.msra.mxu0 %v418
    %4312 = vmatpush.msra.mxu0 %v414
    %4313 = vmatpush.msra.mxu0 %v410
    %4314 = vmatpush.msra.mxu0 %v406
    %4315 = vmatpush.msra.mxu0 %v402
    %4316 = vmatpush.msra.mxu0 %v398
    %4317 = vmatpush.msra.mxu0 %v394
    %4318 = vmatpush.msra.mxu0 %v390
    %4319 = vmatpush.msra.mxu0 %v386
    %4320 = vmatmul.f32.gmra.mxu0 %v3983
    %v4321 = vpop.f32.mrf.mxu0
    %v4322 = vadd.f32 %v4302, %v4321
    %4323 = vdwg.mxu0
    %v4324 = vmul.f32 %v4202, 0.5
    %v4325 = vmul.f32 %v4242, 0.5
    %v4326 = vmul.f32 %v4282, 0.5
    %v4327 = vtanh.pop %v4324
    %v4328 = vtanh.pop %v4325
    %v4329 = vtanh.pop %v4326
    %v4330 = vmul.f32 %v4327, 0.5
    %v4331 = vmul.f32 %v4328, 0.5
    %v4332 = vmul.f32 %v4329, 0.5
    %v4333 = vadd.f32 %v4330, 0.5
    %v4334 = vadd.f32 %v4331, 0.5
    %v4335 = vadd.f32 %v4332, 0.5
    %v4336 = vtanh.pop %v4322
    %v4337 = vmul.f32 %v4334, %v3981
    %v4338 = vmul.f32 %v4333, %v4336
    %v4339 = vadd.f32 %v4337, %v4338
    %v4340 = vtanh.pop %v4339
    %v4341 = vmul.f32 %v4335, %v4340
    %s4342 = scalar_lea.vmem [#allocation3], 88
    %4343 = vst [vmem:[%s4342] sm:$0xff] %v4341
    %v4345 = vperm.slane %v447, 0
    %v4347 = vlaneseq
    %v4348 = vand.u32 %v4347, 127
    %v4349 = vld [vmem:[#allocation3] sm:$0xff]
    %v4350 = vmul.f32 %v4349, %v4345
    %4351 = vadd.xlane.f32.xlu0 %v4350
    %v4352 = vpop.xlane.xlu0 %4351
    %v4354 = vperm.slane %v448, 0
    %v4356 = vadd.f32 %v4352, %v4354
    %vm4357 = vcmp.eq.s32.totalorder %v4348, 0
    %v4358 = vsel %vm4357, 1, 0
    %v4359 = vcvt.s32.f32 %v4358
    %4361 = vset.pattern.permute.xlu0 0
    %4362 = vperm.xlu0 %4361, %v4356
    %v4363 = vpop.permute.xlu0 %4362
    %v4365 = vmul.f32 %v4363, %v4359
    %v4366 = vadd.f32 %v4365, 0.0
    %v4367 = vld [vmem:[%s1194] sm:$0xff]
    %v4368 = vmul.f32 %v4367, %v4345
    %4369 = vadd.xlane.f32.xlu0 %v4368
    %v4370 = vpop.xlane.xlu0 %4369
    %v4371 = vadd.f32 %v4370, %v4354
    %vm4372 = vcmp.eq.s32.totalorder %v4348, 1
    %v4373 = vsel %vm4372, 1, 0
    %v4374 = vcvt.s32.f32 %v4373
    %4376 = vset.pattern.permute.xlu0 0
    %4377 = vperm.xlu0 %4376, %v4371
    %v4378 = vpop.permute.xlu0 %4377
    %v4380 = vmul.f32 %v4378, %v4374
    %v4381 = vadd.f32 %v4366, %v4380
    %v4382 = vld [vmem:[%s1480] sm:$0xff]
    %v4383 = vmul.f32 %v4382, %v4345
    %4384 = vadd.xlane.f32.xlu0 %v4383
    %v4385 = vpop.xlane.xlu0 %4384
    %v4386 = vadd.f32 %v4385, %v4354
    %vm4387 = vcmp.eq.s32.totalorder %v4348, 2
    %v4388 = vsel %vm4387, 1, 0
    %v4389 = vcvt.s32.f32 %v4388
    %4391 = vset.pattern.permute.xlu0 0
    %4392 = vperm.xlu0 %4391, %v4386
    %v4393 = vpop.permute.xlu0 %4392
    %v4395 = vmul.f32 %v4393, %v4389
    %v4396 = vadd.f32 %v4381, %v4395
    %v4397 = vld [vmem:[%s1766] sm:$0xff]
    %v4398 = vmul.f32 %v4397, %v4345
    %4399 = vadd.xlane.f32.xlu0 %v4398
    %v4400 = vpop.xlane.xlu0 %4399
    %v4401 = vadd.f32 %v4400, %v4354
    %vm4402 = vcmp.eq.s32.totalorder %v4348, 3
    %v4403 = vsel %vm4402, 1, 0
    %v4404 = vcvt.s32.f32 %v4403
    %4406 = vset.pattern.permute.xlu0 0
    %4407 = vperm.xlu0 %4406, %v4401
    %v4408 = vpop.permute.xlu0 %4407
    %v4410 = vmul.f32 %v4408, %v4404
    %v4411 = vadd.f32 %v4396, %v4410
    %v4412 = vld [vmem:[%s2052] sm:$0xff]
    %v4413 = vmul.f32 %v4412, %v4345
    %4414 = vadd.xlane.f32.xlu0 %v4413
    %v4415 = vpop.xlane.xlu0 %4414
    %v4416 = vadd.f32 %v4415, %v4354
    %vm4417 = vcmp.eq.s32.totalorder %v4348, 4
    %v4418 = vsel %vm4417, 1, 0
    %v4419 = vcvt.s32.f32 %v4418
    %4421 = vset.pattern.permute.xlu0 0
    %4422 = vperm.xlu0 %4421, %v4416
    %v4423 = vpop.permute.xlu0 %4422
    %v4425 = vmul.f32 %v4423, %v4419
    %v4426 = vadd.f32 %v4411, %v4425
    %v4427 = vld [vmem:[%s2338] sm:$0xff]
    %v4428 = vmul.f32 %v4427, %v4345
    %4429 = vadd.xlane.f32.xlu0 %v4428
    %v4430 = vpop.xlane.xlu0 %4429
    %v4431 = vadd.f32 %v4430, %v4354
    %vm4432 = vcmp.eq.s32.totalorder %v4348, 5
    %v4433 = vsel %vm4432, 1, 0
    %v4434 = vcvt.s32.f32 %v4433
    %4436 = vset.pattern.permute.xlu0 0
    %4437 = vperm.xlu0 %4436, %v4431
    %v4438 = vpop.permute.xlu0 %4437
    %v4440 = vmul.f32 %v4438, %v4434
    %v4441 = vadd.f32 %v4426, %v4440
    %v4442 = vld [vmem:[%s2624] sm:$0xff]
    %v4443 = vmul.f32 %v4442, %v4345
    %4444 = vadd.xlane.f32.xlu0 %v4443
    %v4445 = vpop.xlane.xlu0 %4444
    %v4446 = vadd.f32 %v4445, %v4354
    %vm4447 = vcmp.eq.s32.totalorder %v4348, 6
    %v4448 = vsel %vm4447, 1, 0
    %v4449 = vcvt.s32.f32 %v4448
    %4451 = vset.pattern.permute.xlu0 0
    %4452 = vperm.xlu0 %4451, %v4446
    %v4453 = vpop.permute.xlu0 %4452
    %v4455 = vmul.f32 %v4453, %v4449
    %v4456 = vadd.f32 %v4441, %v4455
    %v4457 = vld [vmem:[%s2910] sm:$0xff]
    %v4458 = vmul.f32 %v4457, %v4345
    %4459 = vadd.xlane.f32.xlu0 %v4458
    %v4460 = vpop.xlane.xlu0 %4459
    %v4461 = vadd.f32 %v4460, %v4354
    %vm4462 = vcmp.eq.s32.totalorder %v4348, 7
    %v4463 = vsel %vm4462, 1, 0
    %v4464 = vcvt.s32.f32 %v4463
    %4466 = vset.pattern.permute.xlu0 0
    %4467 = vperm.xlu0 %4466, %v4461
    %v4468 = vpop.permute.xlu0 %4467
    %v4470 = vmul.f32 %v4468, %v4464
    %v4471 = vadd.f32 %v4456, %v4470
    %v4472 = vld [vmem:[%s3268] sm:$0xff]
    %v4473 = vmul.f32 %v4472, %v4345
    %4474 = vadd.xlane.f32.xlu0 %v4473
    %v4475 = vpop.xlane.xlu0 %4474
    %v4476 = vadd.f32 %v4475, %v4354
    %vm4477 = vcmp.eq.s32.totalorder %v4348, 8
    %v4478 = vsel %vm4477, 1, 0
    %v4479 = vcvt.s32.f32 %v4478
    %4481 = vset.pattern.permute.xlu0 0
    %4482 = vperm.xlu0 %4481, %v4476
    %v4483 = vpop.permute.xlu0 %4482
    %v4485 = vmul.f32 %v4483, %v4479
    %v4486 = vadd.f32 %v4471, %v4485
    %v4487 = vld [vmem:[%s3626] sm:$0xff]
    %v4488 = vmul.f32 %v4487, %v4345
    %4489 = vadd.xlane.f32.xlu0 %v4488
    %v4490 = vpop.xlane.xlu0 %4489
    %v4491 = vadd.f32 %v4490, %v4354
    %vm4492 = vcmp.eq.s32.totalorder %v4348, 9
    %v4493 = vsel %vm4492, 1, 0
    %v4494 = vcvt.s32.f32 %v4493
    %4496 = vset.pattern.permute.xlu0 0
    %4497 = vperm.xlu0 %4496, %v4491
    %v4498 = vpop.permute.xlu0 %4497
    %v4500 = vmul.f32 %v4498, %v4494
    %v4501 = vadd.f32 %v4486, %v4500
    %v4502 = vld [vmem:[%s3984] sm:$0xff]
    %v4503 = vmul.f32 %v4502, %v4345
    %4504 = vadd.xlane.f32.xlu0 %v4503
    %v4505 = vpop.xlane.xlu0 %4504
    %v4506 = vadd.f32 %v4505, %v4354
    %vm4507 = vcmp.eq.s32.totalorder %v4348, 10
    %v4508 = vsel %vm4507, 1, 0
    %v4509 = vcvt.s32.f32 %v4508
    %4511 = vset.pattern.permute.xlu0 0
    %4512 = vperm.xlu0 %4511, %v4506
    %v4513 = vpop.permute.xlu0 %4512
    %v4515 = vmul.f32 %v4513, %v4509
    %v4516 = vadd.f32 %v4501, %v4515
    %v4517 = vld [vmem:[%s4342] sm:$0xff]
    %v4518 = vmul.f32 %v4517, %v4345
    %4519 = vadd.xlane.f32.xlu0 %v4518
    %v4520 = vpop.xlane.xlu0 %4519
    %v4521 = vadd.f32 %v4520, %v4354
    %vm4522 = vcmp.eq.s32.totalorder %v4348, 11
    %v4523 = vsel %vm4522, 1, 0
    %v4524 = vcvt.s32.f32 %v4523
    %4526 = vset.pattern.permute.xlu0 0
    %4527 = vperm.xlu0 %4526, %v4521
    %v4528 = vpop.permute.xlu0 %4527
    %v4530 = vmul.f32 %v4528, %v4524
    %v4531 = vadd.f32 %v4516, %v4530
    %4532 = vst [vmem:[#allocation16] sm:$0xff] %v4531
    // Predicated region
    $region66: #{tpu_custom_call.1} parent=1 // pred_check
      _
    $region67: #{tpu_custom_call.1} parent=1 // pred_check_branch
      %4534 = sbr.rel (0) target = $region69
    $region68: #{tpu_custom_call.1} parent=1 // pred_region
      %4536 = vsyncadd [#allocation7], 0
      %s4538 = sshll.u32 [#allocation16], 4
      %s4539 = int_to_ptr.vmem [resolvable:$true] %s4538
      %s4540 = sshll.u32 %s10, 4
      %s4541 = int_to_ptr.hbm [resolvable:$true] %s4540
      %4543 = dma.vmem_to_hbm [thread:$0]  %s4539, 128, %s4541, [#allocation7]
    $region69: #{tpu_custom_call.1} parent=1 // pred_fallthru
      _
    // Predicated region
    $region70: #{tpu_custom_call.1} parent=1 // pred_check
      _
    $region71: #{tpu_custom_call.1} parent=1 // pred_check_branch
      %4545 = sbr.rel (0) target = $region73
    $region72: #{tpu_custom_call.1} parent=1 // pred_region
      %4547 = dma.done [#allocation7], 128
    $region73: #{tpu_custom_call.1} parent=1 // pred_fallthru
      _
    %4548 = vsyncpa [#allocation6], 1
    %4549 = vsyncpa [#allocation9], 1
    %4550 = vsyncpa [#allocation12], 1
    %4551 = vsyncpa [#allocation15], 1
    %4552 = vsyncpa [#allocation7], 1

</llo_original>
